<compile_context>
chip_gen: v5e
topology: v5e:2x2
jax: 0.10.0
libtpu: 0.0.40
codegen_flags: <defaults>
</compile_context>

<pallas_src>
import numpy as np
import jax
import jax.numpy as jnp
from jax.experimental import pallas as pl
from jax.experimental.pallas import tpu as pltpu

EPS = 1e-5


# ----------------------------- Pallas kernel -------------------------------
def bottleneck_kernel(x_ref, w1_ref, s1_ref, t1_ref,
                      w2_ref, s2_ref, t2_ref,
                      w3_ref, s3_ref, t3_ref, o_ref):
    THp, W, Cin = x_ref.shape                # haloed row block: THp = TH + 2
    TH = THp - 2
    Cw = w1_ref.shape[1]
    Cout = w3_ref.shape[1]

    i = pl.program_id(1)                     # row-block index
    n_i = pl.num_programs(1)

    xb = x_ref[...]                          # bf16 (THp, W, Cin)

    # --- conv1 (1x1) + folded BN1 + ReLU over the haloed rows (K = Cin) -----
    y1 = jnp.dot(xb.reshape(THp * W, Cin), w1_ref[...],
                 preferred_element_type=jnp.float32)
    y1 = jnp.maximum(y1 * s1_ref[...] + t1_ref[...], 0.0)
    y1 = y1.reshape(THp, W, Cw)

    # Halo rows outside the image implement conv2's zero padding in H. They
    # were gathered from zero rows of x, but conv1's folded bias makes them
    # non-zero, so mask them back to exact zeros (cheap VPU select).
    r = jax.lax.broadcasted_iota(jnp.int32, (THp, 1, 1), 0)
    top_ok = jnp.logical_or(i > 0, r > 0)
    bot_ok = jnp.logical_or(i < n_i - 1, r < THp - 1)
    y1 = jnp.where(jnp.logical_and(top_ok, bot_ok), y1, 0.0)

    # --- conv2 (3x3, pad=1): merge the 3 kw taps along channels (K = 3*Cw) --
    # left/right are the w-1 / w+1 taps with zero padding in W built in.
    zcol = jnp.zeros((THp, 1, Cw), jnp.float32)
    left = jnp.concatenate([zcol, y1[:, :W - 1, :]], axis=1)   # col w -> y1[w-1]
    right = jnp.concatenate([y1[:, 1:, :], zcol], axis=1)      # col w -> y1[w+1]
    cat = jnp.concatenate([left, y1, right], axis=-1).astype(jnp.bfloat16)

    acc = jnp.zeros((TH * W, Cw), jnp.float32)
    for kh in range(3):                 # kh taps = cheap leading-dim row slices
        lhs = cat[kh:kh + TH].reshape(TH * W, 3 * Cw)
        acc = acc + jnp.dot(lhs, w2_ref[kh],
                            preferred_element_type=jnp.float32)
    y2 = jnp.maximum(acc * s2_ref[...] + t2_ref[...], 0.0)

    # --- conv3 (1x1) + folded BN3 + residual add + ReLU ---------------------
    y3 = jnp.dot(y2.astype(jnp.bfloat16), w3_ref[...],
                 preferred_element_type=jnp.float32)
    y3 = y3 * s3_ref[...] + t3_ref[...]
    idn = xb[1:1 + TH].reshape(TH * W, Cout).astype(jnp.float32)
    out = jnp.maximum(y3 + idn, 0.0)
    o_ref[...] = out.reshape(TH, W, Cout).astype(o_ref.dtype)


# ------------------------------ wrapper -------------------------------------
def fold_bn(conv_b, gamma, beta, mean, var, eps=EPS):
    scale = gamma / jnp.sqrt(var + eps)
    shift = (conv_b - mean) * scale + beta
    return scale.astype(jnp.float32), shift.astype(jnp.float32)


def _pick_block_rows(H, W, Cin, Cw, Cout, budget_bytes=3 << 20):
    """Largest divisor of H whose per-tile live set stays under budget."""
    def tile_bytes(th):
        thp = th + 2
        return (thp * W * Cin * 2            # haloed x block (bf16)
                + thp * W * Cw * 4           # y1 (f32)
                + thp * W * 3 * Cw * 2       # tap-merged lhs (bf16)
                + th * W * Cout * 4 * 2)     # acc + out (f32)
    best = 1
    for th in range(1, H + 1):
        if H % th == 0 and tile_bytes(th) <= budget_bytes:
            best = th
    return best


def bottleneck_forward(x_nchw, p, *, block_rows=None):
    """x_nchw: [B, Cin, H, W] float32.  Returns [B, Cout, H, W] float32."""
    # TODO(synk): keep the surrounding model in NHWC to drop these two
    # full-activation transpose passes at the kernel boundary.
    x = jnp.transpose(x_nchw, (0, 2, 3, 1))            # -> NHWC
    B, H, W, Cin = x.shape
    width = p['conv1_w'].shape[0]
    Cout = p['conv3_w'].shape[0]
    assert Cin == Cout, "residual add requires inplanes == planes * expansion"

    if block_rows is None:
        TH = _pick_block_rows(H, W, Cin, width, Cout)
    else:
        TH = block_rows if H % block_rows == 0 else H
    nH = H // TH
    THp = TH + 2

    # fold conv bias + BN (inference mode) into per-channel scale/shift
    s1, t1 = fold_bn(p['conv1_b'], *p['bn1'])
    s2, t2 = fold_bn(p['conv2_b'], *p['bn2'])
    s3, t3 = fold_bn(p['conv3_b'], *p['bn3'])

    # bf16 activations / weights for the MXU (f32 accumulate in-kernel);
    # overlapping row windows (TH+2 rows, step TH) of the H-zero-padded input
    # carry the 3x3 halo so no padded scratch is needed inside the kernel.
    xb = x.astype(jnp.bfloat16)
    xpad = jnp.pad(xb, ((0, 0), (1, 1), (0, 0), (0, 0)))
    row_idx = jnp.arange(nH)[:, None] * TH + jnp.arange(THp)[None, :]
    x_win = xpad[:, row_idx]                           # (B, nH, THp, W, Cin)

    w1 = p['conv1_w'].reshape(width, Cin).T.astype(jnp.bfloat16)    # (Cin, Cw)
    w2 = jnp.transpose(p['conv2_w'], (2, 3, 1, 0))                  # (kh,kw,ci,co)
    w2 = w2.reshape(3, 3 * width, width).astype(jnp.bfloat16)       # kw-merged K
    w3 = p['conv3_w'].reshape(Cout, width).T.astype(jnp.bfloat16)   # (Cw, Cout)

    grid = (B, nH)
    kernel = pl.pallas_call(
        bottleneck_kernel,
        out_shape=jax.ShapeDtypeStruct((B, H, W, Cout), jnp.float32),
        grid_spec=pltpu.PrefetchScalarGridSpec(
            num_scalar_prefetch=0,
            grid=grid,
            in_specs=[
                # activations: one haloed row-block per grid step
                pl.BlockSpec((None, None, THp, W, Cin),
                             lambda b, i: (b, i, 0, 0, 0)),
                # weights / folded BN params: VMEM-resident (constant block)
                pl.BlockSpec((Cin, width), lambda b, i: (0, 0)),
                pl.BlockSpec((1, width), lambda b, i: (0, 0)),
                pl.BlockSpec((1, width), lambda b, i: (0, 0)),
                pl.BlockSpec((3, 3 * width, width), lambda b, i: (0, 0, 0)),
                pl.BlockSpec((1, width), lambda b, i: (0, 0)),
                pl.BlockSpec((1, width), lambda b, i: (0, 0)),
                pl.BlockSpec((width, Cout), lambda b, i: (0, 0)),
                pl.BlockSpec((1, Cout), lambda b, i: (0, 0)),
                pl.BlockSpec((1, Cout), lambda b, i: (0, 0)),
            ],
            out_specs=pl.BlockSpec((None, TH, W, Cout),
                                   lambda b, i: (b, i, 0, 0)),
        ),
        compiler_params=pltpu.CompilerParams(
            # both grid axes are independent -> both TensorCores on v7x
            dimension_semantics=("parallel", "parallel"),
            # double-buffered footprint (2*x_block + 2*out_block + weights +
            # temporaries) is a few MiB at ResNet shapes; 32 MiB leaves
            # headroom on every generation incl. v7x's 64 MiB physical VMEM.
            vmem_limit_bytes=32 * 1024 * 1024,
        ),
    )
    out = kernel(x_win,
                 w1, s1.reshape(1, -1), t1.reshape(1, -1),
                 w2, s2.reshape(1, -1), t2.reshape(1, -1),
                 w3, s3.reshape(1, -1), t3.reshape(1, -1))
    return jnp.transpose(out, (0, 3, 1, 2))            # -> NCHW


# -------------------- deterministic parameter construction ------------------
def init_params(key, inplanes, planes, base_width=64, groups=1):
    width = int(planes * (base_width / 64.0)) * groups
    outp = planes * 4                                   # expansion = 4
    ks = jax.random.split(key, 9)

    def u(k, shape, scale):
        return jax.random.uniform(k, shape, jnp.float32, -1.0, 1.0) * scale

    def bn(k, c):
        k1, k2, k3, k4 = jax.random.split(k, 4)
        gamma = jax.random.uniform(k1, (c,), jnp.float32, 0.5, 1.5)
        beta = u(k2, (c,), 0.1)
        mean = u(k3, (c,), 0.1)
        var = jax.random.uniform(k4, (c,), jnp.float32, 0.5, 1.5)
        return (gamma, beta, mean, var)

    return dict(
        conv1_w=u(ks[0], (width, inplanes, 1, 1), 0.2),
        conv1_b=u(ks[1], (width,), 0.1),
        conv2_w=u(ks[2], (width, width, 3, 3), 0.2),
        conv2_b=u(ks[3], (width,), 0.1),
        conv3_w=u(ks[4], (outp, width, 1, 1), 0.2),
        conv3_b=u(ks[5], (outp,), 0.1),
        bn1=bn(ks[6], width),
        bn2=bn(ks[7], width),
        bn3=bn(ks[8], outp),
    )


# ------------------------ pure-JAX reference (check) ------------------------
# Mirrors the kernel's precision choices (bf16 conv inputs/weights, f32
# accumulate, f32 BN/ReLU/residual) so the comparison is apples-to-apples.
def reference_forward(x_nchw, p):
    x = jnp.transpose(x_nchw, (0, 2, 3, 1)).astype(jnp.bfloat16)

    def conv(inp, w_oihw, b, pad):
        w = jnp.transpose(w_oihw, (2, 3, 1, 0)).astype(jnp.bfloat16)  # HWIO
        y = jax.lax.conv_general_dilated(
            inp.astype(jnp.bfloat16), w, (1, 1), [(pad, pad), (pad, pad)],
            dimension_numbers=('NHWC', 'HWIO', 'NHWC'),
            preferred_element_type=jnp.float32)
        return y + b

    def bn(inp, stats):
        gamma, beta, mean, var = stats
        return (inp - mean) / jnp.sqrt(var + EPS) * gamma + beta

    out = jax.nn.relu(bn(conv(x, p['conv1_w'], p['conv1_b'], 0), p['bn1']))
    out = jax.nn.relu(bn(conv(out, p['conv2_w'], p['conv2_b'], 1), p['bn2']))
    out = bn(conv(out, p['conv3_w'], p['conv3_b'], 0), p['bn3'])
    out = jax.nn.relu(out + x.astype(jnp.float32))
    return jnp.transpose(out, (0, 3, 1, 2))


# --------------------------------- main --------------------------------------
if __name__ == "__main__":
    key = jax.random.PRNGKey(0)
    k_x, k_p = jax.random.split(key)

    # small spatial extent, realistic (lane-dense) channel counts:
    # inplanes == planes * expansion (the no-downsample bottleneck config).
    B, inplanes, planes, H, W = 2, 256, 64, 16, 16
    x = jax.random.normal(k_x, (B, inplanes, H, W), jnp.float32)
    params = init_params(k_p, inplanes, planes)

    out = jax.block_until_ready(bottleneck_forward(x, params))
    ref = jax.block_until_ready(reference_forward(x, params))

    assert out.shape == (B, planes * 4, H, W)
    np.testing.assert_allclose(np.asarray(out), np.asarray(ref),
                               rtol=2e-2, atol=5e-2)
    print("KERNEL_OK")
</pallas_src>

<mosaic_0001>
module attributes {stable_mosaic.version = 11 : i64} {
  func.func @bottleneck_kernel(%arg0: i32, %arg1: i32, %arg2: memref<1x1x18x16x256xbf16, #tpu.memory_space<vmem>>, %arg3: memref<256x64xbf16, #tpu.memory_space<vmem>>, %arg4: memref<1x64xf32, #tpu.memory_space<vmem>>, %arg5: memref<1x64xf32, #tpu.memory_space<vmem>>, %arg6: memref<3x192x64xbf16, #tpu.memory_space<vmem>>, %arg7: memref<1x64xf32, #tpu.memory_space<vmem>>, %arg8: memref<1x64xf32, #tpu.memory_space<vmem>>, %arg9: memref<64x256xbf16, #tpu.memory_space<vmem>>, %arg10: memref<1x256xf32, #tpu.memory_space<vmem>>, %arg11: memref<1x256xf32, #tpu.memory_space<vmem>>, %arg12: memref<1x16x16x256xf32, #tpu.memory_space<vmem>>) attributes {dimension_semantics = [#tpu.dimension_semantics<parallel>, #tpu.dimension_semantics<parallel>], iteration_bounds = array<i64: 2, 1>, scalar_prefetch = 0 : i64, scratch_operands = 0 : i64, tpu.core_type = #tpu.core_type<tc>, window_params = [{transform_indices = @transform_0, window_bounds = array<i64: 1, 1, 18, 16, 256>}, {pipeline_mode = #tpu.pipeline_mode<synchronous>, transform_indices = @transform_1, window_bounds = array<i64: 256, 64>}, {pipeline_mode = #tpu.pipeline_mode<synchronous>, transform_indices = @transform_2, window_bounds = array<i64: 1, 64>}, {pipeline_mode = #tpu.pipeline_mode<synchronous>, transform_indices = @transform_3, window_bounds = array<i64: 1, 64>}, {pipeline_mode = #tpu.pipeline_mode<synchronous>, transform_indices = @transform_4, window_bounds = array<i64: 3, 192, 64>}, {pipeline_mode = #tpu.pipeline_mode<synchronous>, transform_indices = @transform_5, window_bounds = array<i64: 1, 64>}, {pipeline_mode = #tpu.pipeline_mode<synchronous>, transform_indices = @transform_6, window_bounds = array<i64: 1, 64>}, {pipeline_mode = #tpu.pipeline_mode<synchronous>, transform_indices = @transform_7, window_bounds = array<i64: 64, 256>}, {pipeline_mode = #tpu.pipeline_mode<synchronous>, transform_indices = @transform_8, window_bounds = array<i64: 1, 256>}, {pipeline_mode = #tpu.pipeline_mode<synchronous>, transform_indices = @transform_9, window_bounds = array<i64: 1, 256>}, {transform_indices = @transform_10, window_bounds = array<i64: 1, 16, 16, 256>}]} {
    %c0 = arith.constant 0 : index
    %c0_0 = arith.constant 0 : index
    %c0_1 = arith.constant 0 : index
    %c0_2 = arith.constant 0 : index
    %c0_3 = arith.constant 0 : index
    %0 = vector.load %arg2[%c0, %c0_0, %c0_1, %c0_2, %c0_3] : memref<1x1x18x16x256xbf16, #tpu.memory_space<vmem>>, vector<1x1x18x16x256xbf16>
    %1 = vector.shape_cast %0 : vector<1x1x18x16x256xbf16> to vector<18x16x256xbf16>
    %2 = vector.shape_cast %1 : vector<18x16x256xbf16> to vector<288x256xbf16>
    %c0_4 = arith.constant 0 : index
    %c0_5 = arith.constant 0 : index
    %3 = vector.load %arg3[%c0_4, %c0_5] : memref<256x64xbf16, #tpu.memory_space<vmem>>, vector<256x64xbf16>
    %cst = arith.constant dense<0.000000e+00> : vector<288x64xf32>
    %4 = tpu.matmul %2, %3, %cst {dimension_numbers = #tpu.dot_dimension_numbers<[1], [0], [0], [1], [0, 0, 1, 1], [], []>} : vector<288x256xbf16>, vector<256x64xbf16>, vector<288x64xf32> -> vector<288x64xf32>
    %c0_6 = arith.constant 0 : index
    %c0_7 = arith.constant 0 : index
    %5 = vector.load %arg4[%c0_6, %c0_7] : memref<1x64xf32, #tpu.memory_space<vmem>>, vector<1x64xf32>
    %6 = vector.broadcast %5 : vector<1x64xf32> to vector<288x64xf32>
    %7 = arith.mulf %4, %6 : vector<288x64xf32>
    %c0_8 = arith.constant 0 : index
    %c0_9 = arith.constant 0 : index
    %8 = vector.load %arg5[%c0_8, %c0_9] : memref<1x64xf32, #tpu.memory_space<vmem>>, vector<1x64xf32>
    %9 = vector.broadcast %8 : vector<1x64xf32> to vector<288x64xf32>
    %10 = arith.addf %7, %9 : vector<288x64xf32>
    %cst_10 = arith.constant 0.000000e+00 : f32
    %11 = vector.broadcast %cst_10 : f32 to vector<288x64xf32>
    %12 = arith.maximumf %10, %11 : vector<288x64xf32>
    %13 = vector.shape_cast %12 : vector<288x64xf32> to vector<18x16x64xf32>
    %14 = tpu.iota {dimensions = array<i32: 0>} : vector<18x1x1xi32>
    %c0_i32 = arith.constant 0 : i32
    %15 = arith.cmpi sgt, %arg1, %c0_i32 : i32
    %c0_i32_11 = arith.constant 0 : i32
    %16 = vector.broadcast %c0_i32_11 : i32 to vector<18x1x1xi32>
    %17 = arith.cmpi sgt, %14, %16 : vector<18x1x1xi32>
    %18 = vector.broadcast %15 : i1 to vector<18x1x1xi1>
    %19 = arith.ori %18, %17 : vector<18x1x1xi1>
    %c0_i32_12 = arith.constant 0 : i32
    %20 = arith.cmpi slt, %arg1, %c0_i32_12 : i32
    %c17_i32 = arith.constant 17 : i32
    %21 = vector.broadcast %c17_i32 : i32 to vector<18x1x1xi32>
    %22 = arith.cmpi slt, %14, %21 : vector<18x1x1xi32>
    %23 = vector.broadcast %20 : i1 to vector<18x1x1xi1>
    %24 = arith.ori %23, %22 : vector<18x1x1xi1>
    %25 = arith.andi %19, %24 : vector<18x1x1xi1>
    %cst_13 = arith.constant 0.000000e+00 : f32
    %26 = vector.shape_cast %25 : vector<18x1x1xi1> to vector<18x1x1xi1>
    %27 = vector.broadcast %26 : vector<18x1x1xi1> to vector<18x16x64xi1>
    %28 = vector.broadcast %cst_13 : f32 to vector<18x16x64xf32>
    %29 = arith.select %27, %13, %28 : vector<18x16x64xi1>, vector<18x16x64xf32>
    %cst_14 = arith.constant 0.000000e+00 : f32
    %30 = vector.broadcast %cst_14 : f32 to vector<18x1x64xf32>
    %31 = vector.extract_strided_slice %29 {offsets = [0, 0, 0], sizes = [18, 15, 64], strides = [1, 1, 1]} : vector<18x16x64xf32> to vector<18x15x64xf32>
    %32 = tpu.concatenate %30, %31 in 1 : vector<18x1x64xf32>, vector<18x15x64xf32> -> vector<18x16x64xf32>
    %33 = vector.extract_strided_slice %29 {offsets = [0, 1, 0], sizes = [18, 15, 64], strides = [1, 1, 1]} : vector<18x16x64xf32> to vector<18x15x64xf32>
    %34 = tpu.concatenate %33, %30 in 1 : vector<18x15x64xf32>, vector<18x1x64xf32> -> vector<18x16x64xf32>
    %35 = tpu.concatenate %32, %29, %34 in 2 : vector<18x16x64xf32>, vector<18x16x64xf32>, vector<18x16x64xf32> -> vector<18x16x192xf32>
    %36 = arith.truncf %35 : vector<18x16x192xf32> to vector<18x16x192xbf16>
    %cst_15 = arith.constant 0.000000e+00 : f32
    %37 = vector.broadcast %cst_15 : f32 to vector<256x64xf32>
    %38 = vector.extract_strided_slice %36 {offsets = [0, 0, 0], sizes = [16, 16, 192], strides = [1, 1, 1]} : vector<18x16x192xbf16> to vector<16x16x192xbf16>
    %39 = vector.shape_cast %38 : vector<16x16x192xbf16> to vector<256x192xbf16>
    %c0_16 = arith.constant 0 : index
    %c0_17 = arith.constant 0 : index
    %c0_18 = arith.constant 0 : index
    %40 = vector.load %arg6[%c0_16, %c0_17, %c0_18] : memref<3x192x64xbf16, #tpu.memory_space<vmem>>, vector<1x192x64xbf16>
    %41 = vector.shape_cast %40 : vector<1x192x64xbf16> to vector<192x64xbf16>
    %cst_19 = arith.constant dense<0.000000e+00> : vector<256x64xf32>
    %42 = tpu.matmul %39, %41, %cst_19 {dimension_numbers = #tpu.dot_dimension_numbers<[1], [0], [0], [1], [0, 0, 1, 1], [], []>} : vector<256x192xbf16>, vector<192x64xbf16>, vector<256x64xf32> -> vector<256x64xf32>
    %43 = arith.addf %37, %42 : vector<256x64xf32>
    %44 = vector.extract_strided_slice %36 {offsets = [1, 0, 0], sizes = [16, 16, 192], strides = [1, 1, 1]} : vector<18x16x192xbf16> to vector<16x16x192xbf16>
    %45 = vector.shape_cast %44 : vector<16x16x192xbf16> to vector<256x192xbf16>
    %c1 = arith.constant 1 : index
    %c0_20 = arith.constant 0 : index
    %c0_21 = arith.constant 0 : index
    %46 = vector.load %arg6[%c1, %c0_20, %c0_21] : memref<3x192x64xbf16, #tpu.memory_space<vmem>>, vector<1x192x64xbf16>
    %47 = vector.shape_cast %46 : vector<1x192x64xbf16> to vector<192x64xbf16>
    %cst_22 = arith.constant dense<0.000000e+00> : vector<256x64xf32>
    %48 = tpu.matmul %45, %47, %cst_22 {dimension_numbers = #tpu.dot_dimension_numbers<[1], [0], [0], [1], [0, 0, 1, 1], [], []>} : vector<256x192xbf16>, vector<192x64xbf16>, vector<256x64xf32> -> vector<256x64xf32>
    %49 = arith.addf %43, %48 : vector<256x64xf32>
    %50 = vector.extract_strided_slice %36 {offsets = [2, 0, 0], sizes = [16, 16, 192], strides = [1, 1, 1]} : vector<18x16x192xbf16> to vector<16x16x192xbf16>
    %51 = vector.shape_cast %50 : vector<16x16x192xbf16> to vector<256x192xbf16>
    %c2 = arith.constant 2 : index
    %c0_23 = arith.constant 0 : index
    %c0_24 = arith.constant 0 : index
    %52 = vector.load %arg6[%c2, %c0_23, %c0_24] : memref<3x192x64xbf16, #tpu.memory_space<vmem>>, vector<1x192x64xbf16>
    %53 = vector.shape_cast %52 : vector<1x192x64xbf16> to vector<192x64xbf16>
    %cst_25 = arith.constant dense<0.000000e+00> : vector<256x64xf32>
    %54 = tpu.matmul %51, %53, %cst_25 {dimension_numbers = #tpu.dot_dimension_numbers<[1], [0], [0], [1], [0, 0, 1, 1], [], []>} : vector<256x192xbf16>, vector<192x64xbf16>, vector<256x64xf32> -> vector<256x64xf32>
    %55 = arith.addf %49, %54 : vector<256x64xf32>
    %c0_26 = arith.constant 0 : index
    %c0_27 = arith.constant 0 : index
    %56 = vector.load %arg7[%c0_26, %c0_27] : memref<1x64xf32, #tpu.memory_space<vmem>>, vector<1x64xf32>
    %57 = vector.broadcast %56 : vector<1x64xf32> to vector<256x64xf32>
    %58 = arith.mulf %55, %57 : vector<256x64xf32>
    %c0_28 = arith.constant 0 : index
    %c0_29 = arith.constant 0 : index
    %59 = vector.load %arg8[%c0_28, %c0_29] : memref<1x64xf32, #tpu.memory_space<vmem>>, vector<1x64xf32>
    %60 = vector.broadcast %59 : vector<1x64xf32> to vector<256x64xf32>
    %61 = arith.addf %58, %60 : vector<256x64xf32>
    %cst_30 = arith.constant 0.000000e+00 : f32
    %62 = vector.broadcast %cst_30 : f32 to vector<256x64xf32>
    %63 = arith.maximumf %61, %62 : vector<256x64xf32>
    %64 = arith.truncf %63 : vector<256x64xf32> to vector<256x64xbf16>
    %c0_31 = arith.constant 0 : index
    %c0_32 = arith.constant 0 : index
    %65 = vector.load %arg9[%c0_31, %c0_32] : memref<64x256xbf16, #tpu.memory_space<vmem>>, vector<64x256xbf16>
    %cst_33 = arith.constant dense<0.000000e+00> : vector<256x256xf32>
    %66 = tpu.matmul %64, %65, %cst_33 {dimension_numbers = #tpu.dot_dimension_numbers<[1], [0], [0], [1], [0, 0, 1, 1], [], []>} : vector<256x64xbf16>, vector<64x256xbf16>, vector<256x256xf32> -> vector<256x256xf32>
    %c0_34 = arith.constant 0 : index
    %c0_35 = arith.constant 0 : index
    %67 = vector.load %arg10[%c0_34, %c0_35] : memref<1x256xf32, #tpu.memory_space<vmem>>, vector<1x256xf32>
    %68 = vector.broadcast %67 : vector<1x256xf32> to vector<256x256xf32>
    %69 = arith.mulf %66, %68 : vector<256x256xf32>
    %c0_36 = arith.constant 0 : index
    %c0_37 = arith.constant 0 : index
    %70 = vector.load %arg11[%c0_36, %c0_37] : memref<1x256xf32, #tpu.memory_space<vmem>>, vector<1x256xf32>
    %71 = vector.broadcast %70 : vector<1x256xf32> to vector<256x256xf32>
    %72 = arith.addf %69, %71 : vector<256x256xf32>
    %73 = vector.extract_strided_slice %1 {offsets = [1, 0, 0], sizes = [16, 16, 256], strides = [1, 1, 1]} : vector<18x16x256xbf16> to vector<16x16x256xbf16>
    %74 = vector.shape_cast %73 : vector<16x16x256xbf16> to vector<256x256xbf16>
    %75 = arith.extf %74 : vector<256x256xbf16> to vector<256x256xf32>
    %76 = arith.addf %72, %75 : vector<256x256xf32>
    %cst_38 = arith.constant 0.000000e+00 : f32
    %77 = vector.broadcast %cst_38 : f32 to vector<256x256xf32>
    %78 = arith.maximumf %76, %77 : vector<256x256xf32>
    %79 = vector.shape_cast %78 : vector<256x256xf32> to vector<16x16x256xf32>
    %c0_39 = arith.constant 0 : index
    %c0_40 = arith.constant 0 : index
    %c0_41 = arith.constant 0 : index
    %c0_42 = arith.constant 0 : index
    %80 = vector.load %arg12[%c0_39, %c0_40, %c0_41, %c0_42] : memref<1x16x16x256xf32, #tpu.memory_space<vmem>>, vector<1x16x16x256xf32>
    %81 = vector.shape_cast %80 : vector<1x16x16x256xf32> to vector<16x16x256xf32>
    %82 = vector.shape_cast %79 : vector<16x16x256xf32> to vector<1x16x16x256xf32>
    tpu.vector_store %arg12[%c0_39, %c0_40, %c0_41, %c0_42], %82 {strides = array<i32>} : memref<1x16x16x256xf32, #tpu.memory_space<vmem>>, vector<1x16x16x256xf32>,
    return
  }
  func.func @transform_0(%arg0: i32, %arg1: i32) -> (i32, i32, i32, i32, i32) {
    %c0_i32 = arith.constant 0 : i32
    %c0_i32_0 = arith.constant 0 : i32
    %c0_i32_1 = arith.constant 0 : i32
    %c0_i32_2 = arith.constant 0 : i32
    return %arg0, %arg1, %c0_i32, %c0_i32_0, %c0_i32_1 : i32, i32, i32, i32, i32
  }
  func.func @transform_1(%arg0: i32, %arg1: i32) -> (i32, i32) {
    %c0_i32 = arith.constant 0 : i32
    %c0_i32_0 = arith.constant 0 : i32
    %c0_i32_1 = arith.constant 0 : i32
    return %c0_i32, %c0_i32_0 : i32, i32
  }
  func.func @transform_2(%arg0: i32, %arg1: i32) -> (i32, i32) {
    %c0_i32 = arith.constant 0 : i32
    %c0_i32_0 = arith.constant 0 : i32
    %c0_i32_1 = arith.constant 0 : i32
    return %c0_i32, %c0_i32_0 : i32, i32
  }
  func.func @transform_3(%arg0: i32, %arg1: i32) -> (i32, i32) {
    %c0_i32 = arith.constant 0 : i32
    %c0_i32_0 = arith.constant 0 : i32
    %c0_i32_1 = arith.constant 0 : i32
    return %c0_i32, %c0_i32_0 : i32, i32
  }
  func.func @transform_4(%arg0: i32, %arg1: i32) -> (i32, i32, i32) {
    %c0_i32 = arith.constant 0 : i32
    %c0_i32_0 = arith.constant 0 : i32
    %c0_i32_1 = arith.constant 0 : i32
    %c0_i32_2 = arith.constant 0 : i32
    return %c0_i32, %c0_i32_0, %c0_i32_1 : i32, i32, i32
  }
  func.func @transform_5(%arg0: i32, %arg1: i32) -> (i32, i32) {
    %c0_i32 = arith.constant 0 : i32
    %c0_i32_0 = arith.constant 0 : i32
    %c0_i32_1 = arith.constant 0 : i32
    return %c0_i32, %c0_i32_0 : i32, i32
  }
  func.func @transform_6(%arg0: i32, %arg1: i32) -> (i32, i32) {
    %c0_i32 = arith.constant 0 : i32
    %c0_i32_0 = arith.constant 0 : i32
    %c0_i32_1 = arith.constant 0 : i32
    return %c0_i32, %c0_i32_0 : i32, i32
  }
  func.func @transform_7(%arg0: i32, %arg1: i32) -> (i32, i32) {
    %c0_i32 = arith.constant 0 : i32
    %c0_i32_0 = arith.constant 0 : i32
    %c0_i32_1 = arith.constant 0 : i32
    return %c0_i32, %c0_i32_0 : i32, i32
  }
  func.func @transform_8(%arg0: i32, %arg1: i32) -> (i32, i32) {
    %c0_i32 = arith.constant 0 : i32
    %c0_i32_0 = arith.constant 0 : i32
    %c0_i32_1 = arith.constant 0 : i32
    return %c0_i32, %c0_i32_0 : i32, i32
  }
  func.func @transform_9(%arg0: i32, %arg1: i32) -> (i32, i32) {
    %c0_i32 = arith.constant 0 : i32
    %c0_i32_0 = arith.constant 0 : i32
    %c0_i32_1 = arith.constant 0 : i32
    return %c0_i32, %c0_i32_0 : i32, i32
  }
  func.func @transform_10(%arg0: i32, %arg1: i32) -> (i32, i32, i32, i32) {
    %c0_i32 = arith.constant 0 : i32
    %c0_i32_0 = arith.constant 0 : i32
    %c0_i32_1 = arith.constant 0 : i32
    return %arg0, %arg1, %c0_i32, %c0_i32_0 : i32, i32, i32, i32
  }
}

</mosaic_0001>

<llo_original>
// kernel: tpu_custom_call.1
$region0: #{tpu_custom_call.1}
  #allocation0 [shape = 'u32[]', space=smem, size = 0x4, offset = 0x4, fixed_abs, tag = 'smem constant byte address 0x4 - core index']
  #allocation1 [shape = 'u32[72,128]{1,0:T(1,128)}', space=vmem, size = 0x9000, scoped, tag = 'internal scratch']
  %s0 = inlined_call_operand.hbm [shape: bf16[2,1,18,16,256], index: 0, kind: input, shape index: {}]
  %s1 = inlined_call_operand.vmem [shape: bf16[256,64], index: 1, kind: input, shape index: {}]
  %s2 = inlined_call_operand.vmem [shape: f32[1,64], index: 2, kind: input, shape index: {}]
  %s3 = inlined_call_operand.vmem [shape: f32[1,64], index: 3, kind: input, shape index: {}]
  %s4 = inlined_call_operand.vmem [shape: bf16[3,192,64], index: 4, kind: input, shape index: {}]
  %s5 = inlined_call_operand.vmem [shape: f32[1,64], index: 5, kind: input, shape index: {}]
  %s6 = inlined_call_operand.vmem [shape: f32[1,64], index: 6, kind: input, shape index: {}]
  %s7 = inlined_call_operand.vmem [shape: bf16[64,256], index: 7, kind: input, shape index: {}]
  %s8 = inlined_call_operand.vmem [shape: f32[1,256], index: 8, kind: input, shape index: {}]
  %s9 = inlined_call_operand.vmem [shape: f32[1,256], index: 9, kind: input, shape index: {}]
  %s10 = inlined_call_operand.hbm [shape: f32[2,16,16,256], index: 10, kind: output, shape index: {}]
  %s11 = sld [smem:[#allocation0]]
  $region77: #{tpu_custom_call.1} parent=0
    _
  %s13 = ssub.s32 1, %s11
  %s14 = scalar_select 0, %s13, %s11
  $region1: #{tpu_custom_call.1} parent=0
    #allocation2 [shape = 'u8[294912]{0}', space=vmem, size = 0x48000, scoped, tag = 'input window, operand 0']
    #allocation3 [shape = 's32[2]{0}', space=sflag, size = 0x8, scoped, tag = 'scoped memory for tpu_custom_call.1']
    #allocation4 [shape = 's32[2]{0}', space=sflag, size = 0x8, scoped, tag = 'scoped memory for tpu_custom_call.1']
    #allocation5 [shape = 'u8[524288]{0}', space=vmem, size = 0x80000, scoped, tag = 'output window, operand 0']
    %15 = vsyncpa [#allocation3], 0
    %s16 = scalar_lea.sflag [#allocation3], 1
    %17 = vsyncpa %s16, 0
    %18 = vsyncpa [#allocation4], 0
    %s19 = scalar_lea.sflag [#allocation4], 1
    %20 = vsyncpa %s19, 0
    loop: start=0, step=1, limit=4
    $region2: #{tpu_custom_call.1} parent=1 // loop_pre_header
      _
    $region3: #{tpu_custom_call.1} parent=1 // loop_header
      %s22 = sphi 0, %s26
      %p23 = scmp.ge.s32.totalorder %s22, 4
      %s29 = sphi 0, %s41
      %s30 = sphi 0, %s37
      %s31 = sphi 0, %s29
      %s32 = sphi 0, %s30
      %s33 = sphi 0, %s31
      %s34 = sphi 0, %s32
      %s46 = sphi 0, %s48
      %s49 = sphi 0, %s46
      %s50 = sphi 0, %s49
      %s66 = sphi 0, %s50
      %s70 = sphi 0, %s70
      %s72 = sphi 0, %s70
      %s73 = sphi 0, %s72
      %s87 = sphi 0, %s73
      %s91 = sphi 0, %s91
      %s93 = sphi 0, %s91
      %s94 = sphi 0, %s93
      %s108 = sphi 0, %s94
      %s112 = sphi 0, %s112
      %s114 = sphi 0, %s112
      %s115 = sphi 0, %s114
      %s129 = sphi 0, %s115
      %s133 = sphi 0, %s133
      %s135 = sphi 0, %s133
      %s136 = sphi 0, %s135
      %s150 = sphi 0, %s136
      %s154 = sphi 0, %s154
      %s156 = sphi 0, %s154
      %s157 = sphi 0, %s156
      %s171 = sphi 0, %s157
      %s175 = sphi 0, %s175
      %s177 = sphi 0, %s175
      %s178 = sphi 0, %s177
      %s192 = sphi 0, %s178
      %s196 = sphi 0, %s196
      %s198 = sphi 0, %s196
      %s199 = sphi 0, %s198
      %s213 = sphi 0, %s199
      %s217 = sphi 0, %s217
      %s219 = sphi 0, %s217
      %s220 = sphi 0, %s219
      %s234 = sphi 0, %s220
      %s238 = sphi 0, %s238
      %s240 = sphi 0, %s238
      %s241 = sphi 0, %s240
      %s255 = sphi 0, %s241
      %s263 = sphi 0, %s265
      %s266 = sphi 0, %s263
      %s267 = sphi 0, %s266
      %s283 = sphi 0, %s267
    $region4: #{tpu_custom_call.1} parent=1 // loop_header_branch
      %25 = sbr.rel (%p23) target = $region8
    $region5: #{tpu_custom_call.1} parent=1 // loop_body
      %s27 = ssub.s32 %s22, 1
      %s28 = ssub.s32 %s22, 2
      %s35 = sadd.s32 1, %s30
      %p36 = scmp.ge.s32.totalorder %s35, 1
      %s37 = scalar_select %p36, 0, %s35
      %s38 = sadd.s32 1, %s29
      %s39 = scalar_select %p36, %s38, %s29
      %p40 = scmp.ge.s32.totalorder %s39, 2
      %s41 = scalar_select %p40, 0, %s39
      %s42 = ssub.s32 %s29, %s41
      %s43 = ssub.s32 %s30, %s37
      %s44 = sor.u32 %s42, %s43
      %p45 = scmp.eq.s32.totalorder %s44, 0
      %s47 = sadd.s32 %s46, 1
      %s48 = scalar_select %p45, %s46, %s47
      %p51 = pneg %p45
      %p52 = scmp.eq.s32.totalorder %s22, 1
      %p53 = por %p51, %p52
      %p54 = scmp.ne.s32.totalorder %s46, %s49
      %p55 = scmp.eq.s32.totalorder %s22, 0
      %p56 = por %p54, %p55
      %p57 = scmp.ne.s32.totalorder %s46, %s49
      %p58 = scmp.eq.s32.totalorder %s27, 1
      %p59 = por %p57, %p58
      %p60 = scmp.ne.s32.totalorder %s49, %s50
      %p61 = scmp.eq.s32.totalorder %s27, 0
      %p62 = por %p60, %p61
      %p63 = scmp.ne.s32.totalorder %s49, %s50
      %p64 = scmp.eq.s32.totalorder %s28, 1
      %p65 = por %p63, %p64
      %p67 = scmp.ne.s32.totalorder %s50, %s66
      %p68 = scmp.eq.s32.totalorder %s28, 0
      %p69 = por %p67, %p68
      %s71 = sadd.s32 %s70, 1
      %p74 = scmp.eq.s32.totalorder %s22, 1
      %p75 = scmp.ne.s32.totalorder %s70, %s72
      %p76 = scmp.eq.s32.totalorder %s22, 0
      %p77 = por %p75, %p76
      %p78 = scmp.ne.s32.totalorder %s70, %s72
      %p79 = scmp.eq.s32.totalorder %s27, 1
      %p80 = por %p78, %p79
      %p81 = scmp.ne.s32.totalorder %s72, %s73
      %p82 = scmp.eq.s32.totalorder %s27, 0
      %p83 = por %p81, %p82
      %p84 = scmp.ne.s32.totalorder %s72, %s73
      %p85 = scmp.eq.s32.totalorder %s28, 1
      %p86 = por %p84, %p85
      %p88 = scmp.ne.s32.totalorder %s73, %s87
      %p89 = scmp.eq.s32.totalorder %s28, 0
      %p90 = por %p88, %p89
      %s92 = sadd.s32 %s91, 1
      %p95 = scmp.eq.s32.totalorder %s22, 1
      %p96 = scmp.ne.s32.totalorder %s91, %s93
      %p97 = scmp.eq.s32.totalorder %s22, 0
      %p98 = por %p96, %p97
      %p99 = scmp.ne.s32.totalorder %s91, %s93
      %p100 = scmp.eq.s32.totalorder %s27, 1
      %p101 = por %p99, %p100
      %p102 = scmp.ne.s32.totalorder %s93, %s94
      %p103 = scmp.eq.s32.totalorder %s27, 0
      %p104 = por %p102, %p103
      %p105 = scmp.ne.s32.totalorder %s93, %s94
      %p106 = scmp.eq.s32.totalorder %s28, 1
      %p107 = por %p105, %p106
      %p109 = scmp.ne.s32.totalorder %s94, %s108
      %p110 = scmp.eq.s32.totalorder %s28, 0
      %p111 = por %p109, %p110
      %s113 = sadd.s32 %s112, 1
      %p116 = scmp.eq.s32.totalorder %s22, 1
      %p117 = scmp.ne.s32.totalorder %s112, %s114
      %p118 = scmp.eq.s32.totalorder %s22, 0
      %p119 = por %p117, %p118
      %p120 = scmp.ne.s32.totalorder %s112, %s114
      %p121 = scmp.eq.s32.totalorder %s27, 1
      %p122 = por %p120, %p121
      %p123 = scmp.ne.s32.totalorder %s114, %s115
      %p124 = scmp.eq.s32.totalorder %s27, 0
      %p125 = por %p123, %p124
      %p126 = scmp.ne.s32.totalorder %s114, %s115
      %p127 = scmp.eq.s32.totalorder %s28, 1
      %p128 = por %p126, %p127
      %p130 = scmp.ne.s32.totalorder %s115, %s129
      %p131 = scmp.eq.s32.totalorder %s28, 0
      %p132 = por %p130, %p131
      %s134 = sadd.s32 %s133, 1
      %p137 = scmp.eq.s32.totalorder %s22, 1
      %p138 = scmp.ne.s32.totalorder %s133, %s135
      %p139 = scmp.eq.s32.totalorder %s22, 0
      %p140 = por %p138, %p139
      %p141 = scmp.ne.s32.totalorder %s133, %s135
      %p142 = scmp.eq.s32.totalorder %s27, 1
      %p143 = por %p141, %p142
      %p144 = scmp.ne.s32.totalorder %s135, %s136
      %p145 = scmp.eq.s32.totalorder %s27, 0
      %p146 = por %p144, %p145
      %p147 = scmp.ne.s32.totalorder %s135, %s136
      %p148 = scmp.eq.s32.totalorder %s28, 1
      %p149 = por %p147, %p148
      %p151 = scmp.ne.s32.totalorder %s136, %s150
      %p152 = scmp.eq.s32.totalorder %s28, 0
      %p153 = por %p151, %p152
      %s155 = sadd.s32 %s154, 1
      %p158 = scmp.eq.s32.totalorder %s22, 1
      %p159 = scmp.ne.s32.totalorder %s154, %s156
      %p160 = scmp.eq.s32.totalorder %s22, 0
      %p161 = por %p159, %p160
      %p162 = scmp.ne.s32.totalorder %s154, %s156
      %p163 = scmp.eq.s32.totalorder %s27, 1
      %p164 = por %p162, %p163
      %p165 = scmp.ne.s32.totalorder %s156, %s157
      %p166 = scmp.eq.s32.totalorder %s27, 0
      %p167 = por %p165, %p166
      %p168 = scmp.ne.s32.totalorder %s156, %s157
      %p169 = scmp.eq.s32.totalorder %s28, 1
      %p170 = por %p168, %p169
      %p172 = scmp.ne.s32.totalorder %s157, %s171
      %p173 = scmp.eq.s32.totalorder %s28, 0
      %p174 = por %p172, %p173
      %s176 = sadd.s32 %s175, 1
      %p179 = scmp.eq.s32.totalorder %s22, 1
      %p180 = scmp.ne.s32.totalorder %s175, %s177
      %p181 = scmp.eq.s32.totalorder %s22, 0
      %p182 = por %p180, %p181
      %p183 = scmp.ne.s32.totalorder %s175, %s177
      %p184 = scmp.eq.s32.totalorder %s27, 1
      %p185 = por %p183, %p184
      %p186 = scmp.ne.s32.totalorder %s177, %s178
      %p187 = scmp.eq.s32.totalorder %s27, 0
      %p188 = por %p186, %p187
      %p189 = scmp.ne.s32.totalorder %s177, %s178
      %p190 = scmp.eq.s32.totalorder %s28, 1
      %p191 = por %p189, %p190
      %p193 = scmp.ne.s32.totalorder %s178, %s192
      %p194 = scmp.eq.s32.totalorder %s28, 0
      %p195 = por %p193, %p194
      %s197 = sadd.s32 %s196, 1
      %p200 = scmp.eq.s32.totalorder %s22, 1
      %p201 = scmp.ne.s32.totalorder %s196, %s198
      %p202 = scmp.eq.s32.totalorder %s22, 0
      %p203 = por %p201, %p202
      %p204 = scmp.ne.s32.totalorder %s196, %s198
      %p205 = scmp.eq.s32.totalorder %s27, 1
      %p206 = por %p204, %p205
      %p207 = scmp.ne.s32.totalorder %s198, %s199
      %p208 = scmp.eq.s32.totalorder %s27, 0
      %p209 = por %p207, %p208
      %p210 = scmp.ne.s32.totalorder %s198, %s199
      %p211 = scmp.eq.s32.totalorder %s28, 1
      %p212 = por %p210, %p211
      %p214 = scmp.ne.s32.totalorder %s199, %s213
      %p215 = scmp.eq.s32.totalorder %s28, 0
      %p216 = por %p214, %p215
      %s218 = sadd.s32 %s217, 1
      %p221 = scmp.eq.s32.totalorder %s22, 1
      %p222 = scmp.ne.s32.totalorder %s217, %s219
      %p223 = scmp.eq.s32.totalorder %s22, 0
      %p224 = por %p222, %p223
      %p225 = scmp.ne.s32.totalorder %s217, %s219
      %p226 = scmp.eq.s32.totalorder %s27, 1
      %p227 = por %p225, %p226
      %p228 = scmp.ne.s32.totalorder %s219, %s220
      %p229 = scmp.eq.s32.totalorder %s27, 0
      %p230 = por %p228, %p229
      %p231 = scmp.ne.s32.totalorder %s219, %s220
      %p232 = scmp.eq.s32.totalorder %s28, 1
      %p233 = por %p231, %p232
      %p235 = scmp.ne.s32.totalorder %s220, %s234
      %p236 = scmp.eq.s32.totalorder %s28, 0
      %p237 = por %p235, %p236
      %s239 = sadd.s32 %s238, 1
      %p242 = scmp.eq.s32.totalorder %s22, 1
      %p243 = scmp.ne.s32.totalorder %s238, %s240
      %p244 = scmp.eq.s32.totalorder %s22, 0
      %p245 = por %p243, %p244
      %p246 = scmp.ne.s32.totalorder %s238, %s240
      %p247 = scmp.eq.s32.totalorder %s27, 1
      %p248 = por %p246, %p247
      %p249 = scmp.ne.s32.totalorder %s240, %s241
      %p250 = scmp.eq.s32.totalorder %s27, 0
      %p251 = por %p249, %p250
      %p252 = scmp.ne.s32.totalorder %s240, %s241
      %p253 = scmp.eq.s32.totalorder %s28, 1
      %p254 = por %p252, %p253
      %p256 = scmp.ne.s32.totalorder %s241, %s255
      %p257 = scmp.eq.s32.totalorder %s28, 0
      %p258 = por %p256, %p257
      %s259 = ssub.s32 %s29, %s41
      %s260 = ssub.s32 %s30, %s37
      %s261 = sor.u32 %s259, %s260
      %p262 = scmp.eq.s32.totalorder %s261, 0
      %s264 = sadd.s32 %s263, 1
      %s265 = scalar_select %p262, %s263, %s264
      %p268 = pneg %p262
      %p269 = scmp.eq.s32.totalorder %s22, 1
      %p270 = por %p268, %p269
      %p271 = scmp.ne.s32.totalorder %s263, %s266
      %p272 = scmp.eq.s32.totalorder %s22, 0
      %p273 = por %p271, %p272
      %p274 = scmp.ne.s32.totalorder %s263, %s266
      %p275 = scmp.eq.s32.totalorder %s27, 1
      %p276 = por %p274, %p275
      %p277 = scmp.ne.s32.totalorder %s266, %s267
      %p278 = scmp.eq.s32.totalorder %s27, 0
      %p279 = por %p277, %p278
      %p280 = scmp.ne.s32.totalorder %s266, %s267
      %p281 = scmp.eq.s32.totalorder %s28, 1
      %p282 = por %p280, %p281
      %p284 = scmp.ne.s32.totalorder %s267, %s283
      %p285 = scmp.eq.s32.totalorder %s28, 0
      %p286 = por %p284, %p285
      %p287 = scmp.le.s32.totalorder 1, %s22
      %p288 = scmp.lt.s32.totalorder %s22, 3
      %p289 = pnand %p287, %p288
      %p290 = pneg %p289
      // Predicated region
      $region9: #{tpu_custom_call.1} parent=5 // pred_check
        _
      $region10: #{tpu_custom_call.1} parent=5 // pred_check_branch
        %292 = sbr.rel (%p289) target = $region12
      $region11: #{tpu_custom_call.1} parent=5 // pred_region
        %s293 = ssub.s32 %s22, 1
        // Predicated region
        $region13: #{tpu_custom_call.1} parent=11 // pred_check
          %p294 = pneg %p83
        $region14: #{tpu_custom_call.1} parent=11 // pred_check_branch
          %296 = sbr.rel (%p294) target = $region16
        $region15: #{tpu_custom_call.1} parent=11 // pred_region
          _
        $region16: #{tpu_custom_call.1} parent=11 // pred_fallthru
          _
        // Predicated region
        $region17: #{tpu_custom_call.1} parent=11 // pred_check
          %p297 = pneg %p104
        $region18: #{tpu_custom_call.1} parent=11 // pred_check_branch
          %299 = sbr.rel (%p297) target = $region20
        $region19: #{tpu_custom_call.1} parent=11 // pred_region
          _
        $region20: #{tpu_custom_call.1} parent=11 // pred_fallthru
          _
        // Predicated region
        $region21: #{tpu_custom_call.1} parent=11 // pred_check
          %p300 = pneg %p125
        $region22: #{tpu_custom_call.1} parent=11 // pred_check_branch
          %302 = sbr.rel (%p300) target = $region24
        $region23: #{tpu_custom_call.1} parent=11 // pred_region
          _
        $region24: #{tpu_custom_call.1} parent=11 // pred_fallthru
          _
        // Predicated region
        $region25: #{tpu_custom_call.1} parent=11 // pred_check
          %p303 = pneg %p146
        $region26: #{tpu_custom_call.1} parent=11 // pred_check_branch
          %305 = sbr.rel (%p303) target = $region28
        $region27: #{tpu_custom_call.1} parent=11 // pred_region
          _
        $region28: #{tpu_custom_call.1} parent=11 // pred_fallthru
          _
        // Predicated region
        $region29: #{tpu_custom_call.1} parent=11 // pred_check
          %p306 = pneg %p167
        $region30: #{tpu_custom_call.1} parent=11 // pred_check_branch
          %308 = sbr.rel (%p306) target = $region32
        $region31: #{tpu_custom_call.1} parent=11 // pred_region
          _
        $region32: #{tpu_custom_call.1} parent=11 // pred_fallthru
          _
        // Predicated region
        $region33: #{tpu_custom_call.1} parent=11 // pred_check
          %p309 = pneg %p188
        $region34: #{tpu_custom_call.1} parent=11 // pred_check_branch
          %311 = sbr.rel (%p309) target = $region36
        $region35: #{tpu_custom_call.1} parent=11 // pred_region
          _
        $region36: #{tpu_custom_call.1} parent=11 // pred_fallthru
          _
        // Predicated region
        $region37: #{tpu_custom_call.1} parent=11 // pred_check
          %p312 = pneg %p209
        $region38: #{tpu_custom_call.1} parent=11 // pred_check_branch
          %314 = sbr.rel (%p312) target = $region40
        $region39: #{tpu_custom_call.1} parent=11 // pred_region
          _
        $region40: #{tpu_custom_call.1} parent=11 // pred_fallthru
          _
        // Predicated region
        $region41: #{tpu_custom_call.1} parent=11 // pred_check
          %p315 = pneg %p230
        $region42: #{tpu_custom_call.1} parent=11 // pred_check_branch
          %317 = sbr.rel (%p315) target = $region44
        $region43: #{tpu_custom_call.1} parent=11 // pred_region
          _
        $region44: #{tpu_custom_call.1} parent=11 // pred_fallthru
          _
        // Predicated region
        $region45: #{tpu_custom_call.1} parent=11 // pred_check
          %p318 = pneg %p251
        $region46: #{tpu_custom_call.1} parent=11 // pred_check_branch
          %320 = sbr.rel (%p318) target = $region48
        $region47: #{tpu_custom_call.1} parent=11 // pred_region
          _
        $region48: #{tpu_custom_call.1} parent=11 // pred_fallthru
          _
      $region12: #{tpu_custom_call.1} parent=5 // pred_fallthru
        _
      %p321 = scmp.lt.s32.totalorder %s22, 2
      // Predicated region
      $region49: #{tpu_custom_call.1} parent=5 // pred_check
        %p322 = pneg %p321
      $region50: #{tpu_custom_call.1} parent=5 // pred_check_branch
        %324 = sbr.rel (%p322) target = $region52
      $region51: #{tpu_custom_call.1} parent=5 // pred_region
        // Predicated region
        $region53: #{tpu_custom_call.1} parent=51 // pred_check
          %p325 = pneg %p56
        $region54: #{tpu_custom_call.1} parent=51 // pred_check_branch
          %327 = sbr.rel (%p325) target = $region56
        $region55: #{tpu_custom_call.1} parent=51 // pred_region
          %s328 = sand.u32 %s46, 1
          %s329 = scalar_lea.sflag [#allocation3], %s328
          %s330 = sand.u32 %s46, 1
          %s331 = smul.addr %s330, 288
          %s332 = scalar_lea.vmem [#allocation2], %s331
          %334 = vsyncadd %s329, 0
          %s335 = smul.addr %s30, 72
          %s336 = smul.addr %s29, 72
          %s337 = sadd.s32 %s335, %s336
          %s338 = smul.addr %s337, 4
          %s339 = scalar_lea.hbm %s0, %s338
          %s340 = sshll.u32 %s339, 4
          %s341 = int_to_ptr.hbm [resolvable:$true] %s340
          %s342 = sshll.u32 %s332, 4
          %s343 = int_to_ptr.vmem [resolvable:$true] %s342
          %348 = dma.hbm_to_vmem [thread:$0]  %s341, 4608, %s343, %s329, 128, 128, 8
        $region56: #{tpu_custom_call.1} parent=51 // pred_fallthru
          _
      $region52: #{tpu_custom_call.1} parent=5 // pred_fallthru
        _
      %p349 = scmp.le.s32.totalorder 1, %s22
      %p350 = scmp.lt.s32.totalorder %s22, 3
      %p351 = pnand %p349, %p350
      %p352 = pneg %p351
      // Predicated region
      $region57: #{tpu_custom_call.1} parent=5 // pred_check
        _
      $region58: #{tpu_custom_call.1} parent=5 // pred_check_branch
        %354 = sbr.rel (%p351) target = $region60
      $region59: #{tpu_custom_call.1} parent=5 // pred_region
        %s355 = ssub.s32 %s22, 1
        %s356 = sand.u32 %s49, 1
        %s357 = scalar_lea.sflag [#allocation3], %s356
        %s358 = sand.u32 %s49, 1
        %s359 = smul.addr %s358, 288
        %s360 = scalar_lea.vmem [#allocation2], %s359
        // Predicated region
        $region61: #{tpu_custom_call.1} parent=59 // pred_check
          %p361 = pneg %p62
        $region62: #{tpu_custom_call.1} parent=59 // pred_check_branch
          %363 = sbr.rel (%p361) target = $region64
        $region63: #{tpu_custom_call.1} parent=59 // pred_region
          %365 = dma.done %s357, 4608
        $region64: #{tpu_custom_call.1} parent=59 // pred_fallthru
          _
        %s366 = sand.u32 %s49, 1
        %s367 = scalar_lea.sflag [#allocation3], %s366
        %s368 = sand.u32 %s49, 1
        %s369 = smul.addr %s368, 288
        %s370 = scalar_lea.vmem [#allocation2], %s369
        %p371 = pneg %p62
        %p372 = pneg %p59
        %p373 = pneg %p83
        %p374 = pneg %p80
        %p375 = pneg %p104
        %p376 = pneg %p101
        %p377 = pneg %p125
        %p378 = pneg %p122
        %p379 = pneg %p146
        %p380 = pneg %p143
        %p381 = pneg %p167
        %p382 = pneg %p164
        %p383 = pneg %p188
        %p384 = pneg %p185
        %p385 = pneg %p209
        %p386 = pneg %p206
        %p387 = pneg %p230
        %p388 = pneg %p227
        %p389 = pneg %p251
        %p390 = pneg %p248
        %p391 = pneg %p279
        %p392 = pneg %p276
        %s393 = sand.u32 %s266, 1
        %s394 = scalar_lea.sflag [#allocation4], %s393
        %s395 = sand.u32 %s266, 1
        %s396 = smul.addr %s395, 512
        %s397 = scalar_lea.vmem [#allocation5], %s396
        %s398 = smul.u32 16, %s32
        %v400 = vld [vmem:[%s360] sm:$0xff]
        %v401 = vld [vmem:[%s360 + $0x8] sm:$0xff]
        %v402 = vld [vmem:[%s360 + $0x10] sm:$0xff]
        %v403 = vld [vmem:[%s360 + $0x18] sm:$0xff]
        %v404 = vld [vmem:[%s360 + $0x20] sm:$0xff]
        %v405 = vld [vmem:[%s360 + $0x28] sm:$0xff]
        %v406 = vld [vmem:[%s360 + $0x30] sm:$0xff]
        %v407 = vld [vmem:[%s360 + $0x38] sm:$0xff]
        %v408 = vld [vmem:[%s360 + $0x40] sm:$0xff]
        %v409 = vld [vmem:[%s360 + $0x48] sm:$0xff]
        %v410 = vld [vmem:[%s360 + $0x50] sm:$0xff]
        %v411 = vld [vmem:[%s360 + $0x58] sm:$0xff]
        %v412 = vld [vmem:[%s360 + $0x60] sm:$0xff]
        %v413 = vld [vmem:[%s360 + $0x68] sm:$0xff]
        %v414 = vld [vmem:[%s360 + $0x70] sm:$0xff]
        %v415 = vld [vmem:[%s360 + $0x78] sm:$0xff]
        %v416 = vld [vmem:[%s360 + $0x80] sm:$0xff]
        %v417 = vld [vmem:[%s360 + $0x88] sm:$0xff]
        %v418 = vld [vmem:[%s360 + $0x90] sm:$0xff]
        %v419 = vld [vmem:[%s360 + $0x98] sm:$0xff]
        %v420 = vld [vmem:[%s360 + $0xa0] sm:$0xff]
        %v421 = vld [vmem:[%s360 + $0xa8] sm:$0xff]
        %v422 = vld [vmem:[%s360 + $0xb0] sm:$0xff]
        %v423 = vld [vmem:[%s360 + $0xb8] sm:$0xff]
        %v424 = vld [vmem:[%s360 + $0xc0] sm:$0xff]
        %v425 = vld [vmem:[%s360 + $0xc8] sm:$0xff]
        %v426 = vld [vmem:[%s360 + $0xd0] sm:$0xff]
        %v427 = vld [vmem:[%s360 + $0xd8] sm:$0xff]
        %v428 = vld [vmem:[%s360 + $0xe0] sm:$0xff]
        %v429 = vld [vmem:[%s360 + $0xe8] sm:$0xff]
        %v430 = vld [vmem:[%s360 + $0xf0] sm:$0xff]
        %v431 = vld [vmem:[%s360 + $0xf8] sm:$0xff]
        %v432 = vld [vmem:[%s360 + $0x100] sm:$0xff]
        %v433 = vld [vmem:[%s360 + $0x108] sm:$0xff]
        %v434 = vld [vmem:[%s360 + $0x110] sm:$0xff]
        %v435 = vld [vmem:[%s360 + $0x118] sm:$0xff]
        %v436 = vld [vmem:[%s1] sm:$0xf]
        %v437 = vld [vmem:[%s1 + $0x4] sm:$0xf]
        %v438 = vld [vmem:[%s1 + $0x8] sm:$0xf]
        %v439 = vld [vmem:[%s1 + $0xc] sm:$0xf]
        %v440 = vld [vmem:[%s1 + $0x10] sm:$0xf]
        %v441 = vld [vmem:[%s1 + $0x14] sm:$0xf]
        %v442 = vld [vmem:[%s1 + $0x18] sm:$0xf]
        %v443 = vld [vmem:[%s1 + $0x1c] sm:$0xf]
        %v444 = vld [vmem:[%s1 + $0x20] sm:$0xf]
        %v445 = vld [vmem:[%s1 + $0x24] sm:$0xf]
        %v446 = vld [vmem:[%s1 + $0x28] sm:$0xf]
        %v447 = vld [vmem:[%s1 + $0x2c] sm:$0xf]
        %v448 = vld [vmem:[%s1 + $0x30] sm:$0xf]
        %v449 = vld [vmem:[%s1 + $0x34] sm:$0xf]
        %v450 = vld [vmem:[%s1 + $0x38] sm:$0xf]
        %v451 = vld [vmem:[%s1 + $0x3c] sm:$0xf]
        %v452 = vld [vmem:[%s1 + $0x40] sm:$0xf]
        %v453 = vld [vmem:[%s1 + $0x44] sm:$0xf]
        %v454 = vld [vmem:[%s1 + $0x48] sm:$0xf]
        %v455 = vld [vmem:[%s1 + $0x4c] sm:$0xf]
        %v456 = vld [vmem:[%s1 + $0x50] sm:$0xf]
        %v457 = vld [vmem:[%s1 + $0x54] sm:$0xf]
        %v458 = vld [vmem:[%s1 + $0x58] sm:$0xf]
        %v459 = vld [vmem:[%s1 + $0x5c] sm:$0xf]
        %v460 = vld [vmem:[%s1 + $0x60] sm:$0xf]
        %v461 = vld [vmem:[%s1 + $0x64] sm:$0xf]
        %v462 = vld [vmem:[%s1 + $0x68] sm:$0xf]
        %v463 = vld [vmem:[%s1 + $0x6c] sm:$0xf]
        %v464 = vld [vmem:[%s1 + $0x70] sm:$0xf]
        %v465 = vld [vmem:[%s1 + $0x74] sm:$0xf]
        %v466 = vld [vmem:[%s1 + $0x78] sm:$0xf]
        %v467 = vld [vmem:[%s1 + $0x7c] sm:$0xf]
        %v504 = vunpack.c.l.b16 %v400
        %v505 = vunpack.c.h.b16 %v400
        %v506 = vunpack.c.l.b16 %v401
        %v507 = vunpack.c.h.b16 %v401
        %v508 = vunpack.c.l.b16 %v402
        %v509 = vunpack.c.h.b16 %v402
        %v510 = vunpack.c.l.b16 %v403
        %v511 = vunpack.c.h.b16 %v403
        %v512 = vunpack.c.l.b16 %v404
        %v513 = vunpack.c.h.b16 %v404
        %v514 = vunpack.c.l.b16 %v405
        %v515 = vunpack.c.h.b16 %v405
        %v516 = vunpack.c.l.b16 %v406
        %v517 = vunpack.c.h.b16 %v406
        %v518 = vunpack.c.l.b16 %v407
        %v519 = vunpack.c.h.b16 %v407
        %v520 = vunpack.c.l.b16 %v408
        %v521 = vunpack.c.h.b16 %v408
        %v522 = vunpack.c.l.b16 %v409
        %v523 = vunpack.c.h.b16 %v409
        %v524 = vunpack.c.l.b16 %v410
        %v525 = vunpack.c.h.b16 %v410
        %v526 = vunpack.c.l.b16 %v411
        %v527 = vunpack.c.h.b16 %v411
        %v528 = vunpack.c.l.b16 %v412
        %v529 = vunpack.c.h.b16 %v412
        %v530 = vunpack.c.l.b16 %v413
        %v531 = vunpack.c.h.b16 %v413
        %v532 = vunpack.c.l.b16 %v414
        %v533 = vunpack.c.h.b16 %v414
        %v534 = vunpack.c.l.b16 %v415
        %v535 = vunpack.c.h.b16 %v415
        %v536 = vunpack.c.l.b16 %v416
        %v537 = vunpack.c.h.b16 %v416
        %v538 = vunpack.c.l.b16 %v417
        %v539 = vunpack.c.h.b16 %v417
        %v540 = vunpack.c.l.b16 %v418
        %v541 = vunpack.c.h.b16 %v418
        %v542 = vunpack.c.l.b16 %v419
        %v543 = vunpack.c.h.b16 %v419
        %v544 = vunpack.c.l.b16 %v420
        %v545 = vunpack.c.h.b16 %v420
        %v546 = vunpack.c.l.b16 %v421
        %v547 = vunpack.c.h.b16 %v421
        %v548 = vunpack.c.l.b16 %v422
        %v549 = vunpack.c.h.b16 %v422
        %v550 = vunpack.c.l.b16 %v423
        %v551 = vunpack.c.h.b16 %v423
        %v552 = vunpack.c.l.b16 %v424
        %v553 = vunpack.c.h.b16 %v424
        %v554 = vunpack.c.l.b16 %v425
        %v555 = vunpack.c.h.b16 %v425
        %v556 = vunpack.c.l.b16 %v426
        %v557 = vunpack.c.h.b16 %v426
        %v558 = vunpack.c.l.b16 %v427
        %v559 = vunpack.c.h.b16 %v427
        %v560 = vunpack.c.l.b16 %v428
        %v561 = vunpack.c.h.b16 %v428
        %v562 = vunpack.c.l.b16 %v429
        %v563 = vunpack.c.h.b16 %v429
        %v564 = vunpack.c.l.b16 %v430
        %v565 = vunpack.c.h.b16 %v430
        %v566 = vunpack.c.l.b16 %v431
        %v567 = vunpack.c.h.b16 %v431
        %v568 = vunpack.c.l.b16 %v432
        %v569 = vunpack.c.h.b16 %v432
        %v570 = vunpack.c.l.b16 %v433
        %v571 = vunpack.c.h.b16 %v433
        %v572 = vunpack.c.l.b16 %v434
        %v573 = vunpack.c.h.b16 %v434
        %v574 = vunpack.c.l.b16 %v435
        %v575 = vunpack.c.h.b16 %v435
        %v576 = vpack.c.b16 %v506, %v504
        %v577 = vpack.c.b16 %v507, %v505
        %v578 = vpack.c.b16 %v510, %v508
        %v579 = vpack.c.b16 %v511, %v509
        %v580 = vpack.c.b16 %v514, %v512
        %v581 = vpack.c.b16 %v515, %v513
        %v582 = vpack.c.b16 %v518, %v516
        %v583 = vpack.c.b16 %v519, %v517
        %v584 = vpack.c.b16 %v522, %v520
        %v585 = vpack.c.b16 %v523, %v521
        %v586 = vpack.c.b16 %v526, %v524
        %v587 = vpack.c.b16 %v527, %v525
        %v588 = vpack.c.b16 %v530, %v528
        %v589 = vpack.c.b16 %v531, %v529
        %v590 = vpack.c.b16 %v534, %v532
        %v591 = vpack.c.b16 %v535, %v533
        %v592 = vpack.c.b16 %v538, %v536
        %v593 = vpack.c.b16 %v539, %v537
        %v594 = vpack.c.b16 %v542, %v540
        %v595 = vpack.c.b16 %v543, %v541
        %v596 = vpack.c.b16 %v546, %v544
        %v597 = vpack.c.b16 %v547, %v545
        %v598 = vpack.c.b16 %v550, %v548
        %v599 = vpack.c.b16 %v551, %v549
        %v600 = vpack.c.b16 %v554, %v552
        %v601 = vpack.c.b16 %v555, %v553
        %v602 = vpack.c.b16 %v558, %v556
        %v603 = vpack.c.b16 %v559, %v557
        %v604 = vpack.c.b16 %v562, %v560
        %v605 = vpack.c.b16 %v563, %v561
        %v606 = vpack.c.b16 %v566, %v564
        %v607 = vpack.c.b16 %v567, %v565
        %v608 = vpack.c.b16 %v570, %v568
        %v609 = vpack.c.b16 %v571, %v569
        %v610 = vpack.c.b16 %v574, %v572
        %v611 = vpack.c.b16 %v575, %v573
        %v680 = vunpack.c.l.b16 %v436
        %v681 = vunpack.c.l.b16 %v437
        %v682 = vunpack.c.l.b16 %v438
        %v683 = vunpack.c.l.b16 %v439
        %v684 = vunpack.c.l.b16 %v440
        %v685 = vunpack.c.l.b16 %v441
        %v686 = vunpack.c.l.b16 %v442
        %v687 = vunpack.c.l.b16 %v443
        %v688 = vunpack.c.l.b16 %v444
        %v689 = vunpack.c.l.b16 %v445
        %v690 = vunpack.c.l.b16 %v446
        %v691 = vunpack.c.l.b16 %v447
        %v692 = vunpack.c.l.b16 %v448
        %v693 = vunpack.c.l.b16 %v449
        %v694 = vunpack.c.l.b16 %v450
        %v695 = vunpack.c.l.b16 %v451
        %v696 = vunpack.c.l.b16 %v452
        %v697 = vunpack.c.l.b16 %v453
        %v698 = vunpack.c.l.b16 %v454
        %v699 = vunpack.c.l.b16 %v455
        %v700 = vunpack.c.l.b16 %v456
        %v701 = vunpack.c.l.b16 %v457
        %v702 = vunpack.c.l.b16 %v458
        %v703 = vunpack.c.l.b16 %v459
        %v704 = vunpack.c.l.b16 %v460
        %v705 = vunpack.c.l.b16 %v461
        %v706 = vunpack.c.l.b16 %v462
        %v707 = vunpack.c.l.b16 %v463
        %v708 = vunpack.c.l.b16 %v464
        %v709 = vunpack.c.l.b16 %v465
        %v710 = vunpack.c.l.b16 %v466
        %v711 = vunpack.c.l.b16 %v467
        %v712 = vpack.c.b16 %v681, %v680
        %v713 = vpack.c.b16 %v683, %v682
        %v714 = vpack.c.b16 %v685, %v684
        %v715 = vpack.c.b16 %v687, %v686
        %v716 = vpack.c.b16 %v689, %v688
        %v717 = vpack.c.b16 %v691, %v690
        %v718 = vpack.c.b16 %v693, %v692
        %v719 = vpack.c.b16 %v695, %v694
        %v720 = vpack.c.b16 %v697, %v696
        %v721 = vpack.c.b16 %v699, %v698
        %v722 = vpack.c.b16 %v701, %v700
        %v723 = vpack.c.b16 %v703, %v702
        %v724 = vpack.c.b16 %v705, %v704
        %v725 = vpack.c.b16 %v707, %v706
        %v726 = vpack.c.b16 %v709, %v708
        %v727 = vpack.c.b16 %v711, %v710
        %744 = vmatpush.bf16.msra.mxu0 %v719
        %745 = vmatpush.bf16.msra.mxu0 %v718
        %746 = vmatpush.bf16.msra.mxu0 %v717
        %747 = vmatpush.bf16.msra.mxu0 %v716
        %748 = vmatpush.bf16.msra.mxu0 %v715
        %749 = vmatpush.bf16.msra.mxu0 %v714
        %750 = vmatpush.bf16.msra.mxu0 %v713
        %751 = vmatpush.bf16.msra.mxu0 %v712
        %752 = vmatmul.bf16.gmra.mxu0 %v576
        %v753 = vpop.f32.mrf.mxu0
        %v754 = vadd.f32 0.0, %v753
        %v755 = vpop.f32.mrf.mxu0
        %v756 = vadd.f32 0.0, %v755
        %757 = vmatmul.bf16.gmra.mxu0 %v578
        %v758 = vpop.f32.mrf.mxu0
        %v759 = vadd.f32 0.0, %v758
        %v760 = vpop.f32.mrf.mxu0
        %v761 = vadd.f32 0.0, %v760
        %762 = vmatmul.bf16.gmra.mxu0 %v580
        %v763 = vpop.f32.mrf.mxu0
        %v764 = vadd.f32 0.0, %v763
        %v765 = vpop.f32.mrf.mxu0
        %v766 = vadd.f32 0.0, %v765
        %767 = vmatmul.bf16.gmra.mxu0 %v582
        %v768 = vpop.f32.mrf.mxu0
        %v769 = vadd.f32 0.0, %v768
        %v770 = vpop.f32.mrf.mxu0
        %v771 = vadd.f32 0.0, %v770
        %772 = vmatmul.bf16.gmra.mxu0 %v584
        %v773 = vpop.f32.mrf.mxu0
        %v774 = vadd.f32 0.0, %v773
        %v775 = vpop.f32.mrf.mxu0
        %v776 = vadd.f32 0.0, %v775
        %777 = vmatmul.bf16.gmra.mxu0 %v586
        %v778 = vpop.f32.mrf.mxu0
        %v779 = vadd.f32 0.0, %v778
        %v780 = vpop.f32.mrf.mxu0
        %v781 = vadd.f32 0.0, %v780
        %782 = vmatmul.bf16.gmra.mxu0 %v588
        %v783 = vpop.f32.mrf.mxu0
        %v784 = vadd.f32 0.0, %v783
        %v785 = vpop.f32.mrf.mxu0
        %v786 = vadd.f32 0.0, %v785
        %787 = vmatmul.bf16.gmra.mxu0 %v590
        %v788 = vpop.f32.mrf.mxu0
        %v789 = vadd.f32 0.0, %v788
        %v790 = vpop.f32.mrf.mxu0
        %v791 = vadd.f32 0.0, %v790
        %792 = vmatmul.bf16.gmra.mxu0 %v592
        %v793 = vpop.f32.mrf.mxu0
        %v794 = vadd.f32 0.0, %v793
        %v795 = vpop.f32.mrf.mxu0
        %v796 = vadd.f32 0.0, %v795
        %797 = vmatmul.bf16.gmra.mxu0 %v594
        %v798 = vpop.f32.mrf.mxu0
        %v799 = vadd.f32 0.0, %v798
        %v800 = vpop.f32.mrf.mxu0
        %v801 = vadd.f32 0.0, %v800
        %802 = vmatmul.bf16.gmra.mxu0 %v596
        %v803 = vpop.f32.mrf.mxu0
        %v804 = vadd.f32 0.0, %v803
        %v805 = vpop.f32.mrf.mxu0
        %v806 = vadd.f32 0.0, %v805
        %807 = vmatmul.bf16.gmra.mxu0 %v598
        %v808 = vpop.f32.mrf.mxu0
        %v809 = vadd.f32 0.0, %v808
        %v810 = vpop.f32.mrf.mxu0
        %v811 = vadd.f32 0.0, %v810
        %812 = vmatmul.bf16.gmra.mxu0 %v600
        %v813 = vpop.f32.mrf.mxu0
        %v814 = vadd.f32 0.0, %v813
        %v815 = vpop.f32.mrf.mxu0
        %v816 = vadd.f32 0.0, %v815
        %817 = vmatmul.bf16.gmra.mxu0 %v602
        %v818 = vpop.f32.mrf.mxu0
        %v819 = vadd.f32 0.0, %v818
        %v820 = vpop.f32.mrf.mxu0
        %v821 = vadd.f32 0.0, %v820
        %822 = vmatmul.bf16.gmra.mxu0 %v604
        %v823 = vpop.f32.mrf.mxu0
        %v824 = vadd.f32 0.0, %v823
        %v825 = vpop.f32.mrf.mxu0
        %v826 = vadd.f32 0.0, %v825
        %827 = vmatmul.bf16.gmra.mxu0 %v606
        %v828 = vpop.f32.mrf.mxu0
        %v829 = vadd.f32 0.0, %v828
        %v830 = vpop.f32.mrf.mxu0
        %v831 = vadd.f32 0.0, %v830
        %832 = vmatmul.bf16.gmra.mxu0 %v608
        %v833 = vpop.f32.mrf.mxu0
        %v834 = vadd.f32 0.0, %v833
        %v835 = vpop.f32.mrf.mxu0
        %v836 = vadd.f32 0.0, %v835
        %837 = vmatmul.bf16.gmra.mxu0 %v610
        %v838 = vpop.f32.mrf.mxu0
        %v839 = vadd.f32 0.0, %v838
        %v840 = vpop.f32.mrf.mxu0
        %v841 = vadd.f32 0.0, %v840
        %842 = vdwg.mxu0
        %843 = vmatpush.bf16.msra.mxu0 %v727
        %844 = vmatpush.bf16.msra.mxu0 %v726
        %845 = vmatpush.bf16.msra.mxu0 %v725
        %846 = vmatpush.bf16.msra.mxu0 %v724
        %847 = vmatpush.bf16.msra.mxu0 %v723
        %848 = vmatpush.bf16.msra.mxu0 %v722
        %849 = vmatpush.bf16.msra.mxu0 %v721
        %850 = vmatpush.bf16.msra.mxu0 %v720
        %851 = vmatmul.bf16.gmra.mxu0 %v577
        %v852 = vpop.f32.mrf.mxu0
        %v853 = vadd.f32 %v754, %v852
        %v854 = vpop.f32.mrf.mxu0
        %v855 = vadd.f32 %v756, %v854
        %856 = vmatmul.bf16.gmra.mxu0 %v579
        %v857 = vpop.f32.mrf.mxu0
        %v858 = vadd.f32 %v759, %v857
        %v859 = vpop.f32.mrf.mxu0
        %v860 = vadd.f32 %v761, %v859
        %861 = vmatmul.bf16.gmra.mxu0 %v581
        %v862 = vpop.f32.mrf.mxu0
        %v863 = vadd.f32 %v764, %v862
        %v864 = vpop.f32.mrf.mxu0
        %v865 = vadd.f32 %v766, %v864
        %866 = vmatmul.bf16.gmra.mxu0 %v583
        %v867 = vpop.f32.mrf.mxu0
        %v868 = vadd.f32 %v769, %v867
        %v869 = vpop.f32.mrf.mxu0
        %v870 = vadd.f32 %v771, %v869
        %871 = vmatmul.bf16.gmra.mxu0 %v585
        %v872 = vpop.f32.mrf.mxu0
        %v873 = vadd.f32 %v774, %v872
        %v874 = vpop.f32.mrf.mxu0
        %v875 = vadd.f32 %v776, %v874
        %876 = vmatmul.bf16.gmra.mxu0 %v587
        %v877 = vpop.f32.mrf.mxu0
        %v878 = vadd.f32 %v779, %v877
        %v879 = vpop.f32.mrf.mxu0
        %v880 = vadd.f32 %v781, %v879
        %881 = vmatmul.bf16.gmra.mxu0 %v589
        %v882 = vpop.f32.mrf.mxu0
        %v883 = vadd.f32 %v784, %v882
        %v884 = vpop.f32.mrf.mxu0
        %v885 = vadd.f32 %v786, %v884
        %886 = vmatmul.bf16.gmra.mxu0 %v591
        %v887 = vpop.f32.mrf.mxu0
        %v888 = vadd.f32 %v789, %v887
        %v889 = vpop.f32.mrf.mxu0
        %v890 = vadd.f32 %v791, %v889
        %891 = vmatmul.bf16.gmra.mxu0 %v593
        %v892 = vpop.f32.mrf.mxu0
        %v893 = vadd.f32 %v794, %v892
        %v894 = vpop.f32.mrf.mxu0
        %v895 = vadd.f32 %v796, %v894
        %896 = vmatmul.bf16.gmra.mxu0 %v595
        %v897 = vpop.f32.mrf.mxu0
        %v898 = vadd.f32 %v799, %v897
        %v899 = vpop.f32.mrf.mxu0
        %v900 = vadd.f32 %v801, %v899
        %901 = vmatmul.bf16.gmra.mxu0 %v597
        %v902 = vpop.f32.mrf.mxu0
        %v903 = vadd.f32 %v804, %v902
        %v904 = vpop.f32.mrf.mxu0
        %v905 = vadd.f32 %v806, %v904
        %906 = vmatmul.bf16.gmra.mxu0 %v599
        %v907 = vpop.f32.mrf.mxu0
        %v908 = vadd.f32 %v809, %v907
        %v909 = vpop.f32.mrf.mxu0
        %v910 = vadd.f32 %v811, %v909
        %911 = vmatmul.bf16.gmra.mxu0 %v601
        %v912 = vpop.f32.mrf.mxu0
        %v913 = vadd.f32 %v814, %v912
        %v914 = vpop.f32.mrf.mxu0
        %v915 = vadd.f32 %v816, %v914
        %916 = vmatmul.bf16.gmra.mxu0 %v603
        %v917 = vpop.f32.mrf.mxu0
        %v918 = vadd.f32 %v819, %v917
        %v919 = vpop.f32.mrf.mxu0
        %v920 = vadd.f32 %v821, %v919
        %921 = vmatmul.bf16.gmra.mxu0 %v605
        %v922 = vpop.f32.mrf.mxu0
        %v923 = vadd.f32 %v824, %v922
        %v924 = vpop.f32.mrf.mxu0
        %v925 = vadd.f32 %v826, %v924
        %926 = vmatmul.bf16.gmra.mxu0 %v607
        %v927 = vpop.f32.mrf.mxu0
        %v928 = vadd.f32 %v829, %v927
        %v929 = vpop.f32.mrf.mxu0
        %v930 = vadd.f32 %v831, %v929
        %931 = vmatmul.bf16.gmra.mxu0 %v609
        %v932 = vpop.f32.mrf.mxu0
        %v933 = vadd.f32 %v834, %v932
        %v934 = vpop.f32.mrf.mxu0
        %v935 = vadd.f32 %v836, %v934
        %936 = vmatmul.bf16.gmra.mxu0 %v611
        %v937 = vpop.f32.mrf.mxu0
        %v938 = vadd.f32 %v839, %v937
        %v939 = vpop.f32.mrf.mxu0
        %v940 = vadd.f32 %v841, %v939
        %941 = vdwg.mxu0
        %v942 = vld [vmem:[%s2] sm:$0x1]
        %v944 = vperm.slane %v942, 0
        %v946 = vmul.f32 %v853, %v944
        %v947 = vmul.f32 %v855, %v944
        %v948 = vmul.f32 %v858, %v944
        %v949 = vmul.f32 %v860, %v944
        %v950 = vmul.f32 %v863, %v944
        %v951 = vmul.f32 %v865, %v944
        %v952 = vmul.f32 %v868, %v944
        %v953 = vmul.f32 %v870, %v944
        %v954 = vmul.f32 %v873, %v944
        %v955 = vmul.f32 %v875, %v944
        %v956 = vmul.f32 %v878, %v944
        %v957 = vmul.f32 %v880, %v944
        %v958 = vmul.f32 %v883, %v944
        %v959 = vmul.f32 %v885, %v944
        %v960 = vmul.f32 %v888, %v944
        %v961 = vmul.f32 %v890, %v944
        %v962 = vmul.f32 %v893, %v944
        %v963 = vmul.f32 %v895, %v944
        %v964 = vmul.f32 %v898, %v944
        %v965 = vmul.f32 %v900, %v944
        %v966 = vmul.f32 %v903, %v944
        %v967 = vmul.f32 %v905, %v944
        %v968 = vmul.f32 %v908, %v944
        %v969 = vmul.f32 %v910, %v944
        %v970 = vmul.f32 %v913, %v944
        %v971 = vmul.f32 %v915, %v944
        %v972 = vmul.f32 %v918, %v944
        %v973 = vmul.f32 %v920, %v944
        %v974 = vmul.f32 %v923, %v944
        %v975 = vmul.f32 %v925, %v944
        %v976 = vmul.f32 %v928, %v944
        %v977 = vmul.f32 %v930, %v944
        %v978 = vmul.f32 %v933, %v944
        %v979 = vmul.f32 %v935, %v944
        %v980 = vmul.f32 %v938, %v944
        %v981 = vmul.f32 %v940, %v944
        %v982 = vld [vmem:[%s3] sm:$0x1]
        %v984 = vperm.slane %v982, 0
        %v986 = vadd.f32 %v946, %v984
        %v987 = vadd.f32 %v947, %v984
        %v988 = vadd.f32 %v948, %v984
        %v989 = vadd.f32 %v949, %v984
        %v990 = vadd.f32 %v950, %v984
        %v991 = vadd.f32 %v951, %v984
        %v992 = vadd.f32 %v952, %v984
        %v993 = vadd.f32 %v953, %v984
        %v994 = vadd.f32 %v954, %v984
        %v995 = vadd.f32 %v955, %v984
        %v996 = vadd.f32 %v956, %v984
        %v997 = vadd.f32 %v957, %v984
        %v998 = vadd.f32 %v958, %v984
        %v999 = vadd.f32 %v959, %v984
        %v1000 = vadd.f32 %v960, %v984
        %v1001 = vadd.f32 %v961, %v984
        %v1002 = vadd.f32 %v962, %v984
        %v1003 = vadd.f32 %v963, %v984
        %v1004 = vadd.f32 %v964, %v984
        %v1005 = vadd.f32 %v965, %v984
        %v1006 = vadd.f32 %v966, %v984
        %v1007 = vadd.f32 %v967, %v984
        %v1008 = vadd.f32 %v968, %v984
        %v1009 = vadd.f32 %v969, %v984
        %v1010 = vadd.f32 %v970, %v984
        %v1011 = vadd.f32 %v971, %v984
        %v1012 = vadd.f32 %v972, %v984
        %v1013 = vadd.f32 %v973, %v984
        %v1014 = vadd.f32 %v974, %v984
        %v1015 = vadd.f32 %v975, %v984
        %v1016 = vadd.f32 %v976, %v984
        %v1017 = vadd.f32 %v977, %v984
        %v1018 = vadd.f32 %v978, %v984
        %v1019 = vadd.f32 %v979, %v984
        %v1020 = vadd.f32 %v980, %v984
        %v1021 = vadd.f32 %v981, %v984
        %v1022 = vmax.f32 %v986, 0.0
        %v1023 = vmax.f32 %v987, 0.0
        %v1024 = vmax.f32 %v988, 0.0
        %v1025 = vmax.f32 %v989, 0.0
        %v1026 = vmax.f32 %v990, 0.0
        %v1027 = vmax.f32 %v991, 0.0
        %v1028 = vmax.f32 %v992, 0.0
        %v1029 = vmax.f32 %v993, 0.0
        %v1030 = vmax.f32 %v994, 0.0
        %v1031 = vmax.f32 %v995, 0.0
        %v1032 = vmax.f32 %v996, 0.0
        %v1033 = vmax.f32 %v997, 0.0
        %v1034 = vmax.f32 %v998, 0.0
        %v1035 = vmax.f32 %v999, 0.0
        %v1036 = vmax.f32 %v1000, 0.0
        %v1037 = vmax.f32 %v1001, 0.0
        %v1038 = vmax.f32 %v1002, 0.0
        %v1039 = vmax.f32 %v1003, 0.0
        %v1040 = vmax.f32 %v1004, 0.0
        %v1041 = vmax.f32 %v1005, 0.0
        %v1042 = vmax.f32 %v1006, 0.0
        %v1043 = vmax.f32 %v1007, 0.0
        %v1044 = vmax.f32 %v1008, 0.0
        %v1045 = vmax.f32 %v1009, 0.0
        %v1046 = vmax.f32 %v1010, 0.0
        %v1047 = vmax.f32 %v1011, 0.0
        %v1048 = vmax.f32 %v1012, 0.0
        %v1049 = vmax.f32 %v1013, 0.0
        %v1050 = vmax.f32 %v1014, 0.0
        %v1051 = vmax.f32 %v1015, 0.0
        %v1052 = vmax.f32 %v1016, 0.0
        %v1053 = vmax.f32 %v1017, 0.0
        %v1054 = vmax.f32 %v1018, 0.0
        %v1055 = vmax.f32 %v1019, 0.0
        %v1056 = vmax.f32 %v1020, 0.0
        %v1057 = vmax.f32 %v1021, 0.0
        %p1058 = scmp.gt.s32.totalorder %s32, 0
        %s1059 = scalar_select %p1058, 1, 0
        %v1060 = vstv %s1059
        %vm1061 = vcmp.eq.s32.totalorder %v1060, 1
        %p1062 = scmp.lt.s32.totalorder %s32, 0
        %s1063 = scalar_select %p1062, 1, 0
        %v1064 = vstv %s1063
        %vm1065 = vcmp.eq.s32.totalorder %v1064, 1
        %v1066 = vsel %vm1061, 1, 0
        %v1067 = vsel %vm1065, 1, 0
        %vm1068 = vcmp.eq.s32.totalorder %v1066, 1
        %vm1069 = vcmp.eq.s32.totalorder %v1067, 1
        %v1070 = vsel %vm1068, %v1022, 0.0
        %v1071 = vsel %vm1068, %v1023, 0.0
        %v1072 = vsel 1, %v1024, 0.0
        %v1073 = vsel 1, %v1025, 0.0
        %v1074 = vsel 1, %v1026, 0.0
        %v1075 = vsel 1, %v1027, 0.0
        %v1076 = vsel 1, %v1028, 0.0
        %v1077 = vsel 1, %v1029, 0.0
        %v1078 = vsel 1, %v1030, 0.0
        %v1079 = vsel 1, %v1031, 0.0
        %v1080 = vsel 1, %v1032, 0.0
        %v1081 = vsel 1, %v1033, 0.0
        %v1082 = vsel 1, %v1034, 0.0
        %v1083 = vsel 1, %v1035, 0.0
        %v1084 = vsel 1, %v1036, 0.0
        %v1085 = vsel 1, %v1037, 0.0
        %v1086 = vsel 1, %v1038, 0.0
        %v1087 = vsel 1, %v1039, 0.0
        %v1088 = vsel 1, %v1040, 0.0
        %v1089 = vsel 1, %v1041, 0.0
        %v1090 = vsel 1, %v1042, 0.0
        %v1091 = vsel 1, %v1043, 0.0
        %v1092 = vsel 1, %v1044, 0.0
        %v1093 = vsel 1, %v1045, 0.0
        %v1094 = vsel 1, %v1046, 0.0
        %v1095 = vsel 1, %v1047, 0.0
        %v1096 = vsel 1, %v1048, 0.0
        %v1097 = vsel 1, %v1049, 0.0
        %v1098 = vsel 1, %v1050, 0.0
        %v1099 = vsel 1, %v1051, 0.0
        %v1100 = vsel 1, %v1052, 0.0
        %v1101 = vsel 1, %v1053, 0.0
        %v1102 = vsel 1, %v1054, 0.0
        %v1103 = vsel 1, %v1055, 0.0
        %v1104 = vsel %vm1069, %v1056, 0.0
        %v1105 = vsel %vm1069, %v1057, 0.0
        %vm1142 = vcmask 1040384
        %v1143 = vrot.slane %v1070, 7
        %v1144 = vrot.slane %v1071, 7
        %v1145 = vsel %vm1142, %v1143, %v1144
        %v1146 = vrot.slane %v1072, 7
        %v1147 = vrot.slane %v1073, 7
        %v1148 = vsel %vm1142, %v1146, %v1147
        %v1149 = vrot.slane %v1074, 7
        %v1150 = vrot.slane %v1075, 7
        %v1151 = vsel %vm1142, %v1149, %v1150
        %v1152 = vrot.slane %v1076, 7
        %v1153 = vrot.slane %v1077, 7
        %v1154 = vsel %vm1142, %v1152, %v1153
        %v1155 = vrot.slane %v1078, 7
        %v1156 = vrot.slane %v1079, 7
        %v1157 = vsel %vm1142, %v1155, %v1156
        %v1158 = vrot.slane %v1080, 7
        %v1159 = vrot.slane %v1081, 7
        %v1160 = vsel %vm1142, %v1158, %v1159
        %v1161 = vrot.slane %v1082, 7
        %v1162 = vrot.slane %v1083, 7
        %v1163 = vsel %vm1142, %v1161, %v1162
        %v1164 = vrot.slane %v1084, 7
        %v1165 = vrot.slane %v1085, 7
        %v1166 = vsel %vm1142, %v1164, %v1165
        %v1167 = vrot.slane %v1086, 7
        %v1168 = vrot.slane %v1087, 7
        %v1169 = vsel %vm1142, %v1167, %v1168
        %v1170 = vrot.slane %v1088, 7
        %v1171 = vrot.slane %v1089, 7
        %v1172 = vsel %vm1142, %v1170, %v1171
        %v1173 = vrot.slane %v1090, 7
        %v1174 = vrot.slane %v1091, 7
        %v1175 = vsel %vm1142, %v1173, %v1174
        %v1176 = vrot.slane %v1092, 7
        %v1177 = vrot.slane %v1093, 7
        %v1178 = vsel %vm1142, %v1176, %v1177
        %v1179 = vrot.slane %v1094, 7
        %v1180 = vrot.slane %v1095, 7
        %v1181 = vsel %vm1142, %v1179, %v1180
        %v1182 = vrot.slane %v1096, 7
        %v1183 = vrot.slane %v1097, 7
        %v1184 = vsel %vm1142, %v1182, %v1183
        %v1185 = vrot.slane %v1098, 7
        %v1186 = vrot.slane %v1099, 7
        %v1187 = vsel %vm1142, %v1185, %v1186
        %v1188 = vrot.slane %v1100, 7
        %v1189 = vrot.slane %v1101, 7
        %v1190 = vsel %vm1142, %v1188, %v1189
        %v1191 = vrot.slane %v1102, 7
        %v1192 = vrot.slane %v1103, 7
        %v1193 = vsel %vm1142, %v1191, %v1192
        %v1194 = vrot.slane %v1104, 7
        %v1195 = vrot.slane %v1105, 7
        %v1196 = vsel %vm1142, %v1194, %v1195
        %v1233 = vsel %vm1142, 0.0, %v1143
        %v1234 = vsel %vm1142, 0.0, %v1146
        %v1235 = vsel %vm1142, 0.0, %v1149
        %v1236 = vsel %vm1142, 0.0, %v1152
        %v1237 = vsel %vm1142, 0.0, %v1155
        %v1238 = vsel %vm1142, 0.0, %v1158
        %v1239 = vsel %vm1142, 0.0, %v1161
        %v1240 = vsel %vm1142, 0.0, %v1164
        %v1241 = vsel %vm1142, 0.0, %v1167
        %v1242 = vsel %vm1142, 0.0, %v1170
        %v1243 = vsel %vm1142, 0.0, %v1173
        %v1244 = vsel %vm1142, 0.0, %v1176
        %v1245 = vsel %vm1142, 0.0, %v1179
        %v1246 = vsel %vm1142, 0.0, %v1182
        %v1247 = vsel %vm1142, 0.0, %v1185
        %v1248 = vsel %vm1142, 0.0, %v1188
        %v1249 = vsel %vm1142, 0.0, %v1191
        %v1250 = vsel %vm1142, 0.0, %v1194
        %vm1251 = vcmask 1046528
        %v1252 = vrot.slane %v1070, 1
        %v1253 = vrot.slane %v1071, 1
        %v1254 = vsel %vm1251, %v1252, %v1253
        %v1255 = vrot.slane %v1072, 1
        %v1256 = vrot.slane %v1073, 1
        %v1257 = vsel %vm1251, %v1255, %v1256
        %v1258 = vrot.slane %v1074, 1
        %v1259 = vrot.slane %v1075, 1
        %v1260 = vsel %vm1251, %v1258, %v1259
        %v1261 = vrot.slane %v1076, 1
        %v1262 = vrot.slane %v1077, 1
        %v1263 = vsel %vm1251, %v1261, %v1262
        %v1264 = vrot.slane %v1078, 1
        %v1265 = vrot.slane %v1079, 1
        %v1266 = vsel %vm1251, %v1264, %v1265
        %v1267 = vrot.slane %v1080, 1
        %v1268 = vrot.slane %v1081, 1
        %v1269 = vsel %vm1251, %v1267, %v1268
        %v1270 = vrot.slane %v1082, 1
        %v1271 = vrot.slane %v1083, 1
        %v1272 = vsel %vm1251, %v1270, %v1271
        %v1273 = vrot.slane %v1084, 1
        %v1274 = vrot.slane %v1085, 1
        %v1275 = vsel %vm1251, %v1273, %v1274
        %v1276 = vrot.slane %v1086, 1
        %v1277 = vrot.slane %v1087, 1
        %v1278 = vsel %vm1251, %v1276, %v1277
        %v1279 = vrot.slane %v1088, 1
        %v1280 = vrot.slane %v1089, 1
        %v1281 = vsel %vm1251, %v1279, %v1280
        %v1282 = vrot.slane %v1090, 1
        %v1283 = vrot.slane %v1091, 1
        %v1284 = vsel %vm1251, %v1282, %v1283
        %v1285 = vrot.slane %v1092, 1
        %v1286 = vrot.slane %v1093, 1
        %v1287 = vsel %vm1251, %v1285, %v1286
        %v1288 = vrot.slane %v1094, 1
        %v1289 = vrot.slane %v1095, 1
        %v1290 = vsel %vm1251, %v1288, %v1289
        %v1291 = vrot.slane %v1096, 1
        %v1292 = vrot.slane %v1097, 1
        %v1293 = vsel %vm1251, %v1291, %v1292
        %v1294 = vrot.slane %v1098, 1
        %v1295 = vrot.slane %v1099, 1
        %v1296 = vsel %vm1251, %v1294, %v1295
        %v1297 = vrot.slane %v1100, 1
        %v1298 = vrot.slane %v1101, 1
        %v1299 = vsel %vm1251, %v1297, %v1298
        %v1300 = vrot.slane %v1102, 1
        %v1301 = vrot.slane %v1103, 1
        %v1302 = vsel %vm1251, %v1300, %v1301
        %v1303 = vrot.slane %v1104, 1
        %v1304 = vrot.slane %v1105, 1
        %v1305 = vsel %vm1251, %v1303, %v1304
        %v1342 = vsel %vm1251, %v1253, 0.0
        %v1343 = vsel %vm1251, %v1256, 0.0
        %v1344 = vsel %vm1251, %v1259, 0.0
        %v1345 = vsel %vm1251, %v1262, 0.0
        %v1346 = vsel %vm1251, %v1265, 0.0
        %v1347 = vsel %vm1251, %v1268, 0.0
        %v1348 = vsel %vm1251, %v1271, 0.0
        %v1349 = vsel %vm1251, %v1274, 0.0
        %v1350 = vsel %vm1251, %v1277, 0.0
        %v1351 = vsel %vm1251, %v1280, 0.0
        %v1352 = vsel %vm1251, %v1283, 0.0
        %v1353 = vsel %vm1251, %v1286, 0.0
        %v1354 = vsel %vm1251, %v1289, 0.0
        %v1355 = vsel %vm1251, %v1292, 0.0
        %v1356 = vsel %vm1251, %v1295, 0.0
        %v1357 = vsel %vm1251, %v1298, 0.0
        %v1358 = vsel %vm1251, %v1301, 0.0
        %v1359 = vsel %vm1251, %v1304, 0.0
        %1360 = vrot.lane.b32.xlu0 %v1070, 64
        %v1361 = vpop.permute.xlu0 %1360
        %1362 = vrot.lane.b32.xlu0 %v1071, 64
        %v1363 = vpop.permute.xlu0 %1362
        %1364 = vrot.lane.b32.xlu0 %v1072, 64
        %v1365 = vpop.permute.xlu0 %1364
        %1366 = vrot.lane.b32.xlu0 %v1073, 64
        %v1367 = vpop.permute.xlu0 %1366
        %1368 = vrot.lane.b32.xlu0 %v1074, 64
        %v1369 = vpop.permute.xlu0 %1368
        %1370 = vrot.lane.b32.xlu0 %v1075, 64
        %v1371 = vpop.permute.xlu0 %1370
        %1372 = vrot.lane.b32.xlu0 %v1076, 64
        %v1373 = vpop.permute.xlu0 %1372
        %1374 = vrot.lane.b32.xlu0 %v1077, 64
        %v1375 = vpop.permute.xlu0 %1374
        %1376 = vrot.lane.b32.xlu0 %v1078, 64
        %v1377 = vpop.permute.xlu0 %1376
        %1378 = vrot.lane.b32.xlu0 %v1079, 64
        %v1379 = vpop.permute.xlu0 %1378
        %1380 = vrot.lane.b32.xlu0 %v1080, 64
        %v1381 = vpop.permute.xlu0 %1380
        %1382 = vrot.lane.b32.xlu0 %v1081, 64
        %v1383 = vpop.permute.xlu0 %1382
        %1384 = vrot.lane.b32.xlu0 %v1082, 64
        %v1385 = vpop.permute.xlu0 %1384
        %1386 = vrot.lane.b32.xlu0 %v1083, 64
        %v1387 = vpop.permute.xlu0 %1386
        %1388 = vrot.lane.b32.xlu0 %v1084, 64
        %v1389 = vpop.permute.xlu0 %1388
        %1390 = vrot.lane.b32.xlu0 %v1085, 64
        %v1391 = vpop.permute.xlu0 %1390
        %1392 = vrot.lane.b32.xlu0 %v1086, 64
        %v1393 = vpop.permute.xlu0 %1392
        %1394 = vrot.lane.b32.xlu0 %v1087, 64
        %v1395 = vpop.permute.xlu0 %1394
        %1396 = vrot.lane.b32.xlu0 %v1088, 64
        %v1397 = vpop.permute.xlu0 %1396
        %1398 = vrot.lane.b32.xlu0 %v1089, 64
        %v1399 = vpop.permute.xlu0 %1398
        %1400 = vrot.lane.b32.xlu0 %v1090, 64
        %v1401 = vpop.permute.xlu0 %1400
        %1402 = vrot.lane.b32.xlu0 %v1091, 64
        %v1403 = vpop.permute.xlu0 %1402
        %1404 = vrot.lane.b32.xlu0 %v1092, 64
        %v1405 = vpop.permute.xlu0 %1404
        %1406 = vrot.lane.b32.xlu0 %v1093, 64
        %v1407 = vpop.permute.xlu0 %1406
        %1408 = vrot.lane.b32.xlu0 %v1094, 64
        %v1409 = vpop.permute.xlu0 %1408
        %1410 = vrot.lane.b32.xlu0 %v1095, 64
        %v1411 = vpop.permute.xlu0 %1410
        %1412 = vrot.lane.b32.xlu0 %v1096, 64
        %v1413 = vpop.permute.xlu0 %1412
        %1414 = vrot.lane.b32.xlu0 %v1097, 64
        %v1415 = vpop.permute.xlu0 %1414
        %1416 = vrot.lane.b32.xlu0 %v1098, 64
        %v1417 = vpop.permute.xlu0 %1416
        %1418 = vrot.lane.b32.xlu0 %v1099, 64
        %v1419 = vpop.permute.xlu0 %1418
        %1420 = vrot.lane.b32.xlu0 %v1100, 64
        %v1421 = vpop.permute.xlu0 %1420
        %1422 = vrot.lane.b32.xlu0 %v1101, 64
        %v1423 = vpop.permute.xlu0 %1422
        %1424 = vrot.lane.b32.xlu0 %v1102, 64
        %v1425 = vpop.permute.xlu0 %1424
        %1426 = vrot.lane.b32.xlu0 %v1103, 64
        %v1427 = vpop.permute.xlu0 %1426
        %1428 = vrot.lane.b32.xlu0 %v1104, 64
        %v1429 = vpop.permute.xlu0 %1428
        %1430 = vrot.lane.b32.xlu0 %v1105, 64
        %v1431 = vpop.permute.xlu0 %1430
        %vm1468 = vcmask 523264
        %v1469 = vsel %vm1468, %v1233, %v1361
        %v1470 = vsel %vm1468, %v1145, %v1363
        %v1471 = vsel %vm1468, %v1234, %v1365
        %v1472 = vsel %vm1468, %v1148, %v1367
        %v1473 = vsel %vm1468, %v1235, %v1369
        %v1474 = vsel %vm1468, %v1151, %v1371
        %v1475 = vsel %vm1468, %v1236, %v1373
        %v1476 = vsel %vm1468, %v1154, %v1375
        %v1477 = vsel %vm1468, %v1237, %v1377
        %v1478 = vsel %vm1468, %v1157, %v1379
        %v1479 = vsel %vm1468, %v1238, %v1381
        %v1480 = vsel %vm1468, %v1160, %v1383
        %v1481 = vsel %vm1468, %v1239, %v1385
        %v1482 = vsel %vm1468, %v1163, %v1387
        %v1483 = vsel %vm1468, %v1240, %v1389
        %v1484 = vsel %vm1468, %v1166, %v1391
        %v1485 = vsel %vm1468, %v1241, %v1393
        %v1486 = vsel %vm1468, %v1169, %v1395
        %v1487 = vsel %vm1468, %v1242, %v1397
        %v1488 = vsel %vm1468, %v1172, %v1399
        %v1489 = vsel %vm1468, %v1243, %v1401
        %v1490 = vsel %vm1468, %v1175, %v1403
        %v1491 = vsel %vm1468, %v1244, %v1405
        %v1492 = vsel %vm1468, %v1178, %v1407
        %v1493 = vsel %vm1468, %v1245, %v1409
        %v1494 = vsel %vm1468, %v1181, %v1411
        %v1495 = vsel %vm1468, %v1246, %v1413
        %v1496 = vsel %vm1468, %v1184, %v1415
        %v1497 = vsel %vm1468, %v1247, %v1417
        %v1498 = vsel %vm1468, %v1187, %v1419
        %v1499 = vsel %vm1468, %v1248, %v1421
        %v1500 = vsel %vm1468, %v1190, %v1423
        %v1501 = vsel %vm1468, %v1249, %v1425
        %v1502 = vsel %vm1468, %v1193, %v1427
        %v1503 = vsel %vm1468, %v1250, %v1429
        %v1504 = vsel %vm1468, %v1196, %v1431
        %v1505 = vpack.c.bf16 %v1254, %v1469
        %v1506 = vpack.c.bf16 %v1342, %v1470
        %v1507 = vpack.c.bf16 %v1257, %v1471
        %v1508 = vpack.c.bf16 %v1343, %v1472
        %v1509 = vpack.c.bf16 %v1260, %v1473
        %v1510 = vpack.c.bf16 %v1344, %v1474
        %v1511 = vpack.c.bf16 %v1263, %v1475
        %v1512 = vpack.c.bf16 %v1345, %v1476
        %v1513 = vpack.c.bf16 %v1266, %v1477
        %v1514 = vpack.c.bf16 %v1346, %v1478
        %v1515 = vpack.c.bf16 %v1269, %v1479
        %v1516 = vpack.c.bf16 %v1347, %v1480
        %v1517 = vpack.c.bf16 %v1272, %v1481
        %v1518 = vpack.c.bf16 %v1348, %v1482
        %v1519 = vpack.c.bf16 %v1275, %v1483
        %v1520 = vpack.c.bf16 %v1349, %v1484
        %v1521 = vpack.c.bf16 %v1278, %v1485
        %v1522 = vpack.c.bf16 %v1350, %v1486
        %v1523 = vpack.c.bf16 %v1281, %v1487
        %v1524 = vpack.c.bf16 %v1351, %v1488
        %v1525 = vpack.c.bf16 %v1284, %v1489
        %v1526 = vpack.c.bf16 %v1352, %v1490
        %v1527 = vpack.c.bf16 %v1287, %v1491
        %v1528 = vpack.c.bf16 %v1353, %v1492
        %v1529 = vpack.c.bf16 %v1290, %v1493
        %v1530 = vpack.c.bf16 %v1354, %v1494
        %v1531 = vpack.c.bf16 %v1293, %v1495
        %v1532 = vpack.c.bf16 %v1355, %v1496
        %v1533 = vpack.c.bf16 %v1296, %v1497
        %v1534 = vpack.c.bf16 %v1356, %v1498
        %v1535 = vpack.c.bf16 %v1299, %v1499
        %v1536 = vpack.c.bf16 %v1357, %v1500
        %v1537 = vpack.c.bf16 %v1302, %v1501
        %v1538 = vpack.c.bf16 %v1358, %v1502
        %v1539 = vpack.c.bf16 %v1305, %v1503
        %v1540 = vpack.c.bf16 %v1359, %v1504
        %v1541 = vld [vmem:[%s4] sm:$0xf]
        %v1542 = vld [vmem:[%s4 + $0x4] sm:$0xf]
        %v1543 = vld [vmem:[%s4 + $0x8] sm:$0xf]
        %v1544 = vld [vmem:[%s4 + $0xc] sm:$0xf]
        %v1545 = vld [vmem:[%s4 + $0x10] sm:$0xf]
        %v1546 = vld [vmem:[%s4 + $0x14] sm:$0xf]
        %v1547 = vld [vmem:[%s4 + $0x18] sm:$0xf]
        %v1548 = vld [vmem:[%s4 + $0x1c] sm:$0xf]
        %v1549 = vld [vmem:[%s4 + $0x20] sm:$0xf]
        %v1550 = vld [vmem:[%s4 + $0x24] sm:$0xf]
        %v1551 = vld [vmem:[%s4 + $0x28] sm:$0xf]
        %v1552 = vld [vmem:[%s4 + $0x2c] sm:$0xf]
        %v1553 = vld [vmem:[%s4 + $0x30] sm:$0xf]
        %v1554 = vld [vmem:[%s4 + $0x34] sm:$0xf]
        %v1555 = vld [vmem:[%s4 + $0x38] sm:$0xf]
        %v1556 = vld [vmem:[%s4 + $0x3c] sm:$0xf]
        %v1557 = vld [vmem:[%s4 + $0x40] sm:$0xf]
        %v1558 = vld [vmem:[%s4 + $0x44] sm:$0xf]
        %v1559 = vld [vmem:[%s4 + $0x48] sm:$0xf]
        %v1560 = vld [vmem:[%s4 + $0x4c] sm:$0xf]
        %v1561 = vld [vmem:[%s4 + $0x50] sm:$0xf]
        %v1562 = vld [vmem:[%s4 + $0x54] sm:$0xf]
        %v1563 = vld [vmem:[%s4 + $0x58] sm:$0xf]
        %v1564 = vld [vmem:[%s4 + $0x5c] sm:$0xf]
        %s1565 = scalar_lea.vmem %s4, 96
        %v1566 = vld [vmem:[%s1565] sm:$0xf]
        %v1567 = vld [vmem:[%s1565 + $0x4] sm:$0xf]
        %v1568 = vld [vmem:[%s1565 + $0x8] sm:$0xf]
        %v1569 = vld [vmem:[%s1565 + $0xc] sm:$0xf]
        %v1570 = vld [vmem:[%s1565 + $0x10] sm:$0xf]
        %v1571 = vld [vmem:[%s1565 + $0x14] sm:$0xf]
        %v1572 = vld [vmem:[%s1565 + $0x18] sm:$0xf]
        %v1573 = vld [vmem:[%s1565 + $0x1c] sm:$0xf]
        %v1574 = vld [vmem:[%s1565 + $0x20] sm:$0xf]
        %v1575 = vld [vmem:[%s1565 + $0x24] sm:$0xf]
        %v1576 = vld [vmem:[%s1565 + $0x28] sm:$0xf]
        %v1577 = vld [vmem:[%s1565 + $0x2c] sm:$0xf]
        %v1578 = vld [vmem:[%s1565 + $0x30] sm:$0xf]
        %v1579 = vld [vmem:[%s1565 + $0x34] sm:$0xf]
        %v1580 = vld [vmem:[%s1565 + $0x38] sm:$0xf]
        %v1581 = vld [vmem:[%s1565 + $0x3c] sm:$0xf]
        %v1582 = vld [vmem:[%s1565 + $0x40] sm:$0xf]
        %v1583 = vld [vmem:[%s1565 + $0x44] sm:$0xf]
        %v1584 = vld [vmem:[%s1565 + $0x48] sm:$0xf]
        %v1585 = vld [vmem:[%s1565 + $0x4c] sm:$0xf]
        %v1586 = vld [vmem:[%s1565 + $0x50] sm:$0xf]
        %v1587 = vld [vmem:[%s1565 + $0x54] sm:$0xf]
        %v1588 = vld [vmem:[%s1565 + $0x58] sm:$0xf]
        %v1589 = vld [vmem:[%s1565 + $0x5c] sm:$0xf]
        %v1622 = vunpack.c.l.b16 %v1507
        %v1623 = vunpack.c.h.b16 %v1507
        %v1624 = vunpack.c.l.b16 %v1508
        %v1625 = vunpack.c.h.b16 %v1508
        %v1626 = vunpack.c.l.b16 %v1509
        %v1627 = vunpack.c.h.b16 %v1509
        %v1628 = vunpack.c.l.b16 %v1510
        %v1629 = vunpack.c.h.b16 %v1510
        %v1630 = vunpack.c.l.b16 %v1511
        %v1631 = vunpack.c.h.b16 %v1511
        %v1632 = vunpack.c.l.b16 %v1512
        %v1633 = vunpack.c.h.b16 %v1512
        %v1634 = vunpack.c.l.b16 %v1513
        %v1635 = vunpack.c.h.b16 %v1513
        %v1636 = vunpack.c.l.b16 %v1514
        %v1637 = vunpack.c.h.b16 %v1514
        %v1638 = vunpack.c.l.b16 %v1515
        %v1639 = vunpack.c.h.b16 %v1515
        %v1640 = vunpack.c.l.b16 %v1516
        %v1641 = vunpack.c.h.b16 %v1516
        %v1642 = vunpack.c.l.b16 %v1517
        %v1643 = vunpack.c.h.b16 %v1517
        %v1644 = vunpack.c.l.b16 %v1518
        %v1645 = vunpack.c.h.b16 %v1518
        %v1646 = vunpack.c.l.b16 %v1519
        %v1647 = vunpack.c.h.b16 %v1519
        %v1648 = vunpack.c.l.b16 %v1520
        %v1649 = vunpack.c.h.b16 %v1520
        %v1650 = vunpack.c.l.b16 %v1521
        %v1651 = vunpack.c.h.b16 %v1521
        %v1652 = vunpack.c.l.b16 %v1522
        %v1653 = vunpack.c.h.b16 %v1522
        %v1654 = vunpack.c.l.b16 %v1523
        %v1655 = vunpack.c.h.b16 %v1523
        %v1656 = vunpack.c.l.b16 %v1524
        %v1657 = vunpack.c.h.b16 %v1524
        %v1658 = vunpack.c.l.b16 %v1525
        %v1659 = vunpack.c.h.b16 %v1525
        %v1660 = vunpack.c.l.b16 %v1526
        %v1661 = vunpack.c.h.b16 %v1526
        %v1662 = vunpack.c.l.b16 %v1527
        %v1663 = vunpack.c.h.b16 %v1527
        %v1664 = vunpack.c.l.b16 %v1528
        %v1665 = vunpack.c.h.b16 %v1528
        %v1666 = vunpack.c.l.b16 %v1529
        %v1667 = vunpack.c.h.b16 %v1529
        %v1668 = vunpack.c.l.b16 %v1530
        %v1669 = vunpack.c.h.b16 %v1530
        %v1670 = vunpack.c.l.b16 %v1531
        %v1671 = vunpack.c.h.b16 %v1531
        %v1672 = vunpack.c.l.b16 %v1532
        %v1673 = vunpack.c.h.b16 %v1532
        %v1674 = vunpack.c.l.b16 %v1533
        %v1675 = vunpack.c.h.b16 %v1533
        %v1676 = vunpack.c.l.b16 %v1534
        %v1677 = vunpack.c.h.b16 %v1534
        %v1678 = vunpack.c.l.b16 %v1535
        %v1679 = vunpack.c.h.b16 %v1535
        %v1680 = vunpack.c.l.b16 %v1536
        %v1681 = vunpack.c.h.b16 %v1536
        %v1682 = vunpack.c.l.b16 %v1537
        %v1683 = vunpack.c.h.b16 %v1537
        %v1684 = vunpack.c.l.b16 %v1538
        %v1685 = vunpack.c.h.b16 %v1538
        %v1686 = vpack.c.b16 %v1624, %v1622
        %v1687 = vpack.c.b16 %v1625, %v1623
        %v1688 = vpack.c.b16 %v1628, %v1626
        %v1689 = vpack.c.b16 %v1629, %v1627
        %v1690 = vpack.c.b16 %v1632, %v1630
        %v1691 = vpack.c.b16 %v1633, %v1631
        %v1692 = vpack.c.b16 %v1636, %v1634
        %v1693 = vpack.c.b16 %v1637, %v1635
        %v1694 = vpack.c.b16 %v1640, %v1638
        %v1695 = vpack.c.b16 %v1641, %v1639
        %v1696 = vpack.c.b16 %v1644, %v1642
        %v1697 = vpack.c.b16 %v1645, %v1643
        %v1698 = vpack.c.b16 %v1648, %v1646
        %v1699 = vpack.c.b16 %v1649, %v1647
        %v1700 = vpack.c.b16 %v1652, %v1650
        %v1701 = vpack.c.b16 %v1653, %v1651
        %v1702 = vpack.c.b16 %v1656, %v1654
        %v1703 = vpack.c.b16 %v1657, %v1655
        %v1704 = vpack.c.b16 %v1660, %v1658
        %v1705 = vpack.c.b16 %v1661, %v1659
        %v1706 = vpack.c.b16 %v1664, %v1662
        %v1707 = vpack.c.b16 %v1665, %v1663
        %v1708 = vpack.c.b16 %v1668, %v1666
        %v1709 = vpack.c.b16 %v1669, %v1667
        %v1710 = vpack.c.b16 %v1672, %v1670
        %v1711 = vpack.c.b16 %v1673, %v1671
        %v1712 = vpack.c.b16 %v1676, %v1674
        %v1713 = vpack.c.b16 %v1677, %v1675
        %v1714 = vpack.c.b16 %v1680, %v1678
        %v1715 = vpack.c.b16 %v1681, %v1679
        %v1716 = vpack.c.b16 %v1684, %v1682
        %v1717 = vpack.c.b16 %v1685, %v1683
        %v1758 = vunpack.c.l.b16 %v1566
        %v1759 = vunpack.c.l.b16 %v1567
        %v1760 = vunpack.c.l.b16 %v1568
        %v1761 = vunpack.c.l.b16 %v1569
        %v1762 = vunpack.c.l.b16 %v1570
        %v1763 = vunpack.c.l.b16 %v1571
        %v1764 = vunpack.c.l.b16 %v1572
        %v1765 = vunpack.c.l.b16 %v1573
        %v1766 = vunpack.c.l.b16 %v1574
        %v1767 = vunpack.c.l.b16 %v1575
        %v1768 = vunpack.c.l.b16 %v1576
        %v1769 = vunpack.c.l.b16 %v1577
        %v1770 = vunpack.c.l.b16 %v1578
        %v1771 = vunpack.c.l.b16 %v1579
        %v1772 = vunpack.c.l.b16 %v1580
        %v1773 = vunpack.c.l.b16 %v1581
        %v1774 = vunpack.c.l.b16 %v1582
        %v1775 = vunpack.c.l.b16 %v1583
        %v1776 = vunpack.c.l.b16 %v1584
        %v1777 = vunpack.c.l.b16 %v1585
        %v1778 = vunpack.c.l.b16 %v1586
        %v1779 = vunpack.c.l.b16 %v1587
        %v1780 = vunpack.c.l.b16 %v1588
        %v1781 = vunpack.c.l.b16 %v1589
        %v1782 = vpack.c.b16 %v1759, %v1758
        %v1783 = vpack.c.b16 %v1761, %v1760
        %v1784 = vpack.c.b16 %v1763, %v1762
        %v1785 = vpack.c.b16 %v1765, %v1764
        %v1786 = vpack.c.b16 %v1767, %v1766
        %v1787 = vpack.c.b16 %v1769, %v1768
        %v1788 = vpack.c.b16 %v1771, %v1770
        %v1789 = vpack.c.b16 %v1773, %v1772
        %v1790 = vpack.c.b16 %v1775, %v1774
        %v1791 = vpack.c.b16 %v1777, %v1776
        %v1792 = vpack.c.b16 %v1779, %v1778
        %v1793 = vpack.c.b16 %v1781, %v1780
        %v1807 = vsel %vm1468, %v1687, 0
        %v1810 = vsel %vm1468, %v1689, 0
        %v1813 = vsel %vm1468, %v1691, 0
        %v1816 = vsel %vm1468, %v1693, 0
        %v1819 = vsel %vm1468, %v1695, 0
        %v1822 = vsel %vm1468, %v1697, 0
        %v1825 = vsel %vm1468, %v1699, 0
        %v1828 = vsel %vm1468, %v1701, 0
        %v1831 = vsel %vm1468, %v1703, 0
        %v1834 = vsel %vm1468, %v1705, 0
        %v1837 = vsel %vm1468, %v1707, 0
        %v1840 = vsel %vm1468, %v1709, 0
        %v1843 = vsel %vm1468, %v1711, 0
        %v1846 = vsel %vm1468, %v1713, 0
        %v1849 = vsel %vm1468, %v1715, 0
        %v1852 = vsel %vm1468, %v1717, 0
        %1854 = vmatpush.bf16.msra.mxu0 %v1789
        %1855 = vmatpush.bf16.msra.mxu0 %v1788
        %1856 = vmatpush.bf16.msra.mxu0 %v1787
        %1857 = vmatpush.bf16.msra.mxu0 %v1786
        %1858 = vmatpush.bf16.msra.mxu0 %v1785
        %1859 = vmatpush.bf16.msra.mxu0 %v1784
        %1860 = vmatpush.bf16.msra.mxu0 %v1783
        %1861 = vmatpush.bf16.msra.mxu0 %v1782
        %1862 = vmatmul.bf16.gmra.mxu0 %v1686
        %v1863 = vpop.f32.mrf.mxu0
        %v1864 = vadd.f32 0.0, %v1863
        %v1865 = vpop.f32.mrf.mxu0
        %v1866 = vadd.f32 0.0, %v1865
        %1867 = vmatmul.bf16.gmra.mxu0 %v1688
        %v1868 = vpop.f32.mrf.mxu0
        %v1869 = vadd.f32 0.0, %v1868
        %v1870 = vpop.f32.mrf.mxu0
        %v1871 = vadd.f32 0.0, %v1870
        %1872 = vmatmul.bf16.gmra.mxu0 %v1690
        %v1873 = vpop.f32.mrf.mxu0
        %v1874 = vadd.f32 0.0, %v1873
        %v1875 = vpop.f32.mrf.mxu0
        %v1876 = vadd.f32 0.0, %v1875
        %1877 = vmatmul.bf16.gmra.mxu0 %v1692
        %v1878 = vpop.f32.mrf.mxu0
        %v1879 = vadd.f32 0.0, %v1878
        %v1880 = vpop.f32.mrf.mxu0
        %v1881 = vadd.f32 0.0, %v1880
        %1882 = vmatmul.bf16.gmra.mxu0 %v1694
        %v1883 = vpop.f32.mrf.mxu0
        %v1884 = vadd.f32 0.0, %v1883
        %v1885 = vpop.f32.mrf.mxu0
        %v1886 = vadd.f32 0.0, %v1885
        %1887 = vmatmul.bf16.gmra.mxu0 %v1696
        %v1888 = vpop.f32.mrf.mxu0
        %v1889 = vadd.f32 0.0, %v1888
        %v1890 = vpop.f32.mrf.mxu0
        %v1891 = vadd.f32 0.0, %v1890
        %1892 = vmatmul.bf16.gmra.mxu0 %v1698
        %v1893 = vpop.f32.mrf.mxu0
        %v1894 = vadd.f32 0.0, %v1893
        %v1895 = vpop.f32.mrf.mxu0
        %v1896 = vadd.f32 0.0, %v1895
        %1897 = vmatmul.bf16.gmra.mxu0 %v1700
        %v1898 = vpop.f32.mrf.mxu0
        %v1899 = vadd.f32 0.0, %v1898
        %v1900 = vpop.f32.mrf.mxu0
        %v1901 = vadd.f32 0.0, %v1900
        %1902 = vmatmul.bf16.gmra.mxu0 %v1702
        %v1903 = vpop.f32.mrf.mxu0
        %v1904 = vadd.f32 0.0, %v1903
        %v1905 = vpop.f32.mrf.mxu0
        %v1906 = vadd.f32 0.0, %v1905
        %1907 = vmatmul.bf16.gmra.mxu0 %v1704
        %v1908 = vpop.f32.mrf.mxu0
        %v1909 = vadd.f32 0.0, %v1908
        %v1910 = vpop.f32.mrf.mxu0
        %v1911 = vadd.f32 0.0, %v1910
        %1912 = vmatmul.bf16.gmra.mxu0 %v1706
        %v1913 = vpop.f32.mrf.mxu0
        %v1914 = vadd.f32 0.0, %v1913
        %v1915 = vpop.f32.mrf.mxu0
        %v1916 = vadd.f32 0.0, %v1915
        %1917 = vmatmul.bf16.gmra.mxu0 %v1708
        %v1918 = vpop.f32.mrf.mxu0
        %v1919 = vadd.f32 0.0, %v1918
        %v1920 = vpop.f32.mrf.mxu0
        %v1921 = vadd.f32 0.0, %v1920
        %1922 = vmatmul.bf16.gmra.mxu0 %v1710
        %v1923 = vpop.f32.mrf.mxu0
        %v1924 = vadd.f32 0.0, %v1923
        %v1925 = vpop.f32.mrf.mxu0
        %v1926 = vadd.f32 0.0, %v1925
        %1927 = vmatmul.bf16.gmra.mxu0 %v1712
        %v1928 = vpop.f32.mrf.mxu0
        %v1929 = vadd.f32 0.0, %v1928
        %v1930 = vpop.f32.mrf.mxu0
        %v1931 = vadd.f32 0.0, %v1930
        %1932 = vmatmul.bf16.gmra.mxu0 %v1714
        %v1933 = vpop.f32.mrf.mxu0
        %v1934 = vadd.f32 0.0, %v1933
        %v1935 = vpop.f32.mrf.mxu0
        %v1936 = vadd.f32 0.0, %v1935
        %1937 = vmatmul.bf16.gmra.mxu0 %v1716
        %v1938 = vpop.f32.mrf.mxu0
        %v1939 = vadd.f32 0.0, %v1938
        %v1940 = vpop.f32.mrf.mxu0
        %v1941 = vadd.f32 0.0, %v1940
        %1942 = vdwg.mxu0
        %1943 = vmatpush.bf16.msra.mxu0 0
        %1944 = vmatpush.bf16.msra.mxu0 0
        %1945 = vmatpush.bf16.msra.mxu0 0
        %1946 = vmatpush.bf16.msra.mxu0 0
        %1947 = vmatpush.bf16.msra.mxu0 %v1793
        %1948 = vmatpush.bf16.msra.mxu0 %v1792
        %1949 = vmatpush.bf16.msra.mxu0 %v1791
        %1950 = vmatpush.bf16.msra.mxu0 %v1790
        %1951 = vmatmul.bf16.gmra.mxu0 %v1807
        %v1952 = vpop.f32.mrf.mxu0
        %v1953 = vadd.f32 %v1864, %v1952
        %v1954 = vpop.f32.mrf.mxu0
        %v1955 = vadd.f32 %v1866, %v1954
        %1956 = vmatmul.bf16.gmra.mxu0 %v1810
        %v1957 = vpop.f32.mrf.mxu0
        %v1958 = vadd.f32 %v1869, %v1957
        %v1959 = vpop.f32.mrf.mxu0
        %v1960 = vadd.f32 %v1871, %v1959
        %1961 = vmatmul.bf16.gmra.mxu0 %v1813
        %v1962 = vpop.f32.mrf.mxu0
        %v1963 = vadd.f32 %v1874, %v1962
        %v1964 = vpop.f32.mrf.mxu0
        %v1965 = vadd.f32 %v1876, %v1964
        %1966 = vmatmul.bf16.gmra.mxu0 %v1816
        %v1967 = vpop.f32.mrf.mxu0
        %v1968 = vadd.f32 %v1879, %v1967
        %v1969 = vpop.f32.mrf.mxu0
        %v1970 = vadd.f32 %v1881, %v1969
        %1971 = vmatmul.bf16.gmra.mxu0 %v1819
        %v1972 = vpop.f32.mrf.mxu0
        %v1973 = vadd.f32 %v1884, %v1972
        %v1974 = vpop.f32.mrf.mxu0
        %v1975 = vadd.f32 %v1886, %v1974
        %1976 = vmatmul.bf16.gmra.mxu0 %v1822
        %v1977 = vpop.f32.mrf.mxu0
        %v1978 = vadd.f32 %v1889, %v1977
        %v1979 = vpop.f32.mrf.mxu0
        %v1980 = vadd.f32 %v1891, %v1979
        %1981 = vmatmul.bf16.gmra.mxu0 %v1825
        %v1982 = vpop.f32.mrf.mxu0
        %v1983 = vadd.f32 %v1894, %v1982
        %v1984 = vpop.f32.mrf.mxu0
        %v1985 = vadd.f32 %v1896, %v1984
        %1986 = vmatmul.bf16.gmra.mxu0 %v1828
        %v1987 = vpop.f32.mrf.mxu0
        %v1988 = vadd.f32 %v1899, %v1987
        %v1989 = vpop.f32.mrf.mxu0
        %v1990 = vadd.f32 %v1901, %v1989
        %1991 = vmatmul.bf16.gmra.mxu0 %v1831
        %v1992 = vpop.f32.mrf.mxu0
        %v1993 = vadd.f32 %v1904, %v1992
        %v1994 = vpop.f32.mrf.mxu0
        %v1995 = vadd.f32 %v1906, %v1994
        %1996 = vmatmul.bf16.gmra.mxu0 %v1834
        %v1997 = vpop.f32.mrf.mxu0
        %v1998 = vadd.f32 %v1909, %v1997
        %v1999 = vpop.f32.mrf.mxu0
        %v2000 = vadd.f32 %v1911, %v1999
        %2001 = vmatmul.bf16.gmra.mxu0 %v1837
        %v2002 = vpop.f32.mrf.mxu0
        %v2003 = vadd.f32 %v1914, %v2002
        %v2004 = vpop.f32.mrf.mxu0
        %v2005 = vadd.f32 %v1916, %v2004
        %2006 = vmatmul.bf16.gmra.mxu0 %v1840
        %v2007 = vpop.f32.mrf.mxu0
        %v2008 = vadd.f32 %v1919, %v2007
        %v2009 = vpop.f32.mrf.mxu0
        %v2010 = vadd.f32 %v1921, %v2009
        %2011 = vmatmul.bf16.gmra.mxu0 %v1843
        %v2012 = vpop.f32.mrf.mxu0
        %v2013 = vadd.f32 %v1924, %v2012
        %v2014 = vpop.f32.mrf.mxu0
        %v2015 = vadd.f32 %v1926, %v2014
        %2016 = vmatmul.bf16.gmra.mxu0 %v1846
        %v2017 = vpop.f32.mrf.mxu0
        %v2018 = vadd.f32 %v1929, %v2017
        %v2019 = vpop.f32.mrf.mxu0
        %v2020 = vadd.f32 %v1931, %v2019
        %2021 = vmatmul.bf16.gmra.mxu0 %v1849
        %v2022 = vpop.f32.mrf.mxu0
        %v2023 = vadd.f32 %v1934, %v2022
        %v2024 = vpop.f32.mrf.mxu0
        %v2025 = vadd.f32 %v1936, %v2024
        %2026 = vmatmul.bf16.gmra.mxu0 %v1852
        %v2027 = vpop.f32.mrf.mxu0
        %v2028 = vadd.f32 %v1939, %v2027
        %v2029 = vpop.f32.mrf.mxu0
        %v2030 = vadd.f32 %v1941, %v2029
        %2031 = vdwg.mxu0
        %v2034 = vunpack.c.l.b16 %v1505
        %v2035 = vunpack.c.h.b16 %v1505
        %v2036 = vunpack.c.l.b16 %v1506
        %v2037 = vunpack.c.h.b16 %v1506
        %v2038 = vpack.c.b16 %v2036, %v2034
        %v2039 = vpack.c.b16 %v2037, %v2035
        %v2065 = vunpack.c.l.b16 %v1541
        %v2066 = vunpack.c.l.b16 %v1542
        %v2067 = vunpack.c.l.b16 %v1543
        %v2068 = vunpack.c.l.b16 %v1544
        %v2069 = vunpack.c.l.b16 %v1545
        %v2070 = vunpack.c.l.b16 %v1546
        %v2071 = vunpack.c.l.b16 %v1547
        %v2072 = vunpack.c.l.b16 %v1548
        %v2073 = vunpack.c.l.b16 %v1549
        %v2074 = vunpack.c.l.b16 %v1550
        %v2075 = vunpack.c.l.b16 %v1551
        %v2076 = vunpack.c.l.b16 %v1552
        %v2077 = vunpack.c.l.b16 %v1553
        %v2078 = vunpack.c.l.b16 %v1554
        %v2079 = vunpack.c.l.b16 %v1555
        %v2080 = vunpack.c.l.b16 %v1556
        %v2081 = vunpack.c.l.b16 %v1557
        %v2082 = vunpack.c.l.b16 %v1558
        %v2083 = vunpack.c.l.b16 %v1559
        %v2084 = vunpack.c.l.b16 %v1560
        %v2085 = vunpack.c.l.b16 %v1561
        %v2086 = vunpack.c.l.b16 %v1562
        %v2087 = vunpack.c.l.b16 %v1563
        %v2088 = vunpack.c.l.b16 %v1564
        %v2089 = vpack.c.b16 %v2066, %v2065
        %v2090 = vpack.c.b16 %v2068, %v2067
        %v2091 = vpack.c.b16 %v2070, %v2069
        %v2092 = vpack.c.b16 %v2072, %v2071
        %v2093 = vpack.c.b16 %v2074, %v2073
        %v2094 = vpack.c.b16 %v2076, %v2075
        %v2095 = vpack.c.b16 %v2078, %v2077
        %v2096 = vpack.c.b16 %v2080, %v2079
        %v2097 = vpack.c.b16 %v2082, %v2081
        %v2098 = vpack.c.b16 %v2084, %v2083
        %v2099 = vpack.c.b16 %v2086, %v2085
        %v2100 = vpack.c.b16 %v2088, %v2087
        %v2114 = vsel %vm1468, %v2039, 0
        %2116 = vmatpush.bf16.msra.mxu0 %v2096
        %2117 = vmatpush.bf16.msra.mxu0 %v2095
        %2118 = vmatpush.bf16.msra.mxu0 %v2094
        %2119 = vmatpush.bf16.msra.mxu0 %v2093
        %2120 = vmatpush.bf16.msra.mxu0 %v2092
        %2121 = vmatpush.bf16.msra.mxu0 %v2091
        %2122 = vmatpush.bf16.msra.mxu0 %v2090
        %2123 = vmatpush.bf16.msra.mxu0 %v2089
        %2124 = vmatmul.bf16.gmra.mxu0 %v2038
        %v2125 = vpop.f32.mrf.mxu0
        %v2126 = vadd.f32 %v1953, %v2125
        %v2127 = vpop.f32.mrf.mxu0
        %v2128 = vadd.f32 %v1955, %v2127
        %2129 = vmatmul.bf16.gmra.mxu0 %v1686
        %v2130 = vpop.f32.mrf.mxu0
        %v2131 = vadd.f32 %v1958, %v2130
        %v2132 = vpop.f32.mrf.mxu0
        %v2133 = vadd.f32 %v1960, %v2132
        %2134 = vmatmul.bf16.gmra.mxu0 %v1688
        %v2135 = vpop.f32.mrf.mxu0
        %v2136 = vadd.f32 %v1963, %v2135
        %v2137 = vpop.f32.mrf.mxu0
        %v2138 = vadd.f32 %v1965, %v2137
        %2139 = vmatmul.bf16.gmra.mxu0 %v1690
        %v2140 = vpop.f32.mrf.mxu0
        %v2141 = vadd.f32 %v1968, %v2140
        %v2142 = vpop.f32.mrf.mxu0
        %v2143 = vadd.f32 %v1970, %v2142
        %2144 = vmatmul.bf16.gmra.mxu0 %v1692
        %v2145 = vpop.f32.mrf.mxu0
        %v2146 = vadd.f32 %v1973, %v2145
        %v2147 = vpop.f32.mrf.mxu0
        %v2148 = vadd.f32 %v1975, %v2147
        %2149 = vmatmul.bf16.gmra.mxu0 %v1694
        %v2150 = vpop.f32.mrf.mxu0
        %v2151 = vadd.f32 %v1978, %v2150
        %v2152 = vpop.f32.mrf.mxu0
        %v2153 = vadd.f32 %v1980, %v2152
        %2154 = vmatmul.bf16.gmra.mxu0 %v1696
        %v2155 = vpop.f32.mrf.mxu0
        %v2156 = vadd.f32 %v1983, %v2155
        %v2157 = vpop.f32.mrf.mxu0
        %v2158 = vadd.f32 %v1985, %v2157
        %2159 = vmatmul.bf16.gmra.mxu0 %v1698
        %v2160 = vpop.f32.mrf.mxu0
        %v2161 = vadd.f32 %v1988, %v2160
        %v2162 = vpop.f32.mrf.mxu0
        %v2163 = vadd.f32 %v1990, %v2162
        %2164 = vmatmul.bf16.gmra.mxu0 %v1700
        %v2165 = vpop.f32.mrf.mxu0
        %v2166 = vadd.f32 %v1993, %v2165
        %v2167 = vpop.f32.mrf.mxu0
        %v2168 = vadd.f32 %v1995, %v2167
        %2169 = vmatmul.bf16.gmra.mxu0 %v1702
        %v2170 = vpop.f32.mrf.mxu0
        %v2171 = vadd.f32 %v1998, %v2170
        %v2172 = vpop.f32.mrf.mxu0
        %v2173 = vadd.f32 %v2000, %v2172
        %2174 = vmatmul.bf16.gmra.mxu0 %v1704
        %v2175 = vpop.f32.mrf.mxu0
        %v2176 = vadd.f32 %v2003, %v2175
        %v2177 = vpop.f32.mrf.mxu0
        %v2178 = vadd.f32 %v2005, %v2177
        %2179 = vmatmul.bf16.gmra.mxu0 %v1706
        %v2180 = vpop.f32.mrf.mxu0
        %v2181 = vadd.f32 %v2008, %v2180
        %v2182 = vpop.f32.mrf.mxu0
        %v2183 = vadd.f32 %v2010, %v2182
        %2184 = vmatmul.bf16.gmra.mxu0 %v1708
        %v2185 = vpop.f32.mrf.mxu0
        %v2186 = vadd.f32 %v2013, %v2185
        %v2187 = vpop.f32.mrf.mxu0
        %v2188 = vadd.f32 %v2015, %v2187
        %2189 = vmatmul.bf16.gmra.mxu0 %v1710
        %v2190 = vpop.f32.mrf.mxu0
        %v2191 = vadd.f32 %v2018, %v2190
        %v2192 = vpop.f32.mrf.mxu0
        %v2193 = vadd.f32 %v2020, %v2192
        %2194 = vmatmul.bf16.gmra.mxu0 %v1712
        %v2195 = vpop.f32.mrf.mxu0
        %v2196 = vadd.f32 %v2023, %v2195
        %v2197 = vpop.f32.mrf.mxu0
        %v2198 = vadd.f32 %v2025, %v2197
        %2199 = vmatmul.bf16.gmra.mxu0 %v1714
        %v2200 = vpop.f32.mrf.mxu0
        %v2201 = vadd.f32 %v2028, %v2200
        %v2202 = vpop.f32.mrf.mxu0
        %v2203 = vadd.f32 %v2030, %v2202
        %2204 = vdwg.mxu0
        %2205 = vmatpush.bf16.msra.mxu0 0
        %2206 = vmatpush.bf16.msra.mxu0 0
        %2207 = vmatpush.bf16.msra.mxu0 0
        %2208 = vmatpush.bf16.msra.mxu0 0
        %2209 = vmatpush.bf16.msra.mxu0 %v2100
        %2210 = vmatpush.bf16.msra.mxu0 %v2099
        %2211 = vmatpush.bf16.msra.mxu0 %v2098
        %2212 = vmatpush.bf16.msra.mxu0 %v2097
        %2213 = vmatmul.bf16.gmra.mxu0 %v2114
        %v2214 = vpop.f32.mrf.mxu0
        %v2215 = vadd.f32 %v2126, %v2214
        %v2216 = vpop.f32.mrf.mxu0
        %v2217 = vadd.f32 %v2128, %v2216
        %2218 = vmatmul.bf16.gmra.mxu0 %v1807
        %v2219 = vpop.f32.mrf.mxu0
        %v2220 = vadd.f32 %v2131, %v2219
        %v2221 = vpop.f32.mrf.mxu0
        %v2222 = vadd.f32 %v2133, %v2221
        %2223 = vmatmul.bf16.gmra.mxu0 %v1810
        %v2224 = vpop.f32.mrf.mxu0
        %v2225 = vadd.f32 %v2136, %v2224
        %v2226 = vpop.f32.mrf.mxu0
        %v2227 = vadd.f32 %v2138, %v2226
        %2228 = vmatmul.bf16.gmra.mxu0 %v1813
        %v2229 = vpop.f32.mrf.mxu0
        %v2230 = vadd.f32 %v2141, %v2229
        %v2231 = vpop.f32.mrf.mxu0
        %v2232 = vadd.f32 %v2143, %v2231
        %2233 = vmatmul.bf16.gmra.mxu0 %v1816
        %v2234 = vpop.f32.mrf.mxu0
        %v2235 = vadd.f32 %v2146, %v2234
        %v2236 = vpop.f32.mrf.mxu0
        %v2237 = vadd.f32 %v2148, %v2236
        %2238 = vmatmul.bf16.gmra.mxu0 %v1819
        %v2239 = vpop.f32.mrf.mxu0
        %v2240 = vadd.f32 %v2151, %v2239
        %v2241 = vpop.f32.mrf.mxu0
        %v2242 = vadd.f32 %v2153, %v2241
        %2243 = vmatmul.bf16.gmra.mxu0 %v1822
        %v2244 = vpop.f32.mrf.mxu0
        %v2245 = vadd.f32 %v2156, %v2244
        %v2246 = vpop.f32.mrf.mxu0
        %v2247 = vadd.f32 %v2158, %v2246
        %2248 = vmatmul.bf16.gmra.mxu0 %v1825
        %v2249 = vpop.f32.mrf.mxu0
        %v2250 = vadd.f32 %v2161, %v2249
        %v2251 = vpop.f32.mrf.mxu0
        %v2252 = vadd.f32 %v2163, %v2251
        %2253 = vmatmul.bf16.gmra.mxu0 %v1828
        %v2254 = vpop.f32.mrf.mxu0
        %v2255 = vadd.f32 %v2166, %v2254
        %v2256 = vpop.f32.mrf.mxu0
        %v2257 = vadd.f32 %v2168, %v2256
        %2258 = vmatmul.bf16.gmra.mxu0 %v1831
        %v2259 = vpop.f32.mrf.mxu0
        %v2260 = vadd.f32 %v2171, %v2259
        %v2261 = vpop.f32.mrf.mxu0
        %v2262 = vadd.f32 %v2173, %v2261
        %2263 = vmatmul.bf16.gmra.mxu0 %v1834
        %v2264 = vpop.f32.mrf.mxu0
        %v2265 = vadd.f32 %v2176, %v2264
        %v2266 = vpop.f32.mrf.mxu0
        %v2267 = vadd.f32 %v2178, %v2266
        %2268 = vmatmul.bf16.gmra.mxu0 %v1837
        %v2269 = vpop.f32.mrf.mxu0
        %v2270 = vadd.f32 %v2181, %v2269
        %v2271 = vpop.f32.mrf.mxu0
        %v2272 = vadd.f32 %v2183, %v2271
        %2273 = vmatmul.bf16.gmra.mxu0 %v1840
        %v2274 = vpop.f32.mrf.mxu0
        %v2275 = vadd.f32 %v2186, %v2274
        %v2276 = vpop.f32.mrf.mxu0
        %v2277 = vadd.f32 %v2188, %v2276
        %2278 = vmatmul.bf16.gmra.mxu0 %v1843
        %v2279 = vpop.f32.mrf.mxu0
        %v2280 = vadd.f32 %v2191, %v2279
        %v2281 = vpop.f32.mrf.mxu0
        %v2282 = vadd.f32 %v2193, %v2281
        %2283 = vmatmul.bf16.gmra.mxu0 %v1846
        %v2284 = vpop.f32.mrf.mxu0
        %v2285 = vadd.f32 %v2196, %v2284
        %v2286 = vpop.f32.mrf.mxu0
        %v2287 = vadd.f32 %v2198, %v2286
        %2288 = vmatmul.bf16.gmra.mxu0 %v1849
        %v2289 = vpop.f32.mrf.mxu0
        %v2290 = vadd.f32 %v2201, %v2289
        %v2291 = vpop.f32.mrf.mxu0
        %v2292 = vadd.f32 %v2203, %v2291
        %2293 = vdwg.mxu0
        %s2294 = scalar_lea.vmem %s4, 192
        %v2295 = vld [vmem:[%s2294] sm:$0xf]
        %v2296 = vld [vmem:[%s2294 + $0x4] sm:$0xf]
        %v2297 = vld [vmem:[%s2294 + $0x8] sm:$0xf]
        %v2298 = vld [vmem:[%s2294 + $0xc] sm:$0xf]
        %v2299 = vld [vmem:[%s2294 + $0x10] sm:$0xf]
        %v2300 = vld [vmem:[%s2294 + $0x14] sm:$0xf]
        %v2301 = vld [vmem:[%s2294 + $0x18] sm:$0xf]
        %v2302 = vld [vmem:[%s2294 + $0x1c] sm:$0xf]
        %v2303 = vld [vmem:[%s2294 + $0x20] sm:$0xf]
        %v2304 = vld [vmem:[%s2294 + $0x24] sm:$0xf]
        %v2305 = vld [vmem:[%s2294 + $0x28] sm:$0xf]
        %v2306 = vld [vmem:[%s2294 + $0x2c] sm:$0xf]
        %v2307 = vld [vmem:[%s2294 + $0x30] sm:$0xf]
        %v2308 = vld [vmem:[%s2294 + $0x34] sm:$0xf]
        %v2309 = vld [vmem:[%s2294 + $0x38] sm:$0xf]
        %v2310 = vld [vmem:[%s2294 + $0x3c] sm:$0xf]
        %v2311 = vld [vmem:[%s2294 + $0x40] sm:$0xf]
        %v2312 = vld [vmem:[%s2294 + $0x44] sm:$0xf]
        %v2313 = vld [vmem:[%s2294 + $0x48] sm:$0xf]
        %v2314 = vld [vmem:[%s2294 + $0x4c] sm:$0xf]
        %v2315 = vld [vmem:[%s2294 + $0x50] sm:$0xf]
        %v2316 = vld [vmem:[%s2294 + $0x54] sm:$0xf]
        %v2317 = vld [vmem:[%s2294 + $0x58] sm:$0xf]
        %v2318 = vld [vmem:[%s2294 + $0x5c] sm:$0xf]
        %v2321 = vunpack.c.l.b16 %v1539
        %v2322 = vunpack.c.h.b16 %v1539
        %v2323 = vunpack.c.l.b16 %v1540
        %v2324 = vunpack.c.h.b16 %v1540
        %v2325 = vpack.c.b16 %v2323, %v2321
        %v2326 = vpack.c.b16 %v2324, %v2322
        %v2352 = vunpack.c.l.b16 %v2295
        %v2353 = vunpack.c.l.b16 %v2296
        %v2354 = vunpack.c.l.b16 %v2297
        %v2355 = vunpack.c.l.b16 %v2298
        %v2356 = vunpack.c.l.b16 %v2299
        %v2357 = vunpack.c.l.b16 %v2300
        %v2358 = vunpack.c.l.b16 %v2301
        %v2359 = vunpack.c.l.b16 %v2302
        %v2360 = vunpack.c.l.b16 %v2303
        %v2361 = vunpack.c.l.b16 %v2304
        %v2362 = vunpack.c.l.b16 %v2305
        %v2363 = vunpack.c.l.b16 %v2306
        %v2364 = vunpack.c.l.b16 %v2307
        %v2365 = vunpack.c.l.b16 %v2308
        %v2366 = vunpack.c.l.b16 %v2309
        %v2367 = vunpack.c.l.b16 %v2310
        %v2368 = vunpack.c.l.b16 %v2311
        %v2369 = vunpack.c.l.b16 %v2312
        %v2370 = vunpack.c.l.b16 %v2313
        %v2371 = vunpack.c.l.b16 %v2314
        %v2372 = vunpack.c.l.b16 %v2315
        %v2373 = vunpack.c.l.b16 %v2316
        %v2374 = vunpack.c.l.b16 %v2317
        %v2375 = vunpack.c.l.b16 %v2318
        %v2376 = vpack.c.b16 %v2353, %v2352
        %v2377 = vpack.c.b16 %v2355, %v2354
        %v2378 = vpack.c.b16 %v2357, %v2356
        %v2379 = vpack.c.b16 %v2359, %v2358
        %v2380 = vpack.c.b16 %v2361, %v2360
        %v2381 = vpack.c.b16 %v2363, %v2362
        %v2382 = vpack.c.b16 %v2365, %v2364
        %v2383 = vpack.c.b16 %v2367, %v2366
        %v2384 = vpack.c.b16 %v2369, %v2368
        %v2385 = vpack.c.b16 %v2371, %v2370
        %v2386 = vpack.c.b16 %v2373, %v2372
        %v2387 = vpack.c.b16 %v2375, %v2374
        %v2401 = vsel %vm1468, %v2326, 0
        %2403 = vmatpush.bf16.msra.mxu0 %v2383
        %2404 = vmatpush.bf16.msra.mxu0 %v2382
        %2405 = vmatpush.bf16.msra.mxu0 %v2381
        %2406 = vmatpush.bf16.msra.mxu0 %v2380
        %2407 = vmatpush.bf16.msra.mxu0 %v2379
        %2408 = vmatpush.bf16.msra.mxu0 %v2378
        %2409 = vmatpush.bf16.msra.mxu0 %v2377
        %2410 = vmatpush.bf16.msra.mxu0 %v2376
        %2411 = vmatmul.bf16.gmra.mxu0 %v1688
        %v2412 = vpop.f32.mrf.mxu0
        %v2413 = vadd.f32 0.0, %v2412
        %v2414 = vpop.f32.mrf.mxu0
        %v2415 = vadd.f32 0.0, %v2414
        %2416 = vmatmul.bf16.gmra.mxu0 %v1690
        %v2417 = vpop.f32.mrf.mxu0
        %v2418 = vadd.f32 0.0, %v2417
        %v2419 = vpop.f32.mrf.mxu0
        %v2420 = vadd.f32 0.0, %v2419
        %2421 = vmatmul.bf16.gmra.mxu0 %v1692
        %v2422 = vpop.f32.mrf.mxu0
        %v2423 = vadd.f32 0.0, %v2422
        %v2424 = vpop.f32.mrf.mxu0
        %v2425 = vadd.f32 0.0, %v2424
        %2426 = vmatmul.bf16.gmra.mxu0 %v1694
        %v2427 = vpop.f32.mrf.mxu0
        %v2428 = vadd.f32 0.0, %v2427
        %v2429 = vpop.f32.mrf.mxu0
        %v2430 = vadd.f32 0.0, %v2429
        %2431 = vmatmul.bf16.gmra.mxu0 %v1696
        %v2432 = vpop.f32.mrf.mxu0
        %v2433 = vadd.f32 0.0, %v2432
        %v2434 = vpop.f32.mrf.mxu0
        %v2435 = vadd.f32 0.0, %v2434
        %2436 = vmatmul.bf16.gmra.mxu0 %v1698
        %v2437 = vpop.f32.mrf.mxu0
        %v2438 = vadd.f32 0.0, %v2437
        %v2439 = vpop.f32.mrf.mxu0
        %v2440 = vadd.f32 0.0, %v2439
        %2441 = vmatmul.bf16.gmra.mxu0 %v1700
        %v2442 = vpop.f32.mrf.mxu0
        %v2443 = vadd.f32 0.0, %v2442
        %v2444 = vpop.f32.mrf.mxu0
        %v2445 = vadd.f32 0.0, %v2444
        %2446 = vmatmul.bf16.gmra.mxu0 %v1702
        %v2447 = vpop.f32.mrf.mxu0
        %v2448 = vadd.f32 0.0, %v2447
        %v2449 = vpop.f32.mrf.mxu0
        %v2450 = vadd.f32 0.0, %v2449
        %2451 = vmatmul.bf16.gmra.mxu0 %v1704
        %v2452 = vpop.f32.mrf.mxu0
        %v2453 = vadd.f32 0.0, %v2452
        %v2454 = vpop.f32.mrf.mxu0
        %v2455 = vadd.f32 0.0, %v2454
        %2456 = vmatmul.bf16.gmra.mxu0 %v1706
        %v2457 = vpop.f32.mrf.mxu0
        %v2458 = vadd.f32 0.0, %v2457
        %v2459 = vpop.f32.mrf.mxu0
        %v2460 = vadd.f32 0.0, %v2459
        %2461 = vmatmul.bf16.gmra.mxu0 %v1708
        %v2462 = vpop.f32.mrf.mxu0
        %v2463 = vadd.f32 0.0, %v2462
        %v2464 = vpop.f32.mrf.mxu0
        %v2465 = vadd.f32 0.0, %v2464
        %2466 = vmatmul.bf16.gmra.mxu0 %v1710
        %v2467 = vpop.f32.mrf.mxu0
        %v2468 = vadd.f32 0.0, %v2467
        %v2469 = vpop.f32.mrf.mxu0
        %v2470 = vadd.f32 0.0, %v2469
        %2471 = vmatmul.bf16.gmra.mxu0 %v1712
        %v2472 = vpop.f32.mrf.mxu0
        %v2473 = vadd.f32 0.0, %v2472
        %v2474 = vpop.f32.mrf.mxu0
        %v2475 = vadd.f32 0.0, %v2474
        %2476 = vmatmul.bf16.gmra.mxu0 %v1714
        %v2477 = vpop.f32.mrf.mxu0
        %v2478 = vadd.f32 0.0, %v2477
        %v2479 = vpop.f32.mrf.mxu0
        %v2480 = vadd.f32 0.0, %v2479
        %2481 = vmatmul.bf16.gmra.mxu0 %v1716
        %v2482 = vpop.f32.mrf.mxu0
        %v2483 = vadd.f32 0.0, %v2482
        %v2484 = vpop.f32.mrf.mxu0
        %v2485 = vadd.f32 0.0, %v2484
        %2486 = vmatmul.bf16.gmra.mxu0 %v2325
        %v2487 = vpop.f32.mrf.mxu0
        %v2488 = vadd.f32 0.0, %v2487
        %v2489 = vpop.f32.mrf.mxu0
        %v2490 = vadd.f32 0.0, %v2489
        %2491 = vdwg.mxu0
        %2492 = vmatpush.bf16.msra.mxu0 0
        %2493 = vmatpush.bf16.msra.mxu0 0
        %2494 = vmatpush.bf16.msra.mxu0 0
        %2495 = vmatpush.bf16.msra.mxu0 0
        %2496 = vmatpush.bf16.msra.mxu0 %v2387
        %2497 = vmatpush.bf16.msra.mxu0 %v2386
        %2498 = vmatpush.bf16.msra.mxu0 %v2385
        %2499 = vmatpush.bf16.msra.mxu0 %v2384
        %2500 = vmatmul.bf16.gmra.mxu0 %v1810
        %v2501 = vpop.f32.mrf.mxu0
        %v2502 = vadd.f32 %v2413, %v2501
        %v2503 = vpop.f32.mrf.mxu0
        %v2504 = vadd.f32 %v2415, %v2503
        %2505 = vmatmul.bf16.gmra.mxu0 %v1813
        %v2506 = vpop.f32.mrf.mxu0
        %v2507 = vadd.f32 %v2418, %v2506
        %v2508 = vpop.f32.mrf.mxu0
        %v2509 = vadd.f32 %v2420, %v2508
        %2510 = vmatmul.bf16.gmra.mxu0 %v1816
        %v2511 = vpop.f32.mrf.mxu0
        %v2512 = vadd.f32 %v2423, %v2511
        %v2513 = vpop.f32.mrf.mxu0
        %v2514 = vadd.f32 %v2425, %v2513
        %2515 = vmatmul.bf16.gmra.mxu0 %v1819
        %v2516 = vpop.f32.mrf.mxu0
        %v2517 = vadd.f32 %v2428, %v2516
        %v2518 = vpop.f32.mrf.mxu0
        %v2519 = vadd.f32 %v2430, %v2518
        %2520 = vmatmul.bf16.gmra.mxu0 %v1822
        %v2521 = vpop.f32.mrf.mxu0
        %v2522 = vadd.f32 %v2433, %v2521
        %v2523 = vpop.f32.mrf.mxu0
        %v2524 = vadd.f32 %v2435, %v2523
        %2525 = vmatmul.bf16.gmra.mxu0 %v1825
        %v2526 = vpop.f32.mrf.mxu0
        %v2527 = vadd.f32 %v2438, %v2526
        %v2528 = vpop.f32.mrf.mxu0
        %v2529 = vadd.f32 %v2440, %v2528
        %2530 = vmatmul.bf16.gmra.mxu0 %v1828
        %v2531 = vpop.f32.mrf.mxu0
        %v2532 = vadd.f32 %v2443, %v2531
        %v2533 = vpop.f32.mrf.mxu0
        %v2534 = vadd.f32 %v2445, %v2533
        %2535 = vmatmul.bf16.gmra.mxu0 %v1831
        %v2536 = vpop.f32.mrf.mxu0
        %v2537 = vadd.f32 %v2448, %v2536
        %v2538 = vpop.f32.mrf.mxu0
        %v2539 = vadd.f32 %v2450, %v2538
        %2540 = vmatmul.bf16.gmra.mxu0 %v1834
        %v2541 = vpop.f32.mrf.mxu0
        %v2542 = vadd.f32 %v2453, %v2541
        %v2543 = vpop.f32.mrf.mxu0
        %v2544 = vadd.f32 %v2455, %v2543
        %2545 = vmatmul.bf16.gmra.mxu0 %v1837
        %v2546 = vpop.f32.mrf.mxu0
        %v2547 = vadd.f32 %v2458, %v2546
        %v2548 = vpop.f32.mrf.mxu0
        %v2549 = vadd.f32 %v2460, %v2548
        %2550 = vmatmul.bf16.gmra.mxu0 %v1840
        %v2551 = vpop.f32.mrf.mxu0
        %v2552 = vadd.f32 %v2463, %v2551
        %v2553 = vpop.f32.mrf.mxu0
        %v2554 = vadd.f32 %v2465, %v2553
        %2555 = vmatmul.bf16.gmra.mxu0 %v1843
        %v2556 = vpop.f32.mrf.mxu0
        %v2557 = vadd.f32 %v2468, %v2556
        %v2558 = vpop.f32.mrf.mxu0
        %v2559 = vadd.f32 %v2470, %v2558
        %2560 = vmatmul.bf16.gmra.mxu0 %v1846
        %v2561 = vpop.f32.mrf.mxu0
        %v2562 = vadd.f32 %v2473, %v2561
        %v2563 = vpop.f32.mrf.mxu0
        %v2564 = vadd.f32 %v2475, %v2563
        %2565 = vmatmul.bf16.gmra.mxu0 %v1849
        %v2566 = vpop.f32.mrf.mxu0
        %v2567 = vadd.f32 %v2478, %v2566
        %v2568 = vpop.f32.mrf.mxu0
        %v2569 = vadd.f32 %v2480, %v2568
        %2570 = vmatmul.bf16.gmra.mxu0 %v1852
        %v2571 = vpop.f32.mrf.mxu0
        %v2572 = vadd.f32 %v2483, %v2571
        %v2573 = vpop.f32.mrf.mxu0
        %v2574 = vadd.f32 %v2485, %v2573
        %2575 = vmatmul.bf16.gmra.mxu0 %v2401
        %v2576 = vpop.f32.mrf.mxu0
        %v2577 = vadd.f32 %v2488, %v2576
        %v2578 = vpop.f32.mrf.mxu0
        %v2579 = vadd.f32 %v2490, %v2578
        %2580 = vdwg.mxu0
        %v2581 = vadd.f32 %v2215, %v2502
        %v2582 = vadd.f32 %v2217, %v2504
        %v2583 = vadd.f32 %v2220, %v2507
        %v2584 = vadd.f32 %v2222, %v2509
        %v2585 = vadd.f32 %v2225, %v2512
        %v2586 = vadd.f32 %v2227, %v2514
        %v2587 = vadd.f32 %v2230, %v2517
        %v2588 = vadd.f32 %v2232, %v2519
        %v2589 = vadd.f32 %v2235, %v2522
        %v2590 = vadd.f32 %v2237, %v2524
        %v2591 = vadd.f32 %v2240, %v2527
        %v2592 = vadd.f32 %v2242, %v2529
        %v2593 = vadd.f32 %v2245, %v2532
        %v2594 = vadd.f32 %v2247, %v2534
        %v2595 = vadd.f32 %v2250, %v2537
        %v2596 = vadd.f32 %v2252, %v2539
        %v2597 = vadd.f32 %v2255, %v2542
        %v2598 = vadd.f32 %v2257, %v2544
        %v2599 = vadd.f32 %v2260, %v2547
        %v2600 = vadd.f32 %v2262, %v2549
        %v2601 = vadd.f32 %v2265, %v2552
        %v2602 = vadd.f32 %v2267, %v2554
        %v2603 = vadd.f32 %v2270, %v2557
        %v2604 = vadd.f32 %v2272, %v2559
        %v2605 = vadd.f32 %v2275, %v2562
        %v2606 = vadd.f32 %v2277, %v2564
        %v2607 = vadd.f32 %v2280, %v2567
        %v2608 = vadd.f32 %v2282, %v2569
        %v2609 = vadd.f32 %v2285, %v2572
        %v2610 = vadd.f32 %v2287, %v2574
        %v2611 = vadd.f32 %v2290, %v2577
        %v2612 = vadd.f32 %v2292, %v2579
        %v2613 = vld [vmem:[%s5] sm:$0x1]
        %v2615 = vperm.slane %v2613, 0
        %v2617 = vmul.f32 %v2581, %v2615
        %v2618 = vmul.f32 %v2582, %v2615
        %v2619 = vmul.f32 %v2583, %v2615
        %v2620 = vmul.f32 %v2584, %v2615
        %v2621 = vmul.f32 %v2585, %v2615
        %v2622 = vmul.f32 %v2586, %v2615
        %v2623 = vmul.f32 %v2587, %v2615
        %v2624 = vmul.f32 %v2588, %v2615
        %v2625 = vmul.f32 %v2589, %v2615
        %v2626 = vmul.f32 %v2590, %v2615
        %v2627 = vmul.f32 %v2591, %v2615
        %v2628 = vmul.f32 %v2592, %v2615
        %v2629 = vmul.f32 %v2593, %v2615
        %v2630 = vmul.f32 %v2594, %v2615
        %v2631 = vmul.f32 %v2595, %v2615
        %v2632 = vmul.f32 %v2596, %v2615
        %v2633 = vmul.f32 %v2597, %v2615
        %v2634 = vmul.f32 %v2598, %v2615
        %v2635 = vmul.f32 %v2599, %v2615
        %v2636 = vmul.f32 %v2600, %v2615
        %v2637 = vmul.f32 %v2601, %v2615
        %v2638 = vmul.f32 %v2602, %v2615
        %v2639 = vmul.f32 %v2603, %v2615
        %v2640 = vmul.f32 %v2604, %v2615
        %v2641 = vmul.f32 %v2605, %v2615
        %v2642 = vmul.f32 %v2606, %v2615
        %v2643 = vmul.f32 %v2607, %v2615
        %v2644 = vmul.f32 %v2608, %v2615
        %v2645 = vmul.f32 %v2609, %v2615
        %v2646 = vmul.f32 %v2610, %v2615
        %v2647 = vmul.f32 %v2611, %v2615
        %v2648 = vmul.f32 %v2612, %v2615
        %v2649 = vld [vmem:[%s6] sm:$0x1]
        %v2651 = vperm.slane %v2649, 0
        %v2653 = vadd.f32 %v2617, %v2651
        %v2654 = vadd.f32 %v2618, %v2651
        %v2655 = vadd.f32 %v2619, %v2651
        %v2656 = vadd.f32 %v2620, %v2651
        %v2657 = vadd.f32 %v2621, %v2651
        %v2658 = vadd.f32 %v2622, %v2651
        %v2659 = vadd.f32 %v2623, %v2651
        %v2660 = vadd.f32 %v2624, %v2651
        %v2661 = vadd.f32 %v2625, %v2651
        %v2662 = vadd.f32 %v2626, %v2651
        %v2663 = vadd.f32 %v2627, %v2651
        %v2664 = vadd.f32 %v2628, %v2651
        %v2665 = vadd.f32 %v2629, %v2651
        %v2666 = vadd.f32 %v2630, %v2651
        %v2667 = vadd.f32 %v2631, %v2651
        %v2668 = vadd.f32 %v2632, %v2651
        %v2669 = vadd.f32 %v2633, %v2651
        %v2670 = vadd.f32 %v2634, %v2651
        %v2671 = vadd.f32 %v2635, %v2651
        %v2672 = vadd.f32 %v2636, %v2651
        %v2673 = vadd.f32 %v2637, %v2651
        %v2674 = vadd.f32 %v2638, %v2651
        %v2675 = vadd.f32 %v2639, %v2651
        %v2676 = vadd.f32 %v2640, %v2651
        %v2677 = vadd.f32 %v2641, %v2651
        %v2678 = vadd.f32 %v2642, %v2651
        %v2679 = vadd.f32 %v2643, %v2651
        %v2680 = vadd.f32 %v2644, %v2651
        %v2681 = vadd.f32 %v2645, %v2651
        %v2682 = vadd.f32 %v2646, %v2651
        %v2683 = vadd.f32 %v2647, %v2651
        %v2684 = vadd.f32 %v2648, %v2651
        %v2685 = vmax.f32 %v2653, 0.0
        %v2686 = vmax.f32 %v2654, 0.0
        %v2687 = vmax.f32 %v2655, 0.0
        %v2688 = vmax.f32 %v2656, 0.0
        %v2689 = vmax.f32 %v2657, 0.0
        %v2690 = vmax.f32 %v2658, 0.0
        %v2691 = vmax.f32 %v2659, 0.0
        %v2692 = vmax.f32 %v2660, 0.0
        %v2693 = vmax.f32 %v2661, 0.0
        %v2694 = vmax.f32 %v2662, 0.0
        %v2695 = vmax.f32 %v2663, 0.0
        %v2696 = vmax.f32 %v2664, 0.0
        %v2697 = vmax.f32 %v2665, 0.0
        %v2698 = vmax.f32 %v2666, 0.0
        %v2699 = vmax.f32 %v2667, 0.0
        %v2700 = vmax.f32 %v2668, 0.0
        %v2701 = vmax.f32 %v2669, 0.0
        %v2702 = vmax.f32 %v2670, 0.0
        %v2703 = vmax.f32 %v2671, 0.0
        %v2704 = vmax.f32 %v2672, 0.0
        %v2705 = vmax.f32 %v2673, 0.0
        %v2706 = vmax.f32 %v2674, 0.0
        %v2707 = vmax.f32 %v2675, 0.0
        %v2708 = vmax.f32 %v2676, 0.0
        %v2709 = vmax.f32 %v2677, 0.0
        %v2710 = vmax.f32 %v2678, 0.0
        %v2711 = vmax.f32 %v2679, 0.0
        %v2712 = vmax.f32 %v2680, 0.0
        %v2713 = vmax.f32 %v2681, 0.0
        %v2714 = vmax.f32 %v2682, 0.0
        %v2715 = vmax.f32 %v2683, 0.0
        %v2716 = vmax.f32 %v2684, 0.0
        %v2717 = vpack.c.bf16 %v2686, %v2685
        %v2718 = vpack.c.bf16 %v2688, %v2687
        %v2719 = vpack.c.bf16 %v2690, %v2689
        %v2720 = vpack.c.bf16 %v2692, %v2691
        %v2721 = vpack.c.bf16 %v2694, %v2693
        %v2722 = vpack.c.bf16 %v2696, %v2695
        %v2723 = vpack.c.bf16 %v2698, %v2697
        %v2724 = vpack.c.bf16 %v2700, %v2699
        %v2725 = vpack.c.bf16 %v2702, %v2701
        %v2726 = vpack.c.bf16 %v2704, %v2703
        %v2727 = vpack.c.bf16 %v2706, %v2705
        %v2728 = vpack.c.bf16 %v2708, %v2707
        %v2729 = vpack.c.bf16 %v2710, %v2709
        %v2730 = vpack.c.bf16 %v2712, %v2711
        %v2731 = vpack.c.bf16 %v2714, %v2713
        %v2732 = vpack.c.bf16 %v2716, %v2715
        %v2733 = vld [vmem:[%s7] sm:$0xff]
        %v2734 = vld [vmem:[%s7 + $0x8] sm:$0xff]
        %v2735 = vld [vmem:[%s7 + $0x10] sm:$0xff]
        %v2736 = vld [vmem:[%s7 + $0x18] sm:$0xff]
        %v2737 = vld [vmem:[%s7 + $0x20] sm:$0xff]
        %v2738 = vld [vmem:[%s7 + $0x28] sm:$0xff]
        %v2739 = vld [vmem:[%s7 + $0x30] sm:$0xff]
        %v2740 = vld [vmem:[%s7 + $0x38] sm:$0xff]
        %v2749 = vunpack.c.l.b16 %v2733
        %v2750 = vunpack.c.h.b16 %v2733
        %v2751 = vunpack.c.l.b16 %v2734
        %v2752 = vunpack.c.h.b16 %v2734
        %v2753 = vunpack.c.l.b16 %v2735
        %v2754 = vunpack.c.h.b16 %v2735
        %v2755 = vunpack.c.l.b16 %v2736
        %v2756 = vunpack.c.h.b16 %v2736
        %v2757 = vunpack.c.l.b16 %v2737
        %v2758 = vunpack.c.h.b16 %v2737
        %v2759 = vunpack.c.l.b16 %v2738
        %v2760 = vunpack.c.h.b16 %v2738
        %v2761 = vunpack.c.l.b16 %v2739
        %v2762 = vunpack.c.h.b16 %v2739
        %v2763 = vunpack.c.l.b16 %v2740
        %v2764 = vunpack.c.h.b16 %v2740
        %v2765 = vpack.c.b16 %v2751, %v2749
        %v2766 = vpack.c.b16 %v2752, %v2750
        %v2767 = vpack.c.b16 %v2755, %v2753
        %v2768 = vpack.c.b16 %v2756, %v2754
        %v2769 = vpack.c.b16 %v2759, %v2757
        %v2770 = vpack.c.b16 %v2760, %v2758
        %v2771 = vpack.c.b16 %v2763, %v2761
        %v2772 = vpack.c.b16 %v2764, %v2762
        %v2782 = vsel %vm1468, %v2717, 0
        %v2785 = vsel %vm1468, %v2718, 0
        %v2788 = vsel %vm1468, %v2719, 0
        %v2791 = vsel %vm1468, %v2720, 0
        %v2794 = vsel %vm1468, %v2721, 0
        %v2797 = vsel %vm1468, %v2722, 0
        %v2800 = vsel %vm1468, %v2723, 0
        %v2803 = vsel %vm1468, %v2724, 0
        %v2806 = vsel %vm1468, %v2725, 0
        %v2809 = vsel %vm1468, %v2726, 0
        %v2812 = vsel %vm1468, %v2727, 0
        %v2815 = vsel %vm1468, %v2728, 0
        %v2818 = vsel %vm1468, %v2729, 0
        %v2821 = vsel %vm1468, %v2730, 0
        %v2824 = vsel %vm1468, %v2731, 0
        %v2827 = vsel %vm1468, %v2732, 0
        %2829 = vmatpush.bf16.msra.mxu0 0
        %2830 = vmatpush.bf16.msra.mxu0 0
        %2831 = vmatpush.bf16.msra.mxu0 0
        %2832 = vmatpush.bf16.msra.mxu0 0
        %2833 = vmatpush.bf16.msra.mxu0 %v2771
        %2834 = vmatpush.bf16.msra.mxu0 %v2769
        %2835 = vmatpush.bf16.msra.mxu0 %v2767
        %2836 = vmatpush.bf16.msra.mxu0 %v2765
        %2837 = vmatmul.bf16.gmra.mxu0 %v2782
        %v2838 = vpop.f32.mrf.mxu0
        %v2839 = vadd.f32 0.0, %v2838
        %v2840 = vpop.f32.mrf.mxu0
        %v2841 = vadd.f32 0.0, %v2840
        %2842 = vmatmul.bf16.gmra.mxu0 %v2785
        %v2843 = vpop.f32.mrf.mxu0
        %v2844 = vadd.f32 0.0, %v2843
        %v2845 = vpop.f32.mrf.mxu0
        %v2846 = vadd.f32 0.0, %v2845
        %2847 = vmatmul.bf16.gmra.mxu0 %v2788
        %v2848 = vpop.f32.mrf.mxu0
        %v2849 = vadd.f32 0.0, %v2848
        %v2850 = vpop.f32.mrf.mxu0
        %v2851 = vadd.f32 0.0, %v2850
        %2852 = vmatmul.bf16.gmra.mxu0 %v2791
        %v2853 = vpop.f32.mrf.mxu0
        %v2854 = vadd.f32 0.0, %v2853
        %v2855 = vpop.f32.mrf.mxu0
        %v2856 = vadd.f32 0.0, %v2855
        %2857 = vmatmul.bf16.gmra.mxu0 %v2794
        %v2858 = vpop.f32.mrf.mxu0
        %v2859 = vadd.f32 0.0, %v2858
        %v2860 = vpop.f32.mrf.mxu0
        %v2861 = vadd.f32 0.0, %v2860
        %2862 = vmatmul.bf16.gmra.mxu0 %v2797
        %v2863 = vpop.f32.mrf.mxu0
        %v2864 = vadd.f32 0.0, %v2863
        %v2865 = vpop.f32.mrf.mxu0
        %v2866 = vadd.f32 0.0, %v2865
        %2867 = vmatmul.bf16.gmra.mxu0 %v2800
        %v2868 = vpop.f32.mrf.mxu0
        %v2869 = vadd.f32 0.0, %v2868
        %v2870 = vpop.f32.mrf.mxu0
        %v2871 = vadd.f32 0.0, %v2870
        %2872 = vmatmul.bf16.gmra.mxu0 %v2803
        %v2873 = vpop.f32.mrf.mxu0
        %v2874 = vadd.f32 0.0, %v2873
        %v2875 = vpop.f32.mrf.mxu0
        %v2876 = vadd.f32 0.0, %v2875
        %2877 = vmatmul.bf16.gmra.mxu0 %v2806
        %v2878 = vpop.f32.mrf.mxu0
        %v2879 = vadd.f32 0.0, %v2878
        %v2880 = vpop.f32.mrf.mxu0
        %v2881 = vadd.f32 0.0, %v2880
        %2882 = vmatmul.bf16.gmra.mxu0 %v2809
        %v2883 = vpop.f32.mrf.mxu0
        %v2884 = vadd.f32 0.0, %v2883
        %v2885 = vpop.f32.mrf.mxu0
        %v2886 = vadd.f32 0.0, %v2885
        %2887 = vmatmul.bf16.gmra.mxu0 %v2812
        %v2888 = vpop.f32.mrf.mxu0
        %v2889 = vadd.f32 0.0, %v2888
        %v2890 = vpop.f32.mrf.mxu0
        %v2891 = vadd.f32 0.0, %v2890
        %2892 = vmatmul.bf16.gmra.mxu0 %v2815
        %v2893 = vpop.f32.mrf.mxu0
        %v2894 = vadd.f32 0.0, %v2893
        %v2895 = vpop.f32.mrf.mxu0
        %v2896 = vadd.f32 0.0, %v2895
        %2897 = vmatmul.bf16.gmra.mxu0 %v2818
        %v2898 = vpop.f32.mrf.mxu0
        %v2899 = vadd.f32 0.0, %v2898
        %v2900 = vpop.f32.mrf.mxu0
        %v2901 = vadd.f32 0.0, %v2900
        %2902 = vmatmul.bf16.gmra.mxu0 %v2821
        %v2903 = vpop.f32.mrf.mxu0
        %v2904 = vadd.f32 0.0, %v2903
        %v2905 = vpop.f32.mrf.mxu0
        %v2906 = vadd.f32 0.0, %v2905
        %2907 = vmatmul.bf16.gmra.mxu0 %v2824
        %v2908 = vpop.f32.mrf.mxu0
        %v2909 = vadd.f32 0.0, %v2908
        %v2910 = vpop.f32.mrf.mxu0
        %v2911 = vadd.f32 0.0, %v2910
        %2912 = vmatmul.bf16.gmra.mxu0 %v2827
        %v2913 = vpop.f32.mrf.mxu0
        %v2914 = vadd.f32 0.0, %v2913
        %v2915 = vpop.f32.mrf.mxu0
        %v2916 = vadd.f32 0.0, %v2915
        %2917 = vdwg.mxu0
        %2918 = vmatpush.bf16.msra.mxu0 0
        %2919 = vmatpush.bf16.msra.mxu0 0
        %2920 = vmatpush.bf16.msra.mxu0 0
        %2921 = vmatpush.bf16.msra.mxu0 0
        %2922 = vmatpush.bf16.msra.mxu0 %v2772
        %2923 = vmatpush.bf16.msra.mxu0 %v2770
        %2924 = vmatpush.bf16.msra.mxu0 %v2768
        %2925 = vmatpush.bf16.msra.mxu0 %v2766
        %2926 = vmatmul.bf16.gmra.mxu0 %v2782
        %v2927 = vpop.f32.mrf.mxu0
        %v2928 = vadd.f32 0.0, %v2927
        %v2929 = vpop.f32.mrf.mxu0
        %v2930 = vadd.f32 0.0, %v2929
        %2931 = vmatmul.bf16.gmra.mxu0 %v2785
        %v2932 = vpop.f32.mrf.mxu0
        %v2933 = vadd.f32 0.0, %v2932
        %v2934 = vpop.f32.mrf.mxu0
        %v2935 = vadd.f32 0.0, %v2934
        %2936 = vmatmul.bf16.gmra.mxu0 %v2788
        %v2937 = vpop.f32.mrf.mxu0
        %v2938 = vadd.f32 0.0, %v2937
        %v2939 = vpop.f32.mrf.mxu0
        %v2940 = vadd.f32 0.0, %v2939
        %2941 = vmatmul.bf16.gmra.mxu0 %v2791
        %v2942 = vpop.f32.mrf.mxu0
        %v2943 = vadd.f32 0.0, %v2942
        %v2944 = vpop.f32.mrf.mxu0
        %v2945 = vadd.f32 0.0, %v2944
        %2946 = vmatmul.bf16.gmra.mxu0 %v2794
        %v2947 = vpop.f32.mrf.mxu0
        %v2948 = vadd.f32 0.0, %v2947
        %v2949 = vpop.f32.mrf.mxu0
        %v2950 = vadd.f32 0.0, %v2949
        %2951 = vmatmul.bf16.gmra.mxu0 %v2797
        %v2952 = vpop.f32.mrf.mxu0
        %v2953 = vadd.f32 0.0, %v2952
        %v2954 = vpop.f32.mrf.mxu0
        %v2955 = vadd.f32 0.0, %v2954
        %2956 = vmatmul.bf16.gmra.mxu0 %v2800
        %v2957 = vpop.f32.mrf.mxu0
        %v2958 = vadd.f32 0.0, %v2957
        %v2959 = vpop.f32.mrf.mxu0
        %v2960 = vadd.f32 0.0, %v2959
        %2961 = vmatmul.bf16.gmra.mxu0 %v2803
        %v2962 = vpop.f32.mrf.mxu0
        %v2963 = vadd.f32 0.0, %v2962
        %v2964 = vpop.f32.mrf.mxu0
        %v2965 = vadd.f32 0.0, %v2964
        %2966 = vmatmul.bf16.gmra.mxu0 %v2806
        %v2967 = vpop.f32.mrf.mxu0
        %v2968 = vadd.f32 0.0, %v2967
        %v2969 = vpop.f32.mrf.mxu0
        %v2970 = vadd.f32 0.0, %v2969
        %2971 = vmatmul.bf16.gmra.mxu0 %v2809
        %v2972 = vpop.f32.mrf.mxu0
        %v2973 = vadd.f32 0.0, %v2972
        %v2974 = vpop.f32.mrf.mxu0
        %v2975 = vadd.f32 0.0, %v2974
        %2976 = vmatmul.bf16.gmra.mxu0 %v2812
        %v2977 = vpop.f32.mrf.mxu0
        %v2978 = vadd.f32 0.0, %v2977
        %v2979 = vpop.f32.mrf.mxu0
        %v2980 = vadd.f32 0.0, %v2979
        %2981 = vmatmul.bf16.gmra.mxu0 %v2815
        %v2982 = vpop.f32.mrf.mxu0
        %v2983 = vadd.f32 0.0, %v2982
        %v2984 = vpop.f32.mrf.mxu0
        %v2985 = vadd.f32 0.0, %v2984
        %2986 = vmatmul.bf16.gmra.mxu0 %v2818
        %v2987 = vpop.f32.mrf.mxu0
        %v2988 = vadd.f32 0.0, %v2987
        %v2989 = vpop.f32.mrf.mxu0
        %v2990 = vadd.f32 0.0, %v2989
        %2991 = vmatmul.bf16.gmra.mxu0 %v2821
        %v2992 = vpop.f32.mrf.mxu0
        %v2993 = vadd.f32 0.0, %v2992
        %v2994 = vpop.f32.mrf.mxu0
        %v2995 = vadd.f32 0.0, %v2994
        %2996 = vmatmul.bf16.gmra.mxu0 %v2824
        %v2997 = vpop.f32.mrf.mxu0
        %v2998 = vadd.f32 0.0, %v2997
        %v2999 = vpop.f32.mrf.mxu0
        %v3000 = vadd.f32 0.0, %v2999
        %3001 = vmatmul.bf16.gmra.mxu0 %v2827
        %v3002 = vpop.f32.mrf.mxu0
        %v3003 = vadd.f32 0.0, %v3002
        %v3004 = vpop.f32.mrf.mxu0
        %v3005 = vadd.f32 0.0, %v3004
        %3006 = vdwg.mxu0
        %v3007 = vld [vmem:[%s8] sm:$0x3]
        %v3009 = vperm.slane %v3007, 0
        %v3010 = vperm.slane %v3007, 1
        %v3013 = vmul.f32 %v2839, %v3009
        %v3014 = vmul.f32 %v2928, %v3010
        %v3015 = vmul.f32 %v2841, %v3009
        %v3016 = vmul.f32 %v2930, %v3010
        %v3017 = vmul.f32 %v2844, %v3009
        %v3018 = vmul.f32 %v2933, %v3010
        %v3019 = vmul.f32 %v2846, %v3009
        %v3020 = vmul.f32 %v2935, %v3010
        %v3021 = vmul.f32 %v2849, %v3009
        %v3022 = vmul.f32 %v2938, %v3010
        %v3023 = vmul.f32 %v2851, %v3009
        %v3024 = vmul.f32 %v2940, %v3010
        %v3025 = vmul.f32 %v2854, %v3009
        %v3026 = vmul.f32 %v2943, %v3010
        %v3027 = vmul.f32 %v2856, %v3009
        %v3028 = vmul.f32 %v2945, %v3010
        %v3029 = vmul.f32 %v2859, %v3009
        %v3030 = vmul.f32 %v2948, %v3010
        %v3031 = vmul.f32 %v2861, %v3009
        %v3032 = vmul.f32 %v2950, %v3010
        %v3033 = vmul.f32 %v2864, %v3009
        %v3034 = vmul.f32 %v2953, %v3010
        %v3035 = vmul.f32 %v2866, %v3009
        %v3036 = vmul.f32 %v2955, %v3010
        %v3037 = vmul.f32 %v2869, %v3009
        %v3038 = vmul.f32 %v2958, %v3010
        %v3039 = vmul.f32 %v2871, %v3009
        %v3040 = vmul.f32 %v2960, %v3010
        %v3041 = vmul.f32 %v2874, %v3009
        %v3042 = vmul.f32 %v2963, %v3010
        %v3043 = vmul.f32 %v2876, %v3009
        %v3044 = vmul.f32 %v2965, %v3010
        %v3045 = vmul.f32 %v2879, %v3009
        %v3046 = vmul.f32 %v2968, %v3010
        %v3047 = vmul.f32 %v2881, %v3009
        %v3048 = vmul.f32 %v2970, %v3010
        %v3049 = vmul.f32 %v2884, %v3009
        %v3050 = vmul.f32 %v2973, %v3010
        %v3051 = vmul.f32 %v2886, %v3009
        %v3052 = vmul.f32 %v2975, %v3010
        %v3053 = vmul.f32 %v2889, %v3009
        %v3054 = vmul.f32 %v2978, %v3010
        %v3055 = vmul.f32 %v2891, %v3009
        %v3056 = vmul.f32 %v2980, %v3010
        %v3057 = vmul.f32 %v2894, %v3009
        %v3058 = vmul.f32 %v2983, %v3010
        %v3059 = vmul.f32 %v2896, %v3009
        %v3060 = vmul.f32 %v2985, %v3010
        %v3061 = vmul.f32 %v2899, %v3009
        %v3062 = vmul.f32 %v2988, %v3010
        %v3063 = vmul.f32 %v2901, %v3009
        %v3064 = vmul.f32 %v2990, %v3010
        %v3065 = vmul.f32 %v2904, %v3009
        %v3066 = vmul.f32 %v2993, %v3010
        %v3067 = vmul.f32 %v2906, %v3009
        %v3068 = vmul.f32 %v2995, %v3010
        %v3069 = vmul.f32 %v2909, %v3009
        %v3070 = vmul.f32 %v2998, %v3010
        %v3071 = vmul.f32 %v2911, %v3009
        %v3072 = vmul.f32 %v3000, %v3010
        %v3073 = vmul.f32 %v2914, %v3009
        %v3074 = vmul.f32 %v3003, %v3010
        %v3075 = vmul.f32 %v2916, %v3009
        %v3076 = vmul.f32 %v3005, %v3010
        %v3077 = vld [vmem:[%s9] sm:$0x3]
        %v3079 = vperm.slane %v3077, 0
        %v3080 = vperm.slane %v3077, 1
        %v3083 = vadd.f32 %v3013, %v3079
        %v3084 = vadd.f32 %v3014, %v3080
        %v3085 = vadd.f32 %v3015, %v3079
        %v3086 = vadd.f32 %v3016, %v3080
        %v3087 = vadd.f32 %v3017, %v3079
        %v3088 = vadd.f32 %v3018, %v3080
        %v3089 = vadd.f32 %v3019, %v3079
        %v3090 = vadd.f32 %v3020, %v3080
        %v3091 = vadd.f32 %v3021, %v3079
        %v3092 = vadd.f32 %v3022, %v3080
        %v3093 = vadd.f32 %v3023, %v3079
        %v3094 = vadd.f32 %v3024, %v3080
        %v3095 = vadd.f32 %v3025, %v3079
        %v3096 = vadd.f32 %v3026, %v3080
        %v3097 = vadd.f32 %v3027, %v3079
        %v3098 = vadd.f32 %v3028, %v3080
        %v3099 = vadd.f32 %v3029, %v3079
        %v3100 = vadd.f32 %v3030, %v3080
        %v3101 = vadd.f32 %v3031, %v3079
        %v3102 = vadd.f32 %v3032, %v3080
        %v3103 = vadd.f32 %v3033, %v3079
        %v3104 = vadd.f32 %v3034, %v3080
        %v3105 = vadd.f32 %v3035, %v3079
        %v3106 = vadd.f32 %v3036, %v3080
        %v3107 = vadd.f32 %v3037, %v3079
        %v3108 = vadd.f32 %v3038, %v3080
        %v3109 = vadd.f32 %v3039, %v3079
        %v3110 = vadd.f32 %v3040, %v3080
        %v3111 = vadd.f32 %v3041, %v3079
        %v3112 = vadd.f32 %v3042, %v3080
        %v3113 = vadd.f32 %v3043, %v3079
        %v3114 = vadd.f32 %v3044, %v3080
        %v3115 = vadd.f32 %v3045, %v3079
        %v3116 = vadd.f32 %v3046, %v3080
        %v3117 = vadd.f32 %v3047, %v3079
        %v3118 = vadd.f32 %v3048, %v3080
        %v3119 = vadd.f32 %v3049, %v3079
        %v3120 = vadd.f32 %v3050, %v3080
        %v3121 = vadd.f32 %v3051, %v3079
        %v3122 = vadd.f32 %v3052, %v3080
        %v3123 = vadd.f32 %v3053, %v3079
        %v3124 = vadd.f32 %v3054, %v3080
        %v3125 = vadd.f32 %v3055, %v3079
        %v3126 = vadd.f32 %v3056, %v3080
        %v3127 = vadd.f32 %v3057, %v3079
        %v3128 = vadd.f32 %v3058, %v3080
        %v3129 = vadd.f32 %v3059, %v3079
        %v3130 = vadd.f32 %v3060, %v3080
        %v3131 = vadd.f32 %v3061, %v3079
        %v3132 = vadd.f32 %v3062, %v3080
        %v3133 = vadd.f32 %v3063, %v3079
        %v3134 = vadd.f32 %v3064, %v3080
        %v3135 = vadd.f32 %v3065, %v3079
        %v3136 = vadd.f32 %v3066, %v3080
        %v3137 = vadd.f32 %v3067, %v3079
        %v3138 = vadd.f32 %v3068, %v3080
        %v3139 = vadd.f32 %v3069, %v3079
        %v3140 = vadd.f32 %v3070, %v3080
        %v3141 = vadd.f32 %v3071, %v3079
        %v3142 = vadd.f32 %v3072, %v3080
        %v3143 = vadd.f32 %v3073, %v3079
        %v3144 = vadd.f32 %v3074, %v3080
        %v3145 = vadd.f32 %v3075, %v3079
        %v3146 = vadd.f32 %v3076, %v3080
        %v3147 = vunpack.c.l.bf16 %v402
        %v3148 = vunpack.c.h.bf16 %v402
        %v3149 = vunpack.c.l.bf16 %v403
        %v3150 = vunpack.c.h.bf16 %v403
        %v3151 = vunpack.c.l.bf16 %v404
        %v3152 = vunpack.c.h.bf16 %v404
        %v3153 = vunpack.c.l.bf16 %v405
        %v3154 = vunpack.c.h.bf16 %v405
        %v3155 = vunpack.c.l.bf16 %v406
        %v3156 = vunpack.c.h.bf16 %v406
        %v3157 = vunpack.c.l.bf16 %v407
        %v3158 = vunpack.c.h.bf16 %v407
        %v3159 = vunpack.c.l.bf16 %v408
        %v3160 = vunpack.c.h.bf16 %v408
        %v3161 = vunpack.c.l.bf16 %v409
        %v3162 = vunpack.c.h.bf16 %v409
        %v3163 = vunpack.c.l.bf16 %v410
        %v3164 = vunpack.c.h.bf16 %v410
        %v3165 = vunpack.c.l.bf16 %v411
        %v3166 = vunpack.c.h.bf16 %v411
        %v3167 = vunpack.c.l.bf16 %v412
        %v3168 = vunpack.c.h.bf16 %v412
        %v3169 = vunpack.c.l.bf16 %v413
        %v3170 = vunpack.c.h.bf16 %v413
        %v3171 = vunpack.c.l.bf16 %v414
        %v3172 = vunpack.c.h.bf16 %v414
        %v3173 = vunpack.c.l.bf16 %v415
        %v3174 = vunpack.c.h.bf16 %v415
        %v3175 = vunpack.c.l.bf16 %v416
        %v3176 = vunpack.c.h.bf16 %v416
        %v3177 = vunpack.c.l.bf16 %v417
        %v3178 = vunpack.c.h.bf16 %v417
        %v3179 = vunpack.c.l.bf16 %v418
        %v3180 = vunpack.c.h.bf16 %v418
        %v3181 = vunpack.c.l.bf16 %v419
        %v3182 = vunpack.c.h.bf16 %v419
        %v3183 = vunpack.c.l.bf16 %v420
        %v3184 = vunpack.c.h.bf16 %v420
        %v3185 = vunpack.c.l.bf16 %v421
        %v3186 = vunpack.c.h.bf16 %v421
        %v3187 = vunpack.c.l.bf16 %v422
        %v3188 = vunpack.c.h.bf16 %v422
        %v3189 = vunpack.c.l.bf16 %v423
        %v3190 = vunpack.c.h.bf16 %v423
        %v3191 = vunpack.c.l.bf16 %v424
        %v3192 = vunpack.c.h.bf16 %v424
        %v3193 = vunpack.c.l.bf16 %v425
        %v3194 = vunpack.c.h.bf16 %v425
        %v3195 = vunpack.c.l.bf16 %v426
        %v3196 = vunpack.c.h.bf16 %v426
        %v3197 = vunpack.c.l.bf16 %v427
        %v3198 = vunpack.c.h.bf16 %v427
        %v3199 = vunpack.c.l.bf16 %v428
        %v3200 = vunpack.c.h.bf16 %v428
        %v3201 = vunpack.c.l.bf16 %v429
        %v3202 = vunpack.c.h.bf16 %v429
        %v3203 = vunpack.c.l.bf16 %v430
        %v3204 = vunpack.c.h.bf16 %v430
        %v3205 = vunpack.c.l.bf16 %v431
        %v3206 = vunpack.c.h.bf16 %v431
        %v3207 = vunpack.c.l.bf16 %v432
        %v3208 = vunpack.c.h.bf16 %v432
        %v3209 = vunpack.c.l.bf16 %v433
        %v3210 = vunpack.c.h.bf16 %v433
        %v3211 = vadd.f32 %v3083, %v3147
        %v3212 = vadd.f32 %v3084, %v3148
        %v3213 = vadd.f32 %v3085, %v3149
        %v3214 = vadd.f32 %v3086, %v3150
        %v3215 = vadd.f32 %v3087, %v3151
        %v3216 = vadd.f32 %v3088, %v3152
        %v3217 = vadd.f32 %v3089, %v3153
        %v3218 = vadd.f32 %v3090, %v3154
        %v3219 = vadd.f32 %v3091, %v3155
        %v3220 = vadd.f32 %v3092, %v3156
        %v3221 = vadd.f32 %v3093, %v3157
        %v3222 = vadd.f32 %v3094, %v3158
        %v3223 = vadd.f32 %v3095, %v3159
        %v3224 = vadd.f32 %v3096, %v3160
        %v3225 = vadd.f32 %v3097, %v3161
        %v3226 = vadd.f32 %v3098, %v3162
        %v3227 = vadd.f32 %v3099, %v3163
        %v3228 = vadd.f32 %v3100, %v3164
        %v3229 = vadd.f32 %v3101, %v3165
        %v3230 = vadd.f32 %v3102, %v3166
        %v3231 = vadd.f32 %v3103, %v3167
        %v3232 = vadd.f32 %v3104, %v3168
        %v3233 = vadd.f32 %v3105, %v3169
        %v3234 = vadd.f32 %v3106, %v3170
        %v3235 = vadd.f32 %v3107, %v3171
        %v3236 = vadd.f32 %v3108, %v3172
        %v3237 = vadd.f32 %v3109, %v3173
        %v3238 = vadd.f32 %v3110, %v3174
        %v3239 = vadd.f32 %v3111, %v3175
        %v3240 = vadd.f32 %v3112, %v3176
        %v3241 = vadd.f32 %v3113, %v3177
        %v3242 = vadd.f32 %v3114, %v3178
        %v3243 = vadd.f32 %v3115, %v3179
        %v3244 = vadd.f32 %v3116, %v3180
        %v3245 = vadd.f32 %v3117, %v3181
        %v3246 = vadd.f32 %v3118, %v3182
        %v3247 = vadd.f32 %v3119, %v3183
        %v3248 = vadd.f32 %v3120, %v3184
        %v3249 = vadd.f32 %v3121, %v3185
        %v3250 = vadd.f32 %v3122, %v3186
        %v3251 = vadd.f32 %v3123, %v3187
        %v3252 = vadd.f32 %v3124, %v3188
        %v3253 = vadd.f32 %v3125, %v3189
        %v3254 = vadd.f32 %v3126, %v3190
        %v3255 = vadd.f32 %v3127, %v3191
        %v3256 = vadd.f32 %v3128, %v3192
        %v3257 = vadd.f32 %v3129, %v3193
        %v3258 = vadd.f32 %v3130, %v3194
        %v3259 = vadd.f32 %v3131, %v3195
        %v3260 = vadd.f32 %v3132, %v3196
        %v3261 = vadd.f32 %v3133, %v3197
        %v3262 = vadd.f32 %v3134, %v3198
        %v3263 = vadd.f32 %v3135, %v3199
        %v3264 = vadd.f32 %v3136, %v3200
        %v3265 = vadd.f32 %v3137, %v3201
        %v3266 = vadd.f32 %v3138, %v3202
        %v3267 = vadd.f32 %v3139, %v3203
        %v3268 = vadd.f32 %v3140, %v3204
        %v3269 = vadd.f32 %v3141, %v3205
        %v3270 = vadd.f32 %v3142, %v3206
        %v3271 = vadd.f32 %v3143, %v3207
        %v3272 = vadd.f32 %v3144, %v3208
        %v3273 = vadd.f32 %v3145, %v3209
        %v3274 = vadd.f32 %v3146, %v3210
        %v3275 = vmax.f32 %v3211, 0.0
        %v3276 = vmax.f32 %v3212, 0.0
        %v3277 = vmax.f32 %v3213, 0.0
        %v3278 = vmax.f32 %v3214, 0.0
        %v3279 = vmax.f32 %v3215, 0.0
        %v3280 = vmax.f32 %v3216, 0.0
        %v3281 = vmax.f32 %v3217, 0.0
        %v3282 = vmax.f32 %v3218, 0.0
        %v3283 = vmax.f32 %v3219, 0.0
        %v3284 = vmax.f32 %v3220, 0.0
        %v3285 = vmax.f32 %v3221, 0.0
        %v3286 = vmax.f32 %v3222, 0.0
        %v3287 = vmax.f32 %v3223, 0.0
        %v3288 = vmax.f32 %v3224, 0.0
        %v3289 = vmax.f32 %v3225, 0.0
        %v3290 = vmax.f32 %v3226, 0.0
        %v3291 = vmax.f32 %v3227, 0.0
        %v3292 = vmax.f32 %v3228, 0.0
        %v3293 = vmax.f32 %v3229, 0.0
        %v3294 = vmax.f32 %v3230, 0.0
        %v3295 = vmax.f32 %v3231, 0.0
        %v3296 = vmax.f32 %v3232, 0.0
        %v3297 = vmax.f32 %v3233, 0.0
        %v3298 = vmax.f32 %v3234, 0.0
        %v3299 = vmax.f32 %v3235, 0.0
        %v3300 = vmax.f32 %v3236, 0.0
        %v3301 = vmax.f32 %v3237, 0.0
        %v3302 = vmax.f32 %v3238, 0.0
        %v3303 = vmax.f32 %v3239, 0.0
        %v3304 = vmax.f32 %v3240, 0.0
        %v3305 = vmax.f32 %v3241, 0.0
        %v3306 = vmax.f32 %v3242, 0.0
        %v3307 = vmax.f32 %v3243, 0.0
        %v3308 = vmax.f32 %v3244, 0.0
        %v3309 = vmax.f32 %v3245, 0.0
        %v3310 = vmax.f32 %v3246, 0.0
        %v3311 = vmax.f32 %v3247, 0.0
        %v3312 = vmax.f32 %v3248, 0.0
        %v3313 = vmax.f32 %v3249, 0.0
        %v3314 = vmax.f32 %v3250, 0.0
        %v3315 = vmax.f32 %v3251, 0.0
        %v3316 = vmax.f32 %v3252, 0.0
        %v3317 = vmax.f32 %v3253, 0.0
        %v3318 = vmax.f32 %v3254, 0.0
        %v3319 = vmax.f32 %v3255, 0.0
        %v3320 = vmax.f32 %v3256, 0.0
        %v3321 = vmax.f32 %v3257, 0.0
        %v3322 = vmax.f32 %v3258, 0.0
        %v3323 = vmax.f32 %v3259, 0.0
        %v3324 = vmax.f32 %v3260, 0.0
        %v3325 = vmax.f32 %v3261, 0.0
        %v3326 = vmax.f32 %v3262, 0.0
        %v3327 = vmax.f32 %v3263, 0.0
        %v3328 = vmax.f32 %v3264, 0.0
        %v3329 = vmax.f32 %v3265, 0.0
        %v3330 = vmax.f32 %v3266, 0.0
        %v3331 = vmax.f32 %v3267, 0.0
        %v3332 = vmax.f32 %v3268, 0.0
        %v3333 = vmax.f32 %v3269, 0.0
        %v3334 = vmax.f32 %v3270, 0.0
        %v3335 = vmax.f32 %v3271, 0.0
        %v3336 = vmax.f32 %v3272, 0.0
        %v3337 = vmax.f32 %v3273, 0.0
        %v3338 = vmax.f32 %v3274, 0.0
        %3339 = vst [vmem:[%s397] sm:$0xff] %v3275
        %3340 = vst [vmem:[%s397 + $0x8] sm:$0xff] %v3276
        %3341 = vst [vmem:[%s397 + $0x10] sm:$0xff] %v3277
        %3342 = vst [vmem:[%s397 + $0x18] sm:$0xff] %v3278
        %3343 = vst [vmem:[%s397 + $0x20] sm:$0xff] %v3279
        %3344 = vst [vmem:[%s397 + $0x28] sm:$0xff] %v3280
        %3345 = vst [vmem:[%s397 + $0x30] sm:$0xff] %v3281
        %3346 = vst [vmem:[%s397 + $0x38] sm:$0xff] %v3282
        %3347 = vst [vmem:[%s397 + $0x40] sm:$0xff] %v3283
        %3348 = vst [vmem:[%s397 + $0x48] sm:$0xff] %v3284
        %3349 = vst [vmem:[%s397 + $0x50] sm:$0xff] %v3285
        %3350 = vst [vmem:[%s397 + $0x58] sm:$0xff] %v3286
        %3351 = vst [vmem:[%s397 + $0x60] sm:$0xff] %v3287
        %3352 = vst [vmem:[%s397 + $0x68] sm:$0xff] %v3288
        %3353 = vst [vmem:[%s397 + $0x70] sm:$0xff] %v3289
        %3354 = vst [vmem:[%s397 + $0x78] sm:$0xff] %v3290
        %3355 = vst [vmem:[%s397 + $0x80] sm:$0xff] %v3291
        %3356 = vst [vmem:[%s397 + $0x88] sm:$0xff] %v3292
        %3357 = vst [vmem:[%s397 + $0x90] sm:$0xff] %v3293
        %3358 = vst [vmem:[%s397 + $0x98] sm:$0xff] %v3294
        %3359 = vst [vmem:[%s397 + $0xa0] sm:$0xff] %v3295
        %3360 = vst [vmem:[%s397 + $0xa8] sm:$0xff] %v3296
        %3361 = vst [vmem:[%s397 + $0xb0] sm:$0xff] %v3297
        %3362 = vst [vmem:[%s397 + $0xb8] sm:$0xff] %v3298
        %3363 = vst [vmem:[%s397 + $0xc0] sm:$0xff] %v3299
        %3364 = vst [vmem:[%s397 + $0xc8] sm:$0xff] %v3300
        %3365 = vst [vmem:[%s397 + $0xd0] sm:$0xff] %v3301
        %3366 = vst [vmem:[%s397 + $0xd8] sm:$0xff] %v3302
        %3367 = vst [vmem:[%s397 + $0xe0] sm:$0xff] %v3303
        %3368 = vst [vmem:[%s397 + $0xe8] sm:$0xff] %v3304
        %3369 = vst [vmem:[%s397 + $0xf0] sm:$0xff] %v3305
        %3370 = vst [vmem:[%s397 + $0xf8] sm:$0xff] %v3306
        %3371 = vst [vmem:[%s397 + $0x100] sm:$0xff] %v3307
        %3372 = vst [vmem:[%s397 + $0x108] sm:$0xff] %v3308
        %3373 = vst [vmem:[%s397 + $0x110] sm:$0xff] %v3309
        %3374 = vst [vmem:[%s397 + $0x118] sm:$0xff] %v3310
        %3375 = vst [vmem:[%s397 + $0x120] sm:$0xff] %v3311
        %3376 = vst [vmem:[%s397 + $0x128] sm:$0xff] %v3312
        %3377 = vst [vmem:[%s397 + $0x130] sm:$0xff] %v3313
        %3378 = vst [vmem:[%s397 + $0x138] sm:$0xff] %v3314
        %3379 = vst [vmem:[%s397 + $0x140] sm:$0xff] %v3315
        %3380 = vst [vmem:[%s397 + $0x148] sm:$0xff] %v3316
        %3381 = vst [vmem:[%s397 + $0x150] sm:$0xff] %v3317
        %3382 = vst [vmem:[%s397 + $0x158] sm:$0xff] %v3318
        %3383 = vst [vmem:[%s397 + $0x160] sm:$0xff] %v3319
        %3384 = vst [vmem:[%s397 + $0x168] sm:$0xff] %v3320
        %3385 = vst [vmem:[%s397 + $0x170] sm:$0xff] %v3321
        %3386 = vst [vmem:[%s397 + $0x178] sm:$0xff] %v3322
        %3387 = vst [vmem:[%s397 + $0x180] sm:$0xff] %v3323
        %3388 = vst [vmem:[%s397 + $0x188] sm:$0xff] %v3324
        %3389 = vst [vmem:[%s397 + $0x190] sm:$0xff] %v3325
        %3390 = vst [vmem:[%s397 + $0x198] sm:$0xff] %v3326
        %3391 = vst [vmem:[%s397 + $0x1a0] sm:$0xff] %v3327
        %3392 = vst [vmem:[%s397 + $0x1a8] sm:$0xff] %v3328
        %3393 = vst [vmem:[%s397 + $0x1b0] sm:$0xff] %v3329
        %3394 = vst [vmem:[%s397 + $0x1b8] sm:$0xff] %v3330
        %3395 = vst [vmem:[%s397 + $0x1c0] sm:$0xff] %v3331
        %3396 = vst [vmem:[%s397 + $0x1c8] sm:$0xff] %v3332
        %3397 = vst [vmem:[%s397 + $0x1d0] sm:$0xff] %v3333
        %3398 = vst [vmem:[%s397 + $0x1d8] sm:$0xff] %v3334
        %3399 = vst [vmem:[%s397 + $0x1e0] sm:$0xff] %v3335
        %3400 = vst [vmem:[%s397 + $0x1e8] sm:$0xff] %v3336
        %3401 = vst [vmem:[%s397 + $0x1f0] sm:$0xff] %v3337
        %3402 = vst [vmem:[%s397 + $0x1f8] sm:$0xff] %v3338
        %s3403 = sand.u32 %s266, 1
        %s3404 = scalar_lea.sflag [#allocation4], %s3403
        %s3405 = sand.u32 %s266, 1
        %s3406 = smul.addr %s3405, 512
        %s3407 = scalar_lea.vmem [#allocation5], %s3406
        // Predicated region
        $region65: #{tpu_custom_call.1} parent=59 // pred_check
          %p3408 = pneg %p276
        $region66: #{tpu_custom_call.1} parent=59 // pred_check_branch
          %3410 = sbr.rel (%p3408) target = $region68
        $region67: #{tpu_custom_call.1} parent=59 // pred_region
          %s3411 = smul.u32 16, %s32
          %3413 = vsyncadd %s3404, 0
          %s3414 = smul.addr %s3411, 4
          %s3415 = smul.addr %s31, 64
          %s3416 = sadd.s32 %s3414, %s3415
          %s3417 = smul.addr %s3416, 8
          %s3418 = scalar_lea.hbm %s10, %s3417
          %s3419 = sshll.u32 %s3407, 4
          %s3420 = int_to_ptr.vmem [resolvable:$true] %s3419
          %s3421 = sshll.u32 %s3418, 4
          %s3422 = int_to_ptr.hbm [resolvable:$true] %s3421
          %3427 = dma.vmem_to_hbm [thread:$0]  %s3420, 8192, %s3422, %s3404, 256, 256, 16
        $region68: #{tpu_custom_call.1} parent=59 // pred_fallthru
          _
      $region60: #{tpu_custom_call.1} parent=5 // pred_fallthru
        _
      %p3428 = scmp.le.s32.totalorder 2, %s22
      // Predicated region
      $region69: #{tpu_custom_call.1} parent=5 // pred_check
        %p3429 = pneg %p3428
      $region70: #{tpu_custom_call.1} parent=5 // pred_check_branch
        %3431 = sbr.rel (%p3429) target = $region72
      $region71: #{tpu_custom_call.1} parent=5 // pred_region
        %s3432 = ssub.s32 %s22, 2
        // Predicated region
        $region73: #{tpu_custom_call.1} parent=71 // pred_check
          %p3433 = pneg %p282
        $region74: #{tpu_custom_call.1} parent=71 // pred_check_branch
          %3435 = sbr.rel (%p3433) target = $region76
        $region75: #{tpu_custom_call.1} parent=71 // pred_region
          %s3436 = sand.u32 %s267, 1
          %s3437 = scalar_lea.sflag [#allocation4], %s3436
          %s3438 = sand.u32 %s267, 1
          %s3439 = smul.addr %s3438, 512
          %s3440 = scalar_lea.vmem [#allocation5], %s3439
          %3442 = dma.done %s3437, 8192
        $region76: #{tpu_custom_call.1} parent=71 // pred_fallthru
          _
      $region72: #{tpu_custom_call.1} parent=5 // pred_fallthru
        _
    $region6: #{tpu_custom_call.1} parent=1 // loop_footer
      %s26 = sadd.s32 1, %s22
    $region7: #{tpu_custom_call.1} parent=1 // loop_footer_branch
      %21 = sbr.rel target = $region3
    $region8: #{tpu_custom_call.1} parent=1 // loop_exit
      _
    %3443 = vsyncpa [#allocation3], 1
    %s3444 = scalar_lea.sflag [#allocation3], 1
    %3445 = vsyncpa %s3444, 1
    %3446 = vsyncpa [#allocation4], 1
    %s3447 = scalar_lea.sflag [#allocation4], 1
    %3448 = vsyncpa %s3447, 1

</llo_original>
